<compile_context>
chip_gen: v6e
topology: v6e:2x2x1
jax: 0.10.0
libtpu: 0.0.40
codegen_flags: <defaults>
</compile_context>

<pallas_src>
import jax
import jax.numpy as jnp
from jax import lax
from jax.experimental import pallas as pl
from jax.experimental.pallas import tpu as pltpu

ENC_DEC_KERNEL_SIZE = 1024   # K
ENC_DEC_N_FILTERS = 512      # F

# ----------------------------- small-demo config -----------------------------
B = 2                 # batch (even -> both v7x TensorCores busy)
UPSTREAM_DIM = 32     # idim (SSL feature dim)
UPSTREAM_DIM_SPK = 32 # speaker-branch SSL feature dim
HIDDEN = 32           # modelrc['hidden_size']  -> spk embedding dim = 2*HIDDEN
SPK_EMB = 2 * HIDDEN
HEADS = 8             # MHFA head_nb
CMP = 32              # MHFA compression dim
MASK_HID = 64         # hidden dim of the mask head
STRIDE = 256          # upstream_rate (encoder/decoder hop)
K_SIZE = ENC_DEC_KERNEL_SIZE
N_FILT = ENC_DEC_N_FILTERS
T_FRAMES = 16         # number of encoder frames
T_ENROLL = 24         # enrollment utterance feature length

assert K_SIZE % STRIDE == 0
N_BANDS = K_SIZE // STRIDE                       # 4 overlapping bands per hop
N_ROWS = T_FRAMES + N_BANDS - 1                  # rows of the (row, S) waveform view
WAV_LEN = N_ROWS * STRIDE                        # == (T-1)*S + K == decoder output length


# ----------------------------- fused Pallas kernel ----------------------------
def _fused_tse_kernel(src_ref, feats_ref, fkv_ref, tgt_ref,
                      wenc_ref, wdec_ref,
                      wkv_ref, bkv_ref, wa_ref, ba_ref, wo_ref, bo_ref,
                      w1_ref, ws_ref, b1_ref, w2_ref, b2_ref,
                      recon_ref, loss_ref):
    """Encoder + MHFA + mask head + decode/overlap-add + neg-SI-SDR for one utterance."""
    f32 = jnp.float32
    bf16 = jnp.bfloat16

    # ---- free encoder: Conv1d(1, F, K, stride=S) as ONE fused (T, K) @ (K, F) matmul ----
    # frame matrix column-block j == mixture rows j..j+T-1  <->  wenc rows j*S..(j+1)*S-1
    segs = [src_ref[0, pl.ds(j, T_FRAMES), :].astype(bf16) for j in range(N_BANDS)]
    frames = jnp.concatenate(segs, axis=1)                     # (T, K) bf16, lane-aligned
    enc = jnp.dot(frames, wenc_ref[...], preferred_element_type=f32)   # (T, F) f32

    # ---- MHFA speaker embedding (attentive pooling over enrollment frames) ----
    kv_in = fkv_ref[0]                                          # (Te, 2*Dspk): [k | v]
    kvc = jnp.dot(kv_in, wkv_ref[...], preferred_element_type=f32) + bkv_ref[...]  # (Te, 2*C)
    kc = kvc[:, :CMP]                                           # (Te, C)
    vc = kvc[:, CMP:]                                           # (Te, C)
    att = jnp.dot(kc, wa_ref[...], preferred_element_type=f32) + ba_ref[...]       # (Te, H)
    att = att - jnp.max(att, axis=0, keepdims=True)
    att = jnp.exp(att)
    att = att * pl.reciprocal(jnp.sum(att, axis=0, keepdims=True), approx=True)    # softmax(t)
    # single time-contraction pooling: pooled[h, c] = sum_t att[t, h] * vc[t, c]
    pooled = lax.dot_general(att, vc, (((0,), (0,)), ((), ())),
                             preferred_element_type=f32)        # (H, C)
    # sublane->lane flatten (H, C) -> (1, H*C); row-major h*C+c matches wo row order.
    pooled_flat = jnp.concatenate([pooled[h:h + 1, :] for h in range(HEADS)], axis=1)
    spk = jnp.dot(pooled_flat, wo_ref[...], preferred_element_type=f32) + bo_ref[...]  # (1, E)

    # ---- speaker-conditioned mask head (SepRNN stand-in, see TODO) ----
    x = feats_ref[0]                                            # (T, D)
    spk_bias = jnp.dot(spk, ws_ref[...], preferred_element_type=f32) + b1_ref[...]     # (1, MH)
    h = jnp.dot(x, w1_ref[...], preferred_element_type=f32) + spk_bias
    h = jnp.maximum(h, 0.0)
    m = jnp.dot(h, w2_ref[...], preferred_element_type=f32) + b2_ref[...]
    mask = pl.reciprocal(1.0 + jnp.exp(-m), approx=True)        # sigmoid mask (T, F), EUP

    # ---- masked decode + local overlap-add (ConvTranspose1d(F, 1, K, stride=S)) ----
    tf = (mask * enc).astype(bf16)                              # predict_tf, (T, F)
    bands = jnp.dot(tf, wdec_ref[...], preferred_element_type=f32)     # (T, K) f32
    recon = None
    for j in range(N_BANDS):                                    # static unroll (4)
        band = bands[:, j * STRIDE:(j + 1) * STRIDE]            # (T, S), lane-aligned slice
        parts = []
        if j > 0:
            parts.append(jnp.zeros((j, STRIDE), f32))
        parts.append(band)
        if N_BANDS - 1 - j > 0:
            parts.append(jnp.zeros((N_BANDS - 1 - j, STRIDE), f32))
        shifted = jnp.concatenate(parts, axis=0)                # (N_ROWS, S)
        recon = shifted if recon is None else recon + shifted
    recon_ref[0, :, :] = recon                                  # single aligned block store

    # ---- fused TimeSISDR (zero-mean negative SI-SDR), closed form ----
    def tsum(z):                                                # full sum -> (1, 1)
        return jnp.sum(jnp.sum(z, axis=1, keepdims=True), axis=0, keepdims=True)

    est = recon                                                 # local value, no readback
    tgt = tgt_ref[0]                                            # (N_ROWS, S) f32
    inv_n = 1.0 / float(N_ROWS * STRIDE)
    s_e = tsum(est)
    s_t = tsum(tgt)
    dot_raw = tsum(est * tgt)
    ee_raw = tsum(est * est)
    tt_raw = tsum(tgt * tgt)
    # zero-mean statistics folded into the scalars
    dot = dot_raw - s_e * s_t * inv_n
    est_e = ee_raw - s_e * s_e * inv_n
    tgt_e = tt_raw - s_t * s_t * inv_n + 1e-8
    s_tgt_e = dot * dot / tgt_e                                 # ||alpha * tgt||^2
    noise_e = est_e - s_tgt_e + 1e-8                            # ||est - alpha * tgt||^2
    ratio = s_tgt_e / noise_e
    neg_sisdr = -10.0 * jnp.log10(ratio + 1e-8)                 # (1, 1)
    loss_ref[0] = jnp.broadcast_to(neg_sisdr, (1, 128))         # lane-dense loss block


# --------------------------- pallas_call wrapper -------------------------------
def fused_tse_forward(source_wav, feats, fk, fv, targets, p):
    bsz, wav_len = source_wav.shape
    assert wav_len == WAV_LEN
    src3 = source_wav.reshape(bsz, N_ROWS, STRIDE)             # free row-major reshape
    tgt3 = targets.reshape(bsz, N_ROWS, STRIDE)
    fkv = jnp.concatenate([fk, fv], axis=-1)                   # (B, Te, 2*Dspk)
    t_len, d = feats.shape[1], feats.shape[2]
    te, dspk2 = fkv.shape[1], fkv.shape[2]

    batch3 = lambda shp: pl.BlockSpec(shp, lambda b: (b, 0, 0))
    const2 = lambda shp: pl.BlockSpec(shp, lambda b: (0, 0))

    recon3, loss_b = pl.pallas_call(
        _fused_tse_kernel,
        out_shape=(jax.ShapeDtypeStruct((bsz, N_ROWS, STRIDE), jnp.float32),
                   jax.ShapeDtypeStruct((bsz, 1, 128), jnp.float32)),
        grid_spec=pltpu.PrefetchScalarGridSpec(
            num_scalar_prefetch=0, grid=(bsz,),
            in_specs=[
                batch3((1, N_ROWS, STRIDE)),                   # mixture waveform rows
                batch3((1, t_len, d)),                         # upstream features
                batch3((1, te, dspk2)),                        # enrollment [k | v]
                batch3((1, N_ROWS, STRIDE)),                   # target waveform rows
                const2((K_SIZE, N_FILT)),                      # enc filterbank (bf16)
                const2((N_FILT, K_SIZE)),                      # dec filterbank (bf16)
                const2((2 * UPSTREAM_DIM_SPK, 2 * CMP)),       # MHFA block-diag k|v proj
                const2((1, 2 * CMP)),
                const2((CMP, HEADS)), const2((1, HEADS)),      # MHFA attention proj
                const2((HEADS * CMP, SPK_EMB)),                # MHFA output proj (flat)
                const2((1, SPK_EMB)),
                const2((d, MASK_HID)), const2((SPK_EMB, MASK_HID)), const2((1, MASK_HID)),
                const2((MASK_HID, N_FILT)), const2((1, N_FILT)),
            ],
            out_specs=(batch3((1, N_ROWS, STRIDE)),
                       batch3((1, 1, 128)))),
        compiler_params=pltpu.CompilerParams(
            dimension_semantics=("parallel",)),
    )(src3, feats, fkv, tgt3,
      p["enc_w"], p["dec_w"],
      p["mhfa_wkv"], p["mhfa_bkv"], p["mhfa_wa"], p["mhfa_ba"],
      p["mhfa_wo"], p["mhfa_bo"],
      p["mask_w1"], p["mask_ws"], p["mask_b1"], p["mask_w2"], p["mask_b2"])
    return recon3, loss_b


# ------------------------------- glue (plain JAX) ------------------------------
def match_length(feat_list, length_list):
    """Exact semantics of expert.match_length (trim or zero-pad to feat_length)."""
    assert len(feat_list) == len(length_list)
    out = []
    for feat, tgt_len in zip(feat_list, length_list):
        assert abs(feat.shape[0] - tgt_len) < 20, f"{feat.shape[0]}, {tgt_len}"
        if feat.shape[0] == tgt_len:
            out.append(feat)
        elif feat.shape[0] > tgt_len:
            out.append(feat[:tgt_len, :])
        else:
            new_feat = jnp.zeros((tgt_len, feat.shape[1]), feat.dtype)
            out.append(new_feat.at[:feat.shape[0], :].set(feat))
    return out


def pad_x_to_y(x, y):
    ly, lx = y.shape[-1], x.shape[-1]
    if lx >= ly:
        return x[..., :ly]
    return jnp.pad(x, ((0, 0), (0, ly - lx)))


def downstream_expert_forward(params, source_wav_list, features, features_k,
                              features_v, target_wav_list):
    """Train-mode forward of DownstreamExpert.forward; hot path = ONE fused Pallas call."""
    bsz = len(source_wav_list)
    source_wav = jnp.stack(source_wav_list, axis=0)            # (B, L)
    feat_length = [T_FRAMES] * bsz                             # encoder frame count

    # match upstream features to encoder frame count (pack_sequence analogue), stack
    feats = jnp.stack(match_length(features, feat_length), axis=0)   # (B, T, D)
    fk = jnp.stack(features_k, axis=0)                         # (B, Te, Dspk)
    fv = jnp.stack(features_v, axis=0)
    targets = target_wav_list[0]                               # (B, L), single TSE source

    recon3, loss_b = fused_tse_forward(source_wav, feats, fk, fv, targets, params)
    reconstructed = pad_x_to_y(recon3.reshape(bsz, -1), source_wav)   # (B, L), trim no-op
    loss = jnp.mean(loss_b[:, 0, 0])                           # PIT trivial (1 source)
    return loss, reconstructed


# ------------------------------- parameters -----------------------------------
def init_params(key):
    ks = jax.random.split(key, 16)
    s = 0.05
    p = {}
    # free enc/dec filterbanks (Conv1d(1,F,K) / ConvTranspose1d(F,1,K), no bias), bf16 MXU
    p["enc_w"] = (s * jax.random.normal(ks[0], (K_SIZE, N_FILT), jnp.float32)).astype(jnp.bfloat16)
    p["dec_w"] = (s * jax.random.normal(ks[1], (N_FILT, K_SIZE), jnp.float32)).astype(jnp.bfloat16)
    # MHFA(head_nb=8, inputs_dim=UPSTREAM_DIM_SPK, outputs_dim=2*HIDDEN)
    wk = s * jax.random.normal(ks[2], (UPSTREAM_DIM_SPK, CMP), jnp.float32)
    bk = jnp.zeros((1, CMP), jnp.float32)
    wv = s * jax.random.normal(ks[3], (UPSTREAM_DIM_SPK, CMP), jnp.float32)
    bv = jnp.zeros((1, CMP), jnp.float32)
    # block-diag(wk, wv) so kc|vc come from ONE matmul on the [k|v] enrollment features
    wkv = jnp.zeros((2 * UPSTREAM_DIM_SPK, 2 * CMP), jnp.float32)
    wkv = wkv.at[:UPSTREAM_DIM_SPK, :CMP].set(wk)
    wkv = wkv.at[UPSTREAM_DIM_SPK:, CMP:].set(wv)
    p["mhfa_wkv"] = wkv
    p["mhfa_bkv"] = jnp.concatenate([bk, bv], axis=1)
    p["mhfa_wa"] = s * jax.random.normal(ks[4], (CMP, HEADS), jnp.float32)
    p["mhfa_ba"] = jnp.zeros((1, HEADS), jnp.float32)
    # output projection stored flat: row h*CMP + c  <->  torch wo[h, c, :]
    p["mhfa_wo"] = s * jax.random.normal(ks[5], (HEADS * CMP, SPK_EMB), jnp.float32)
    p["mhfa_bo"] = jnp.zeros((1, SPK_EMB), jnp.float32)
    # mask head (SepRNN stand-in): feat/spk projections -> sigmoid mask over F filters
    p["mask_w1"] = s * jax.random.normal(ks[6], (UPSTREAM_DIM, MASK_HID), jnp.float32)
    p["mask_ws"] = s * jax.random.normal(ks[7], (SPK_EMB, MASK_HID), jnp.float32)
    p["mask_b1"] = jnp.zeros((1, MASK_HID), jnp.float32)
    p["mask_w2"] = s * jax.random.normal(ks[8], (MASK_HID, N_FILT), jnp.float32)
    p["mask_b2"] = jnp.zeros((1, N_FILT), jnp.float32)
    return p


# --------------------------------- demo ---------------------------------------
if __name__ == "__main__":
    key = jax.random.PRNGKey(0)
    kp, k1, k2, k3, k4, k5 = jax.random.split(key, 6)
    params = init_params(kp)

    # mixture waveforms (source_attr['source_wav_list'])
    source_wav_list = [0.1 * jax.random.normal(k1, (WAV_LEN,), jnp.float32) for _ in range(B)]
    source_wav_list = [w + 0.01 * i for i, w in enumerate(source_wav_list)]
    # upstream SSL features (unpadded, slightly off-length to exercise match_length)
    feat_lens = [T_FRAMES + 2, T_FRAMES - 3]
    features = [jax.random.normal(jax.random.fold_in(k2, i), (feat_lens[i], UPSTREAM_DIM),
                                  jnp.float32) for i in range(B)]
    # enrollment features for the speaker branch (features_k / features_v)
    features_k = [jax.random.normal(jax.random.fold_in(k3, i), (T_ENROLL, UPSTREAM_DIM_SPK),
                                    jnp.float32) for i in range(B)]
    features_v = [jax.random.normal(jax.random.fold_in(k4, i), (T_ENROLL, UPSTREAM_DIM_SPK),
                                    jnp.float32) for i in range(B)]
    # target (clean) waveform of the enrolled speaker, single source for TSE
    target_wav_list = [0.1 * jax.random.normal(k5, (B, WAV_LEN), jnp.float32)]

    loss, reconstructed = downstream_expert_forward(
        params, source_wav_list, features, features_k, features_v, target_wav_list)
    jax.block_until_ready((loss, reconstructed))

    assert reconstructed.shape == (B, WAV_LEN)
    assert jnp.isfinite(loss)
    print("KERNEL_OK")
</pallas_src>

<mosaic_0001>
module attributes {stable_mosaic.version = 11 : i64} {
  func.func @_fused_tse_kernel(%arg0: i32, %arg1: memref<1x19x256xf32, #tpu.memory_space<vmem>>, %arg2: memref<1x16x32xf32, #tpu.memory_space<vmem>>, %arg3: memref<1x24x64xf32, #tpu.memory_space<vmem>>, %arg4: memref<1x19x256xf32, #tpu.memory_space<vmem>>, %arg5: memref<1024x512xbf16, #tpu.memory_space<vmem>>, %arg6: memref<512x1024xbf16, #tpu.memory_space<vmem>>, %arg7: memref<64x64xf32, #tpu.memory_space<vmem>>, %arg8: memref<1x64xf32, #tpu.memory_space<vmem>>, %arg9: memref<32x8xf32, #tpu.memory_space<vmem>>, %arg10: memref<1x8xf32, #tpu.memory_space<vmem>>, %arg11: memref<256x64xf32, #tpu.memory_space<vmem>>, %arg12: memref<1x64xf32, #tpu.memory_space<vmem>>, %arg13: memref<32x64xf32, #tpu.memory_space<vmem>>, %arg14: memref<64x64xf32, #tpu.memory_space<vmem>>, %arg15: memref<1x64xf32, #tpu.memory_space<vmem>>, %arg16: memref<64x512xf32, #tpu.memory_space<vmem>>, %arg17: memref<1x512xf32, #tpu.memory_space<vmem>>, %arg18: memref<1x19x256xf32, #tpu.memory_space<vmem>>, %arg19: memref<1x1x128xf32, #tpu.memory_space<vmem>>) attributes {dimension_semantics = [#tpu.dimension_semantics<parallel>], iteration_bounds = array<i64: 2>, scalar_prefetch = 0 : i64, scratch_operands = 0 : i64, tpu.core_type = #tpu.core_type<tc>, window_params = [{transform_indices = @transform_0, window_bounds = array<i64: 1, 19, 256>}, {transform_indices = @transform_1, window_bounds = array<i64: 1, 16, 32>}, {transform_indices = @transform_2, window_bounds = array<i64: 1, 24, 64>}, {transform_indices = @transform_3, window_bounds = array<i64: 1, 19, 256>}, {pipeline_mode = #tpu.pipeline_mode<synchronous>, transform_indices = @transform_4, window_bounds = array<i64: 1024, 512>}, {pipeline_mode = #tpu.pipeline_mode<synchronous>, transform_indices = @transform_5, window_bounds = array<i64: 512, 1024>}, {pipeline_mode = #tpu.pipeline_mode<synchronous>, transform_indices = @transform_6, window_bounds = array<i64: 64, 64>}, {pipeline_mode = #tpu.pipeline_mode<synchronous>, transform_indices = @transform_7, window_bounds = array<i64: 1, 64>}, {pipeline_mode = #tpu.pipeline_mode<synchronous>, transform_indices = @transform_8, window_bounds = array<i64: 32, 8>}, {pipeline_mode = #tpu.pipeline_mode<synchronous>, transform_indices = @transform_9, window_bounds = array<i64: 1, 8>}, {pipeline_mode = #tpu.pipeline_mode<synchronous>, transform_indices = @transform_10, window_bounds = array<i64: 256, 64>}, {pipeline_mode = #tpu.pipeline_mode<synchronous>, transform_indices = @transform_11, window_bounds = array<i64: 1, 64>}, {pipeline_mode = #tpu.pipeline_mode<synchronous>, transform_indices = @transform_12, window_bounds = array<i64: 32, 64>}, {pipeline_mode = #tpu.pipeline_mode<synchronous>, transform_indices = @transform_13, window_bounds = array<i64: 64, 64>}, {pipeline_mode = #tpu.pipeline_mode<synchronous>, transform_indices = @transform_14, window_bounds = array<i64: 1, 64>}, {pipeline_mode = #tpu.pipeline_mode<synchronous>, transform_indices = @transform_15, window_bounds = array<i64: 64, 512>}, {pipeline_mode = #tpu.pipeline_mode<synchronous>, transform_indices = @transform_16, window_bounds = array<i64: 1, 512>}, {transform_indices = @transform_17, window_bounds = array<i64: 1, 19, 256>}, {transform_indices = @transform_18, window_bounds = array<i64: 1, 1, 128>}]} {
    %c0 = arith.constant 0 : index
    %c0_0 = arith.constant 0 : index
    %c0_1 = arith.constant 0 : index
    %0 = vector.load %arg1[%c0, %c0_0, %c0_1] : memref<1x19x256xf32, #tpu.memory_space<vmem>>, vector<1x16x256xf32>
    %1 = vector.shape_cast %0 : vector<1x16x256xf32> to vector<16x256xf32>
    %2 = arith.truncf %1 : vector<16x256xf32> to vector<16x256xbf16>
    %c0_2 = arith.constant 0 : index
    %c1 = arith.constant 1 : index
    %c0_3 = arith.constant 0 : index
    %3 = vector.load %arg1[%c0_2, %c1, %c0_3] : memref<1x19x256xf32, #tpu.memory_space<vmem>>, vector<1x16x256xf32>
    %4 = vector.shape_cast %3 : vector<1x16x256xf32> to vector<16x256xf32>
    %5 = arith.truncf %4 : vector<16x256xf32> to vector<16x256xbf16>
    %c0_4 = arith.constant 0 : index
    %c2 = arith.constant 2 : index
    %c0_5 = arith.constant 0 : index
    %6 = vector.load %arg1[%c0_4, %c2, %c0_5] : memref<1x19x256xf32, #tpu.memory_space<vmem>>, vector<1x16x256xf32>
    %7 = vector.shape_cast %6 : vector<1x16x256xf32> to vector<16x256xf32>
    %8 = arith.truncf %7 : vector<16x256xf32> to vector<16x256xbf16>
    %c0_6 = arith.constant 0 : index
    %c3 = arith.constant 3 : index
    %c0_7 = arith.constant 0 : index
    %9 = vector.load %arg1[%c0_6, %c3, %c0_7] : memref<1x19x256xf32, #tpu.memory_space<vmem>>, vector<1x16x256xf32>
    %10 = vector.shape_cast %9 : vector<1x16x256xf32> to vector<16x256xf32>
    %11 = arith.truncf %10 : vector<16x256xf32> to vector<16x256xbf16>
    %12 = tpu.concatenate %2, %5, %8, %11 in 1 : vector<16x256xbf16>, vector<16x256xbf16>, vector<16x256xbf16>, vector<16x256xbf16> -> vector<16x1024xbf16>
    %c0_8 = arith.constant 0 : index
    %c0_9 = arith.constant 0 : index
    %13 = vector.load %arg5[%c0_8, %c0_9] : memref<1024x512xbf16, #tpu.memory_space<vmem>>, vector<1024x512xbf16>
    %cst = arith.constant dense<0.000000e+00> : vector<16x512xf32>
    %14 = tpu.matmul %12, %13, %cst {dimension_numbers = #tpu.dot_dimension_numbers<[1], [0], [0], [1], [0, 0, 1, 1], [], []>} : vector<16x1024xbf16>, vector<1024x512xbf16>, vector<16x512xf32> -> vector<16x512xf32>
    %c0_10 = arith.constant 0 : index
    %c0_11 = arith.constant 0 : index
    %c0_12 = arith.constant 0 : index
    %15 = vector.load %arg3[%c0_10, %c0_11, %c0_12] : memref<1x24x64xf32, #tpu.memory_space<vmem>>, vector<1x24x64xf32>
    %16 = vector.shape_cast %15 : vector<1x24x64xf32> to vector<24x64xf32>
    %c0_13 = arith.constant 0 : index
    %c0_14 = arith.constant 0 : index
    %17 = vector.load %arg7[%c0_13, %c0_14] : memref<64x64xf32, #tpu.memory_space<vmem>>, vector<64x64xf32>
    %cst_15 = arith.constant dense<0.000000e+00> : vector<24x64xf32>
    %18 = tpu.matmul %16, %17, %cst_15 {dimension_numbers = #tpu.dot_dimension_numbers<[1], [0], [0], [1], [0, 0, 1, 1], [], []>} : vector<24x64xf32>, vector<64x64xf32>, vector<24x64xf32> -> vector<24x64xf32>
    %c0_16 = arith.constant 0 : index
    %c0_17 = arith.constant 0 : index
    %19 = vector.load %arg8[%c0_16, %c0_17] : memref<1x64xf32, #tpu.memory_space<vmem>>, vector<1x64xf32>
    %20 = vector.broadcast %19 : vector<1x64xf32> to vector<24x64xf32>
    %21 = arith.addf %18, %20 : vector<24x64xf32>
    %22 = vector.extract_strided_slice %21 {offsets = [0, 0], sizes = [24, 32], strides = [1, 1]} : vector<24x64xf32> to vector<24x32xf32>
    %23 = vector.extract_strided_slice %21 {offsets = [0, 32], sizes = [24, 32], strides = [1, 1]} : vector<24x64xf32> to vector<24x32xf32>
    %c0_18 = arith.constant 0 : index
    %c0_19 = arith.constant 0 : index
    %24 = vector.load %arg9[%c0_18, %c0_19] : memref<32x8xf32, #tpu.memory_space<vmem>>, vector<32x8xf32>
    %cst_20 = arith.constant dense<0.000000e+00> : vector<24x8xf32>
    %25 = tpu.matmul %22, %24, %cst_20 {dimension_numbers = #tpu.dot_dimension_numbers<[1], [0], [0], [1], [0, 0, 1, 1], [], []>} : vector<24x32xf32>, vector<32x8xf32>, vector<24x8xf32> -> vector<24x8xf32>
    %c0_21 = arith.constant 0 : index
    %c0_22 = arith.constant 0 : index
    %26 = vector.load %arg10[%c0_21, %c0_22] : memref<1x8xf32, #tpu.memory_space<vmem>>, vector<1x8xf32>
    %27 = vector.broadcast %26 : vector<1x8xf32> to vector<24x8xf32>
    %28 = arith.addf %25, %27 : vector<24x8xf32>
    %cst_23 = arith.constant dense<0xFF800000> : vector<8xf32>
    %29 = vector.multi_reduction <maximumf>, %28, %cst_23 [0] : vector<24x8xf32> to vector<8xf32>
    %30 = vector.shape_cast %29 : vector<8xf32> to vector<1x8xf32>
    %31 = vector.broadcast %30 : vector<1x8xf32> to vector<24x8xf32>
    %32 = arith.subf %28, %31 : vector<24x8xf32>
    %33 = math.exp %32 : vector<24x8xf32>
    %cst_24 = arith.constant dense<0.000000e+00> : vector<8xf32>
    %34 = vector.multi_reduction <add>, %33, %cst_24 [0] : vector<24x8xf32> to vector<8xf32>
    %35 = vector.shape_cast %34 : vector<8xf32> to vector<1x8xf32>
    %36 = tpu.reciprocal %35 {approx = true} : vector<1x8xf32> -> vector<1x8xf32>
    %37 = vector.broadcast %36 : vector<1x8xf32> to vector<24x8xf32>
    %38 = arith.mulf %33, %37 : vector<24x8xf32>
    %cst_25 = arith.constant dense<0.000000e+00> : vector<8x32xf32>
    %39 = tpu.matmul %38, %23, %cst_25 {dimension_numbers = #tpu.dot_dimension_numbers<[0], [0], [1], [1], [0, 1, 1, 1], [], []>} : vector<24x8xf32>, vector<24x32xf32>, vector<8x32xf32> -> vector<8x32xf32>
    %40 = vector.extract_strided_slice %39 {offsets = [0, 0], sizes = [1, 32], strides = [1, 1]} : vector<8x32xf32> to vector<1x32xf32>
    %41 = vector.extract_strided_slice %39 {offsets = [1, 0], sizes = [1, 32], strides = [1, 1]} : vector<8x32xf32> to vector<1x32xf32>
    %42 = vector.extract_strided_slice %39 {offsets = [2, 0], sizes = [1, 32], strides = [1, 1]} : vector<8x32xf32> to vector<1x32xf32>
    %43 = vector.extract_strided_slice %39 {offsets = [3, 0], sizes = [1, 32], strides = [1, 1]} : vector<8x32xf32> to vector<1x32xf32>
    %44 = vector.extract_strided_slice %39 {offsets = [4, 0], sizes = [1, 32], strides = [1, 1]} : vector<8x32xf32> to vector<1x32xf32>
    %45 = vector.extract_strided_slice %39 {offsets = [5, 0], sizes = [1, 32], strides = [1, 1]} : vector<8x32xf32> to vector<1x32xf32>
    %46 = vector.extract_strided_slice %39 {offsets = [6, 0], sizes = [1, 32], strides = [1, 1]} : vector<8x32xf32> to vector<1x32xf32>
    %47 = vector.extract_strided_slice %39 {offsets = [7, 0], sizes = [1, 32], strides = [1, 1]} : vector<8x32xf32> to vector<1x32xf32>
    %48 = tpu.concatenate %40, %41, %42, %43, %44, %45, %46, %47 in 1 : vector<1x32xf32>, vector<1x32xf32>, vector<1x32xf32>, vector<1x32xf32>, vector<1x32xf32>, vector<1x32xf32>, vector<1x32xf32>, vector<1x32xf32> -> vector<1x256xf32>
    %c0_26 = arith.constant 0 : index
    %c0_27 = arith.constant 0 : index
    %49 = vector.load %arg11[%c0_26, %c0_27] : memref<256x64xf32, #tpu.memory_space<vmem>>, vector<256x64xf32>
    %cst_28 = arith.constant dense<0.000000e+00> : vector<1x64xf32>
    %50 = tpu.matmul %48, %49, %cst_28 {dimension_numbers = #tpu.dot_dimension_numbers<[1], [0], [0], [1], [0, 0, 1, 1], [], []>} : vector<1x256xf32>, vector<256x64xf32>, vector<1x64xf32> -> vector<1x64xf32>
    %c0_29 = arith.constant 0 : index
    %c0_30 = arith.constant 0 : index
    %51 = vector.load %arg12[%c0_29, %c0_30] : memref<1x64xf32, #tpu.memory_space<vmem>>, vector<1x64xf32>
    %52 = arith.addf %50, %51 : vector<1x64xf32>
    %c0_31 = arith.constant 0 : index
    %c0_32 = arith.constant 0 : index
    %c0_33 = arith.constant 0 : index
    %53 = vector.load %arg2[%c0_31, %c0_32, %c0_33] : memref<1x16x32xf32, #tpu.memory_space<vmem>>, vector<1x16x32xf32>
    %54 = vector.shape_cast %53 : vector<1x16x32xf32> to vector<16x32xf32>
    %c0_34 = arith.constant 0 : index
    %c0_35 = arith.constant 0 : index
    %55 = vector.load %arg14[%c0_34, %c0_35] : memref<64x64xf32, #tpu.memory_space<vmem>>, vector<64x64xf32>
    %cst_36 = arith.constant dense<0.000000e+00> : vector<1x64xf32>
    %56 = tpu.matmul %52, %55, %cst_36 {dimension_numbers = #tpu.dot_dimension_numbers<[1], [0], [0], [1], [0, 0, 1, 1], [], []>} : vector<1x64xf32>, vector<64x64xf32>, vector<1x64xf32> -> vector<1x64xf32>
    %c0_37 = arith.constant 0 : index
    %c0_38 = arith.constant 0 : index
    %57 = vector.load %arg15[%c0_37, %c0_38] : memref<1x64xf32, #tpu.memory_space<vmem>>, vector<1x64xf32>
    %58 = arith.addf %56, %57 : vector<1x64xf32>
    %c0_39 = arith.constant 0 : index
    %c0_40 = arith.constant 0 : index
    %59 = vector.load %arg13[%c0_39, %c0_40] : memref<32x64xf32, #tpu.memory_space<vmem>>, vector<32x64xf32>
    %cst_41 = arith.constant dense<0.000000e+00> : vector<16x64xf32>
    %60 = tpu.matmul %54, %59, %cst_41 {dimension_numbers = #tpu.dot_dimension_numbers<[1], [0], [0], [1], [0, 0, 1, 1], [], []>} : vector<16x32xf32>, vector<32x64xf32>, vector<16x64xf32> -> vector<16x64xf32>
    %61 = vector.broadcast %58 : vector<1x64xf32> to vector<16x64xf32>
    %62 = arith.addf %60, %61 : vector<16x64xf32>
    %cst_42 = arith.constant 0.000000e+00 : f32
    %63 = vector.broadcast %cst_42 : f32 to vector<16x64xf32>
    %64 = arith.maximumf %62, %63 : vector<16x64xf32>
    %c0_43 = arith.constant 0 : index
    %c0_44 = arith.constant 0 : index
    %65 = vector.load %arg16[%c0_43, %c0_44] : memref<64x512xf32, #tpu.memory_space<vmem>>, vector<64x512xf32>
    %cst_45 = arith.constant dense<0.000000e+00> : vector<16x512xf32>
    %66 = tpu.matmul %64, %65, %cst_45 {dimension_numbers = #tpu.dot_dimension_numbers<[1], [0], [0], [1], [0, 0, 1, 1], [], []>} : vector<16x64xf32>, vector<64x512xf32>, vector<16x512xf32> -> vector<16x512xf32>
    %c0_46 = arith.constant 0 : index
    %c0_47 = arith.constant 0 : index
    %67 = vector.load %arg17[%c0_46, %c0_47] : memref<1x512xf32, #tpu.memory_space<vmem>>, vector<1x512xf32>
    %68 = vector.broadcast %67 : vector<1x512xf32> to vector<16x512xf32>
    %69 = arith.addf %66, %68 : vector<16x512xf32>
    %cst_48 = arith.constant 0.000000e+00 : f32
    %70 = vector.broadcast %cst_48 : f32 to vector<16x512xf32>
    %71 = arith.subf %70, %69 : vector<16x512xf32>
    %72 = math.exp %71 : vector<16x512xf32>
    %cst_49 = arith.constant 1.000000e+00 : f32
    %73 = vector.broadcast %cst_49 : f32 to vector<16x512xf32>
    %74 = arith.addf %73, %72 : vector<16x512xf32>
    %75 = tpu.reciprocal %74 {approx = true} : vector<16x512xf32> -> vector<16x512xf32>
    %76 = arith.mulf %75, %14 : vector<16x512xf32>
    %77 = arith.truncf %76 : vector<16x512xf32> to vector<16x512xbf16>
    %c0_50 = arith.constant 0 : index
    %c0_51 = arith.constant 0 : index
    %78 = vector.load %arg6[%c0_50, %c0_51] : memref<512x1024xbf16, #tpu.memory_space<vmem>>, vector<512x1024xbf16>
    %cst_52 = arith.constant dense<0.000000e+00> : vector<16x1024xf32>
    %79 = tpu.matmul %77, %78, %cst_52 {dimension_numbers = #tpu.dot_dimension_numbers<[1], [0], [0], [1], [0, 0, 1, 1], [], []>} : vector<16x512xbf16>, vector<512x1024xbf16>, vector<16x1024xf32> -> vector<16x1024xf32>
    %80 = vector.extract_strided_slice %79 {offsets = [0, 0], sizes = [16, 256], strides = [1, 1]} : vector<16x1024xf32> to vector<16x256xf32>
    %cst_53 = arith.constant 0.000000e+00 : f32
    %81 = vector.broadcast %cst_53 : f32 to vector<3x256xf32>
    %82 = tpu.concatenate %80, %81 in 0 : vector<16x256xf32>, vector<3x256xf32> -> vector<19x256xf32>
    %83 = vector.extract_strided_slice %79 {offsets = [0, 256], sizes = [16, 256], strides = [1, 1]} : vector<16x1024xf32> to vector<16x256xf32>
    %cst_54 = arith.constant 0.000000e+00 : f32
    %84 = vector.broadcast %cst_54 : f32 to vector<1x256xf32>
    %cst_55 = arith.constant 0.000000e+00 : f32
    %85 = vector.broadcast %cst_55 : f32 to vector<2x256xf32>
    %86 = tpu.concatenate %84, %83, %85 in 0 : vector<1x256xf32>, vector<16x256xf32>, vector<2x256xf32> -> vector<19x256xf32>
    %87 = arith.addf %82, %86 : vector<19x256xf32>
    %88 = vector.extract_strided_slice %79 {offsets = [0, 512], sizes = [16, 256], strides = [1, 1]} : vector<16x1024xf32> to vector<16x256xf32>
    %cst_56 = arith.constant 0.000000e+00 : f32
    %89 = vector.broadcast %cst_56 : f32 to vector<2x256xf32>
    %cst_57 = arith.constant 0.000000e+00 : f32
    %90 = vector.broadcast %cst_57 : f32 to vector<1x256xf32>
    %91 = tpu.concatenate %89, %88, %90 in 0 : vector<2x256xf32>, vector<16x256xf32>, vector<1x256xf32> -> vector<19x256xf32>
    %92 = arith.addf %87, %91 : vector<19x256xf32>
    %93 = vector.extract_strided_slice %79 {offsets = [0, 768], sizes = [16, 256], strides = [1, 1]} : vector<16x1024xf32> to vector<16x256xf32>
    %cst_58 = arith.constant 0.000000e+00 : f32
    %94 = vector.broadcast %cst_58 : f32 to vector<3x256xf32>
    %95 = tpu.concatenate %94, %93 in 0 : vector<3x256xf32>, vector<16x256xf32> -> vector<19x256xf32>
    %96 = arith.addf %92, %95 : vector<19x256xf32>
    %c0_59 = arith.constant 0 : index
    %c0_60 = arith.constant 0 : index
    %c0_61 = arith.constant 0 : index
    %97 = vector.load %arg18[%c0_59, %c0_60, %c0_61] : memref<1x19x256xf32, #tpu.memory_space<vmem>>, vector<1x19x256xf32>
    %98 = vector.shape_cast %97 : vector<1x19x256xf32> to vector<19x256xf32>
    %99 = vector.shape_cast %96 : vector<19x256xf32> to vector<1x19x256xf32>
    tpu.vector_store %arg18[%c0_59, %c0_60, %c0_61], %99 {strides = array<i32>} : memref<1x19x256xf32, #tpu.memory_space<vmem>>, vector<1x19x256xf32>,
    %c0_62 = arith.constant 0 : index
    %c0_63 = arith.constant 0 : index
    %c0_64 = arith.constant 0 : index
    %100 = vector.load %arg4[%c0_62, %c0_63, %c0_64] : memref<1x19x256xf32, #tpu.memory_space<vmem>>, vector<1x19x256xf32>
    %101 = vector.shape_cast %100 : vector<1x19x256xf32> to vector<19x256xf32>
    %cst_65 = arith.constant dense<0.000000e+00> : vector<19xf32>
    %102 = vector.multi_reduction <add>, %96, %cst_65 [1] : vector<19x256xf32> to vector<19xf32>
    %103 = vector.shape_cast %102 : vector<19xf32> to vector<19x1xf32>
    %cst_66 = arith.constant dense<0.000000e+00> : vector<1xf32>
    %104 = vector.multi_reduction <add>, %103, %cst_66 [0] : vector<19x1xf32> to vector<1xf32>
    %105 = vector.shape_cast %104 : vector<1xf32> to vector<1x1xf32>
    %cst_67 = arith.constant dense<0.000000e+00> : vector<19xf32>
    %106 = vector.multi_reduction <add>, %101, %cst_67 [1] : vector<19x256xf32> to vector<19xf32>
    %107 = vector.shape_cast %106 : vector<19xf32> to vector<19x1xf32>
    %cst_68 = arith.constant dense<0.000000e+00> : vector<1xf32>
    %108 = vector.multi_reduction <add>, %107, %cst_68 [0] : vector<19x1xf32> to vector<1xf32>
    %109 = vector.shape_cast %108 : vector<1xf32> to vector<1x1xf32>
    %110 = arith.mulf %96, %101 : vector<19x256xf32>
    %cst_69 = arith.constant dense<0.000000e+00> : vector<19xf32>
    %111 = vector.multi_reduction <add>, %110, %cst_69 [1] : vector<19x256xf32> to vector<19xf32>
    %112 = vector.shape_cast %111 : vector<19xf32> to vector<19x1xf32>
    %cst_70 = arith.constant dense<0.000000e+00> : vector<1xf32>
    %113 = vector.multi_reduction <add>, %112, %cst_70 [0] : vector<19x1xf32> to vector<1xf32>
    %114 = vector.shape_cast %113 : vector<1xf32> to vector<1x1xf32>
    %115 = arith.mulf %96, %96 : vector<19x256xf32>
    %cst_71 = arith.constant dense<0.000000e+00> : vector<19xf32>
    %116 = vector.multi_reduction <add>, %115, %cst_71 [1] : vector<19x256xf32> to vector<19xf32>
    %117 = vector.shape_cast %116 : vector<19xf32> to vector<19x1xf32>
    %cst_72 = arith.constant dense<0.000000e+00> : vector<1xf32>
    %118 = vector.multi_reduction <add>, %117, %cst_72 [0] : vector<19x1xf32> to vector<1xf32>
    %119 = vector.shape_cast %118 : vector<1xf32> to vector<1x1xf32>
    %120 = arith.mulf %101, %101 : vector<19x256xf32>
    %cst_73 = arith.constant dense<0.000000e+00> : vector<19xf32>
    %121 = vector.multi_reduction <add>, %120, %cst_73 [1] : vector<19x256xf32> to vector<19xf32>
    %122 = vector.shape_cast %121 : vector<19xf32> to vector<19x1xf32>
    %cst_74 = arith.constant dense<0.000000e+00> : vector<1xf32>
    %123 = vector.multi_reduction <add>, %122, %cst_74 [0] : vector<19x1xf32> to vector<1xf32>
    %124 = vector.shape_cast %123 : vector<1xf32> to vector<1x1xf32>
    %125 = arith.mulf %105, %109 : vector<1x1xf32>
    %cst_75 = arith.constant 2.05592107E-4 : f32
    %126 = vector.broadcast %cst_75 : f32 to vector<1x1xf32>
    %127 = arith.mulf %125, %126 : vector<1x1xf32>
    %128 = arith.subf %114, %127 : vector<1x1xf32>
    %129 = arith.mulf %105, %105 : vector<1x1xf32>
    %cst_76 = arith.constant 2.05592107E-4 : f32
    %130 = vector.broadcast %cst_76 : f32 to vector<1x1xf32>
    %131 = arith.mulf %129, %130 : vector<1x1xf32>
    %132 = arith.subf %119, %131 : vector<1x1xf32>
    %133 = arith.mulf %109, %109 : vector<1x1xf32>
    %cst_77 = arith.constant 2.05592107E-4 : f32
    %134 = vector.broadcast %cst_77 : f32 to vector<1x1xf32>
    %135 = arith.mulf %133, %134 : vector<1x1xf32>
    %136 = arith.subf %124, %135 : vector<1x1xf32>
    %cst_78 = arith.constant 9.99999993E-9 : f32
    %137 = vector.broadcast %cst_78 : f32 to vector<1x1xf32>
    %138 = arith.addf %136, %137 : vector<1x1xf32>
    %139 = arith.mulf %128, %128 : vector<1x1xf32>
    %140 = arith.divf %139, %138 : vector<1x1xf32>
    %141 = arith.subf %132, %140 : vector<1x1xf32>
    %cst_79 = arith.constant 9.99999993E-9 : f32
    %142 = vector.broadcast %cst_79 : f32 to vector<1x1xf32>
    %143 = arith.addf %141, %142 : vector<1x1xf32>
    %144 = arith.divf %140, %143 : vector<1x1xf32>
    %cst_80 = arith.constant 9.99999993E-9 : f32
    %145 = vector.broadcast %cst_80 : f32 to vector<1x1xf32>
    %146 = arith.addf %144, %145 : vector<1x1xf32>
    %147 = math.log %146 : vector<1x1xf32>
    %cst_81 = arith.constant 0.434294492 : f32
    %148 = vector.broadcast %cst_81 : f32 to vector<1x1xf32>
    %149 = arith.mulf %147, %148 : vector<1x1xf32>
    %cst_82 = arith.constant -1.000000e+01 : f32
    %150 = vector.broadcast %cst_82 : f32 to vector<1x1xf32>
    %151 = arith.mulf %150, %149 : vector<1x1xf32>
    %152 = vector.shape_cast %151 : vector<1x1xf32> to vector<1x1xf32>
    %153 = vector.broadcast %152 : vector<1x1xf32> to vector<1x128xf32>
    %c0_83 = arith.constant 0 : index
    %c0_84 = arith.constant 0 : index
    %c0_85 = arith.constant 0 : index
    %154 = vector.load %arg19[%c0_83, %c0_84, %c0_85] : memref<1x1x128xf32, #tpu.memory_space<vmem>>, vector<1x1x128xf32>
    %155 = vector.shape_cast %154 : vector<1x1x128xf32> to vector<1x128xf32>
    %156 = vector.shape_cast %153 : vector<1x128xf32> to vector<1x1x128xf32>
    tpu.vector_store %arg19[%c0_83, %c0_84, %c0_85], %156 {strides = array<i32>} : memref<1x1x128xf32, #tpu.memory_space<vmem>>, vector<1x1x128xf32>,
    return
  }
  func.func @transform_0(%arg0: i32) -> (i32, i32, i32) {
    %c0_i32 = arith.constant 0 : i32
    %c0_i32_0 = arith.constant 0 : i32
    %c0_i32_1 = arith.constant 0 : i32
    return %arg0, %c0_i32, %c0_i32_0 : i32, i32, i32
  }
  func.func @transform_1(%arg0: i32) -> (i32, i32, i32) {
    %c0_i32 = arith.constant 0 : i32
    %c0_i32_0 = arith.constant 0 : i32
    %c0_i32_1 = arith.constant 0 : i32
    return %arg0, %c0_i32, %c0_i32_0 : i32, i32, i32
  }
  func.func @transform_2(%arg0: i32) -> (i32, i32, i32) {
    %c0_i32 = arith.constant 0 : i32
    %c0_i32_0 = arith.constant 0 : i32
    %c0_i32_1 = arith.constant 0 : i32
    return %arg0, %c0_i32, %c0_i32_0 : i32, i32, i32
  }
  func.func @transform_3(%arg0: i32) -> (i32, i32, i32) {
    %c0_i32 = arith.constant 0 : i32
    %c0_i32_0 = arith.constant 0 : i32
    %c0_i32_1 = arith.constant 0 : i32
    return %arg0, %c0_i32, %c0_i32_0 : i32, i32, i32
  }
  func.func @transform_4(%arg0: i32) -> (i32, i32) {
    %c0_i32 = arith.constant 0 : i32
    %c0_i32_0 = arith.constant 0 : i32
    %c0_i32_1 = arith.constant 0 : i32
    return %c0_i32, %c0_i32_0 : i32, i32
  }
  func.func @transform_5(%arg0: i32) -> (i32, i32) {
    %c0_i32 = arith.constant 0 : i32
    %c0_i32_0 = arith.constant 0 : i32
    %c0_i32_1 = arith.constant 0 : i32
    return %c0_i32, %c0_i32_0 : i32, i32
  }
  func.func @transform_6(%arg0: i32) -> (i32, i32) {
    %c0_i32 = arith.constant 0 : i32
    %c0_i32_0 = arith.constant 0 : i32
    %c0_i32_1 = arith.constant 0 : i32
    return %c0_i32, %c0_i32_0 : i32, i32
  }
  func.func @transform_7(%arg0: i32) -> (i32, i32) {
    %c0_i32 = arith.constant 0 : i32
    %c0_i32_0 = arith.constant 0 : i32
    %c0_i32_1 = arith.constant 0 : i32
    return %c0_i32, %c0_i32_0 : i32, i32
  }
  func.func @transform_8(%arg0: i32) -> (i32, i32) {
    %c0_i32 = arith.constant 0 : i32
    %c0_i32_0 = arith.constant 0 : i32
    %c0_i32_1 = arith.constant 0 : i32
    return %c0_i32, %c0_i32_0 : i32, i32
  }
  func.func @transform_9(%arg0: i32) -> (i32, i32) {
    %c0_i32 = arith.constant 0 : i32
    %c0_i32_0 = arith.constant 0 : i32
    %c0_i32_1 = arith.constant 0 : i32
    return %c0_i32, %c0_i32_0 : i32, i32
  }
  func.func @transform_10(%arg0: i32) -> (i32, i32) {
    %c0_i32 = arith.constant 0 : i32
    %c0_i32_0 = arith.constant 0 : i32
    %c0_i32_1 = arith.constant 0 : i32
    return %c0_i32, %c0_i32_0 : i32, i32
  }
  func.func @transform_11(%arg0: i32) -> (i32, i32) {
    %c0_i32 = arith.constant 0 : i32
    %c0_i32_0 = arith.constant 0 : i32
    %c0_i32_1 = arith.constant 0 : i32
    return %c0_i32, %c0_i32_0 : i32, i32
  }
  func.func @transform_12(%arg0: i32) -> (i32, i32) {
    %c0_i32 = arith.constant 0 : i32
    %c0_i32_0 = arith.constant 0 : i32
    %c0_i32_1 = arith.constant 0 : i32
    return %c0_i32, %c0_i32_0 : i32, i32
  }
  func.func @transform_13(%arg0: i32) -> (i32, i32) {
    %c0_i32 = arith.constant 0 : i32
    %c0_i32_0 = arith.constant 0 : i32
    %c0_i32_1 = arith.constant 0 : i32
    return %c0_i32, %c0_i32_0 : i32, i32
  }
  func.func @transform_14(%arg0: i32) -> (i32, i32) {
    %c0_i32 = arith.constant 0 : i32
    %c0_i32_0 = arith.constant 0 : i32
    %c0_i32_1 = arith.constant 0 : i32
    return %c0_i32, %c0_i32_0 : i32, i32
  }
  func.func @transform_15(%arg0: i32) -> (i32, i32) {
    %c0_i32 = arith.constant 0 : i32
    %c0_i32_0 = arith.constant 0 : i32
    %c0_i32_1 = arith.constant 0 : i32
    return %c0_i32, %c0_i32_0 : i32, i32
  }
  func.func @transform_16(%arg0: i32) -> (i32, i32) {
    %c0_i32 = arith.constant 0 : i32
    %c0_i32_0 = arith.constant 0 : i32
    %c0_i32_1 = arith.constant 0 : i32
    return %c0_i32, %c0_i32_0 : i32, i32
  }
  func.func @transform_17(%arg0: i32) -> (i32, i32, i32) {
    %c0_i32 = arith.constant 0 : i32
    %c0_i32_0 = arith.constant 0 : i32
    %c0_i32_1 = arith.constant 0 : i32
    return %arg0, %c0_i32, %c0_i32_0 : i32, i32, i32
  }
  func.func @transform_18(%arg0: i32) -> (i32, i32, i32) {
    %c0_i32 = arith.constant 0 : i32
    %c0_i32_0 = arith.constant 0 : i32
    %c0_i32_1 = arith.constant 0 : i32
    return %arg0, %c0_i32, %c0_i32_0 : i32, i32, i32
  }
}

</mosaic_0001>

<llo_original>
// kernel: tpu_custom_call.1
$region0: #{tpu_custom_call.1}
  #allocation0 [shape = 'u32[]', space=smem, size = 0x4, offset = 0x4, fixed_abs, tag = 'smem constant byte address 0x4 - core index']
  #allocation1 [shape = 'u32[144,128]{1,0:T(1,128)}', space=vmem, size = 0x12000, scoped, tag = 'internal scratch']
  %s0 = inlined_call_operand.vmem [shape: f32[2,19,256], index: 0, kind: input, shape index: {}]
  %s1 = inlined_call_operand.vmem [shape: f32[2,16,32], index: 1, kind: input, shape index: {}]
  %s2 = inlined_call_operand.vmem [shape: f32[2,24,64], index: 2, kind: input, shape index: {}]
  %s3 = inlined_call_operand.vmem [shape: f32[2,19,256], index: 3, kind: input, shape index: {}]
  %s4 = inlined_call_operand.hbm [shape: bf16[1024,512], index: 4, kind: input, shape index: {}]
  %s5 = inlined_call_operand.hbm [shape: bf16[512,1024], index: 5, kind: input, shape index: {}]
  %s6 = inlined_call_operand.vmem [shape: f32[64,64], index: 6, kind: input, shape index: {}]
  %s7 = inlined_call_operand.vmem [shape: f32[1,64], index: 7, kind: input, shape index: {}]
  %s8 = inlined_call_operand.vmem [shape: f32[32,8], index: 8, kind: input, shape index: {}]
  %s9 = inlined_call_operand.vmem [shape: f32[1,8], index: 9, kind: input, shape index: {}]
  %s10 = inlined_call_operand.vmem [shape: f32[256,64], index: 10, kind: input, shape index: {}]
  %s11 = inlined_call_operand.vmem [shape: f32[1,64], index: 11, kind: input, shape index: {}]
  %s12 = inlined_call_operand.vmem [shape: f32[32,64], index: 12, kind: input, shape index: {}]
  %s13 = inlined_call_operand.vmem [shape: f32[64,64], index: 13, kind: input, shape index: {}]
  %s14 = inlined_call_operand.vmem [shape: f32[1,64], index: 14, kind: input, shape index: {}]
  %s15 = inlined_call_operand.vmem [shape: f32[64,512], index: 15, kind: input, shape index: {}]
  %s16 = inlined_call_operand.vmem [shape: f32[1,512], index: 16, kind: input, shape index: {}]
  %s17 = inlined_call_operand.vmem [shape: f32[2,19,256], index: 17, kind: output, shape index: {0}]
  %s18 = inlined_call_operand.hbm [shape: f32[2,1,128], index: 18, kind: output, shape index: {1}]
  %19 = xla_tuple %s17, %s18
  %s20 = sld [smem:[#allocation0]]
  $region117: #{tpu_custom_call.1} parent=0
    _
  %s22 = ssub.s32 1, %s20
  %s23 = scalar_select 0, %s22, %s20
  $region1: #{tpu_custom_call.1} parent=0
    #allocation2 [shape = 'u8[1048576]{0}', space=vmem, size = 0x100000, scoped, tag = 'input window, operand 4, single buffered']
    #allocation3 [shape = 's32[2]{0}', space=sflag, size = 0x8, scoped, tag = 'scoped memory for tpu_custom_call.1']
    #allocation4 [shape = 's32[2]{0}', space=sflag, size = 0x8, scoped, tag = 'scoped memory for tpu_custom_call.1']
    #allocation5 [shape = 'u8[1048576]{0}', space=vmem, size = 0x100000, scoped, tag = 'input window, operand 5, single buffered']
    #allocation6 [shape = 's32[1]{0}', space=sflag, size = 0x4, scoped, tag = 'scoped memory for tpu_custom_call.1']
    #allocation7 [shape = 'u8[1024]{0}', space=vmem, size = 0x400, scoped, tag = 'output window, operand 1']
    %24 = vsyncpa [#allocation3], 0
    %25 = vsyncpa [#allocation6], 0
    %26 = vsyncpa [#allocation4], 0
    %s27 = scalar_lea.sflag [#allocation4], 1
    %28 = vsyncpa %s27, 0
    loop: start=0, step=1, limit=4
    $region2: #{tpu_custom_call.1} parent=1 // loop_pre_header
      _
    $region3: #{tpu_custom_call.1} parent=1 // loop_header
      %s30 = sphi 0, %s34
      %p31 = scmp.ge.s32.totalorder %s30, 4
      %s40 = sphi 0, %s42
      %s43 = sphi 0, %s40
      %s44 = sphi 0, %s43
      %s60 = sphi 0, %s44
      %s66 = sphi 0, %s68
      %s69 = sphi 0, %s66
      %s70 = sphi 0, %s69
      %s86 = sphi 0, %s70
      %s92 = sphi 0, %s94
      %s95 = sphi 0, %s92
      %s96 = sphi 0, %s95
      %s112 = sphi 0, %s96
      %s118 = sphi 0, %s120
      %s121 = sphi 0, %s118
      %s122 = sphi 0, %s121
      %s138 = sphi 0, %s122
      %s142 = sphi 0, %s142
      %s144 = sphi 0, %s142
      %s145 = sphi 0, %s144
      %s159 = sphi 0, %s145
      %s163 = sphi 0, %s163
      %s165 = sphi 0, %s163
      %s166 = sphi 0, %s165
      %s180 = sphi 0, %s166
      %s184 = sphi 0, %s184
      %s186 = sphi 0, %s184
      %s187 = sphi 0, %s186
      %s201 = sphi 0, %s187
      %s205 = sphi 0, %s205
      %s207 = sphi 0, %s205
      %s208 = sphi 0, %s207
      %s222 = sphi 0, %s208
      %s226 = sphi 0, %s226
      %s228 = sphi 0, %s226
      %s229 = sphi 0, %s228
      %s243 = sphi 0, %s229
      %s247 = sphi 0, %s247
      %s249 = sphi 0, %s247
      %s250 = sphi 0, %s249
      %s264 = sphi 0, %s250
      %s268 = sphi 0, %s268
      %s270 = sphi 0, %s268
      %s271 = sphi 0, %s270
      %s285 = sphi 0, %s271
      %s289 = sphi 0, %s289
      %s291 = sphi 0, %s289
      %s292 = sphi 0, %s291
      %s306 = sphi 0, %s292
      %s310 = sphi 0, %s310
      %s312 = sphi 0, %s310
      %s313 = sphi 0, %s312
      %s327 = sphi 0, %s313
      %s331 = sphi 0, %s331
      %s333 = sphi 0, %s331
      %s334 = sphi 0, %s333
      %s348 = sphi 0, %s334
      %s352 = sphi 0, %s352
      %s354 = sphi 0, %s352
      %s355 = sphi 0, %s354
      %s369 = sphi 0, %s355
      %s373 = sphi 0, %s373
      %s375 = sphi 0, %s373
      %s376 = sphi 0, %s375
      %s390 = sphi 0, %s376
      %s394 = sphi 0, %s394
      %s396 = sphi 0, %s394
      %s397 = sphi 0, %s396
      %s411 = sphi 0, %s397
      %s417 = sphi 0, %s419
      %s420 = sphi 0, %s417
      %s421 = sphi 0, %s420
      %s437 = sphi 0, %s421
      %s443 = sphi 0, %s445
      %s446 = sphi 0, %s443
      %s447 = sphi 0, %s446
      %s463 = sphi 0, %s447
    $region4: #{tpu_custom_call.1} parent=1 // loop_header_branch
      %33 = sbr.rel (%p31) target = $region8
    $region5: #{tpu_custom_call.1} parent=1 // loop_body
      %s35 = ssub.s32 %s30, 1
      %s36 = ssub.s32 %s30, 2
      %s37 = sadd.s32 %s30, 1
      %s38 = ssub.s32 %s30, %s37
      %p39 = scmp.eq.s32.totalorder %s38, 0
      %s41 = sadd.s32 %s40, 1
      %s42 = scalar_select %p39, %s40, %s41
      %p45 = pneg %p39
      %p46 = scmp.eq.s32.totalorder %s30, 1
      %p47 = por %p45, %p46
      %p48 = scmp.ne.s32.totalorder %s40, %s43
      %p49 = scmp.eq.s32.totalorder %s30, 0
      %p50 = por %p48, %p49
      %p51 = scmp.ne.s32.totalorder %s40, %s43
      %p52 = scmp.eq.s32.totalorder %s35, 1
      %p53 = por %p51, %p52
      %p54 = scmp.ne.s32.totalorder %s43, %s44
      %p55 = scmp.eq.s32.totalorder %s35, 0
      %p56 = por %p54, %p55
      %p57 = scmp.ne.s32.totalorder %s43, %s44
      %p58 = scmp.eq.s32.totalorder %s36, 1
      %p59 = por %p57, %p58
      %p61 = scmp.ne.s32.totalorder %s44, %s60
      %p62 = scmp.eq.s32.totalorder %s36, 0
      %p63 = por %p61, %p62
      %s64 = ssub.s32 %s30, %s37
      %p65 = scmp.eq.s32.totalorder %s64, 0
      %s67 = sadd.s32 %s66, 1
      %s68 = scalar_select %p65, %s66, %s67
      %p71 = pneg %p65
      %p72 = scmp.eq.s32.totalorder %s30, 1
      %p73 = por %p71, %p72
      %p74 = scmp.ne.s32.totalorder %s66, %s69
      %p75 = scmp.eq.s32.totalorder %s30, 0
      %p76 = por %p74, %p75
      %p77 = scmp.ne.s32.totalorder %s66, %s69
      %p78 = scmp.eq.s32.totalorder %s35, 1
      %p79 = por %p77, %p78
      %p80 = scmp.ne.s32.totalorder %s69, %s70
      %p81 = scmp.eq.s32.totalorder %s35, 0
      %p82 = por %p80, %p81
      %p83 = scmp.ne.s32.totalorder %s69, %s70
      %p84 = scmp.eq.s32.totalorder %s36, 1
      %p85 = por %p83, %p84
      %p87 = scmp.ne.s32.totalorder %s70, %s86
      %p88 = scmp.eq.s32.totalorder %s36, 0
      %p89 = por %p87, %p88
      %s90 = ssub.s32 %s30, %s37
      %p91 = scmp.eq.s32.totalorder %s90, 0
      %s93 = sadd.s32 %s92, 1
      %s94 = scalar_select %p91, %s92, %s93
      %p97 = pneg %p91
      %p98 = scmp.eq.s32.totalorder %s30, 1
      %p99 = por %p97, %p98
      %p100 = scmp.ne.s32.totalorder %s92, %s95
      %p101 = scmp.eq.s32.totalorder %s30, 0
      %p102 = por %p100, %p101
      %p103 = scmp.ne.s32.totalorder %s92, %s95
      %p104 = scmp.eq.s32.totalorder %s35, 1
      %p105 = por %p103, %p104
      %p106 = scmp.ne.s32.totalorder %s95, %s96
      %p107 = scmp.eq.s32.totalorder %s35, 0
      %p108 = por %p106, %p107
      %p109 = scmp.ne.s32.totalorder %s95, %s96
      %p110 = scmp.eq.s32.totalorder %s36, 1
      %p111 = por %p109, %p110
      %p113 = scmp.ne.s32.totalorder %s96, %s112
      %p114 = scmp.eq.s32.totalorder %s36, 0
      %p115 = por %p113, %p114
      %s116 = ssub.s32 %s30, %s37
      %p117 = scmp.eq.s32.totalorder %s116, 0
      %s119 = sadd.s32 %s118, 1
      %s120 = scalar_select %p117, %s118, %s119
      %p123 = pneg %p117
      %p124 = scmp.eq.s32.totalorder %s30, 1
      %p125 = por %p123, %p124
      %p126 = scmp.ne.s32.totalorder %s118, %s121
      %p127 = scmp.eq.s32.totalorder %s30, 0
      %p128 = por %p126, %p127
      %p129 = scmp.ne.s32.totalorder %s118, %s121
      %p130 = scmp.eq.s32.totalorder %s35, 1
      %p131 = por %p129, %p130
      %p132 = scmp.ne.s32.totalorder %s121, %s122
      %p133 = scmp.eq.s32.totalorder %s35, 0
      %p134 = por %p132, %p133
      %p135 = scmp.ne.s32.totalorder %s121, %s122
      %p136 = scmp.eq.s32.totalorder %s36, 1
      %p137 = por %p135, %p136
      %p139 = scmp.ne.s32.totalorder %s122, %s138
      %p140 = scmp.eq.s32.totalorder %s36, 0
      %p141 = por %p139, %p140
      %s143 = sadd.s32 %s142, 1
      %p146 = scmp.eq.s32.totalorder %s30, 1
      %p147 = scmp.ne.s32.totalorder %s142, %s144
      %p148 = scmp.eq.s32.totalorder %s30, 0
      %p149 = por %p147, %p148
      %p150 = scmp.ne.s32.totalorder %s142, %s144
      %p151 = scmp.eq.s32.totalorder %s35, 1
      %p152 = por %p150, %p151
      %p153 = scmp.ne.s32.totalorder %s144, %s145
      %p154 = scmp.eq.s32.totalorder %s35, 0
      %p155 = por %p153, %p154
      %p156 = scmp.ne.s32.totalorder %s144, %s145
      %p157 = scmp.eq.s32.totalorder %s36, 1
      %p158 = por %p156, %p157
      %p160 = scmp.ne.s32.totalorder %s145, %s159
      %p161 = scmp.eq.s32.totalorder %s36, 0
      %p162 = por %p160, %p161
      %s164 = sadd.s32 %s163, 1
      %p167 = scmp.eq.s32.totalorder %s30, 1
      %p168 = scmp.ne.s32.totalorder %s163, %s165
      %p169 = scmp.eq.s32.totalorder %s30, 0
      %p170 = por %p168, %p169
      %p171 = scmp.ne.s32.totalorder %s163, %s165
      %p172 = scmp.eq.s32.totalorder %s35, 1
      %p173 = por %p171, %p172
      %p174 = scmp.ne.s32.totalorder %s165, %s166
      %p175 = scmp.eq.s32.totalorder %s35, 0
      %p176 = por %p174, %p175
      %p177 = scmp.ne.s32.totalorder %s165, %s166
      %p178 = scmp.eq.s32.totalorder %s36, 1
      %p179 = por %p177, %p178
      %p181 = scmp.ne.s32.totalorder %s166, %s180
      %p182 = scmp.eq.s32.totalorder %s36, 0
      %p183 = por %p181, %p182
      %s185 = sadd.s32 %s184, 1
      %p188 = scmp.eq.s32.totalorder %s30, 1
      %p189 = scmp.ne.s32.totalorder %s184, %s186
      %p190 = scmp.eq.s32.totalorder %s30, 0
      %p191 = por %p189, %p190
      %p192 = scmp.ne.s32.totalorder %s184, %s186
      %p193 = scmp.eq.s32.totalorder %s35, 1
      %p194 = por %p192, %p193
      %p195 = scmp.ne.s32.totalorder %s186, %s187
      %p196 = scmp.eq.s32.totalorder %s35, 0
      %p197 = por %p195, %p196
      %p198 = scmp.ne.s32.totalorder %s186, %s187
      %p199 = scmp.eq.s32.totalorder %s36, 1
      %p200 = por %p198, %p199
      %p202 = scmp.ne.s32.totalorder %s187, %s201
      %p203 = scmp.eq.s32.totalorder %s36, 0
      %p204 = por %p202, %p203
      %s206 = sadd.s32 %s205, 1
      %p209 = scmp.eq.s32.totalorder %s30, 1
      %p210 = scmp.ne.s32.totalorder %s205, %s207
      %p211 = scmp.eq.s32.totalorder %s30, 0
      %p212 = por %p210, %p211
      %p213 = scmp.ne.s32.totalorder %s205, %s207
      %p214 = scmp.eq.s32.totalorder %s35, 1
      %p215 = por %p213, %p214
      %p216 = scmp.ne.s32.totalorder %s207, %s208
      %p217 = scmp.eq.s32.totalorder %s35, 0
      %p218 = por %p216, %p217
      %p219 = scmp.ne.s32.totalorder %s207, %s208
      %p220 = scmp.eq.s32.totalorder %s36, 1
      %p221 = por %p219, %p220
      %p223 = scmp.ne.s32.totalorder %s208, %s222
      %p224 = scmp.eq.s32.totalorder %s36, 0
      %p225 = por %p223, %p224
      %s227 = sadd.s32 %s226, 1
      %p230 = scmp.eq.s32.totalorder %s30, 1
      %p231 = scmp.ne.s32.totalorder %s226, %s228
      %p232 = scmp.eq.s32.totalorder %s30, 0
      %p233 = por %p231, %p232
      %p234 = scmp.ne.s32.totalorder %s226, %s228
      %p235 = scmp.eq.s32.totalorder %s35, 1
      %p236 = por %p234, %p235
      %p237 = scmp.ne.s32.totalorder %s228, %s229
      %p238 = scmp.eq.s32.totalorder %s35, 0
      %p239 = por %p237, %p238
      %p240 = scmp.ne.s32.totalorder %s228, %s229
      %p241 = scmp.eq.s32.totalorder %s36, 1
      %p242 = por %p240, %p241
      %p244 = scmp.ne.s32.totalorder %s229, %s243
      %p245 = scmp.eq.s32.totalorder %s36, 0
      %p246 = por %p244, %p245
      %s248 = sadd.s32 %s247, 1
      %p251 = scmp.eq.s32.totalorder %s30, 1
      %p252 = scmp.ne.s32.totalorder %s247, %s249
      %p253 = scmp.eq.s32.totalorder %s30, 0
      %p254 = por %p252, %p253
      %p255 = scmp.ne.s32.totalorder %s247, %s249
      %p256 = scmp.eq.s32.totalorder %s35, 1
      %p257 = por %p255, %p256
      %p258 = scmp.ne.s32.totalorder %s249, %s250
      %p259 = scmp.eq.s32.totalorder %s35, 0
      %p260 = por %p258, %p259
      %p261 = scmp.ne.s32.totalorder %s249, %s250
      %p262 = scmp.eq.s32.totalorder %s36, 1
      %p263 = por %p261, %p262
      %p265 = scmp.ne.s32.totalorder %s250, %s264
      %p266 = scmp.eq.s32.totalorder %s36, 0
      %p267 = por %p265, %p266
      %s269 = sadd.s32 %s268, 1
      %p272 = scmp.eq.s32.totalorder %s30, 1
      %p273 = scmp.ne.s32.totalorder %s268, %s270
      %p274 = scmp.eq.s32.totalorder %s30, 0
      %p275 = por %p273, %p274
      %p276 = scmp.ne.s32.totalorder %s268, %s270
      %p277 = scmp.eq.s32.totalorder %s35, 1
      %p278 = por %p276, %p277
      %p279 = scmp.ne.s32.totalorder %s270, %s271
      %p280 = scmp.eq.s32.totalorder %s35, 0
      %p281 = por %p279, %p280
      %p282 = scmp.ne.s32.totalorder %s270, %s271
      %p283 = scmp.eq.s32.totalorder %s36, 1
      %p284 = por %p282, %p283
      %p286 = scmp.ne.s32.totalorder %s271, %s285
      %p287 = scmp.eq.s32.totalorder %s36, 0
      %p288 = por %p286, %p287
      %s290 = sadd.s32 %s289, 1
      %p293 = scmp.eq.s32.totalorder %s30, 1
      %p294 = scmp.ne.s32.totalorder %s289, %s291
      %p295 = scmp.eq.s32.totalorder %s30, 0
      %p296 = por %p294, %p295
      %p297 = scmp.ne.s32.totalorder %s289, %s291
      %p298 = scmp.eq.s32.totalorder %s35, 1
      %p299 = por %p297, %p298
      %p300 = scmp.ne.s32.totalorder %s291, %s292
      %p301 = scmp.eq.s32.totalorder %s35, 0
      %p302 = por %p300, %p301
      %p303 = scmp.ne.s32.totalorder %s291, %s292
      %p304 = scmp.eq.s32.totalorder %s36, 1
      %p305 = por %p303, %p304
      %p307 = scmp.ne.s32.totalorder %s292, %s306
      %p308 = scmp.eq.s32.totalorder %s36, 0
      %p309 = por %p307, %p308
      %s311 = sadd.s32 %s310, 1
      %p314 = scmp.eq.s32.totalorder %s30, 1
      %p315 = scmp.ne.s32.totalorder %s310, %s312
      %p316 = scmp.eq.s32.totalorder %s30, 0
      %p317 = por %p315, %p316
      %p318 = scmp.ne.s32.totalorder %s310, %s312
      %p319 = scmp.eq.s32.totalorder %s35, 1
      %p320 = por %p318, %p319
      %p321 = scmp.ne.s32.totalorder %s312, %s313
      %p322 = scmp.eq.s32.totalorder %s35, 0
      %p323 = por %p321, %p322
      %p324 = scmp.ne.s32.totalorder %s312, %s313
      %p325 = scmp.eq.s32.totalorder %s36, 1
      %p326 = por %p324, %p325
      %p328 = scmp.ne.s32.totalorder %s313, %s327
      %p329 = scmp.eq.s32.totalorder %s36, 0
      %p330 = por %p328, %p329
      %s332 = sadd.s32 %s331, 1
      %p335 = scmp.eq.s32.totalorder %s30, 1
      %p336 = scmp.ne.s32.totalorder %s331, %s333
      %p337 = scmp.eq.s32.totalorder %s30, 0
      %p338 = por %p336, %p337
      %p339 = scmp.ne.s32.totalorder %s331, %s333
      %p340 = scmp.eq.s32.totalorder %s35, 1
      %p341 = por %p339, %p340
      %p342 = scmp.ne.s32.totalorder %s333, %s334
      %p343 = scmp.eq.s32.totalorder %s35, 0
      %p344 = por %p342, %p343
      %p345 = scmp.ne.s32.totalorder %s333, %s334
      %p346 = scmp.eq.s32.totalorder %s36, 1
      %p347 = por %p345, %p346
      %p349 = scmp.ne.s32.totalorder %s334, %s348
      %p350 = scmp.eq.s32.totalorder %s36, 0
      %p351 = por %p349, %p350
      %s353 = sadd.s32 %s352, 1
      %p356 = scmp.eq.s32.totalorder %s30, 1
      %p357 = scmp.ne.s32.totalorder %s352, %s354
      %p358 = scmp.eq.s32.totalorder %s30, 0
      %p359 = por %p357, %p358
      %p360 = scmp.ne.s32.totalorder %s352, %s354
      %p361 = scmp.eq.s32.totalorder %s35, 1
      %p362 = por %p360, %p361
      %p363 = scmp.ne.s32.totalorder %s354, %s355
      %p364 = scmp.eq.s32.totalorder %s35, 0
      %p365 = por %p363, %p364
      %p366 = scmp.ne.s32.totalorder %s354, %s355
      %p367 = scmp.eq.s32.totalorder %s36, 1
      %p368 = por %p366, %p367
      %p370 = scmp.ne.s32.totalorder %s355, %s369
      %p371 = scmp.eq.s32.totalorder %s36, 0
      %p372 = por %p370, %p371
      %s374 = sadd.s32 %s373, 1
      %p377 = scmp.eq.s32.totalorder %s30, 1
      %p378 = scmp.ne.s32.totalorder %s373, %s375
      %p379 = scmp.eq.s32.totalorder %s30, 0
      %p380 = por %p378, %p379
      %p381 = scmp.ne.s32.totalorder %s373, %s375
      %p382 = scmp.eq.s32.totalorder %s35, 1
      %p383 = por %p381, %p382
      %p384 = scmp.ne.s32.totalorder %s375, %s376
      %p385 = scmp.eq.s32.totalorder %s35, 0
      %p386 = por %p384, %p385
      %p387 = scmp.ne.s32.totalorder %s375, %s376
      %p388 = scmp.eq.s32.totalorder %s36, 1
      %p389 = por %p387, %p388
      %p391 = scmp.ne.s32.totalorder %s376, %s390
      %p392 = scmp.eq.s32.totalorder %s36, 0
      %p393 = por %p391, %p392
      %s395 = sadd.s32 %s394, 1
      %p398 = scmp.eq.s32.totalorder %s30, 1
      %p399 = scmp.ne.s32.totalorder %s394, %s396
      %p400 = scmp.eq.s32.totalorder %s30, 0
      %p401 = por %p399, %p400
      %p402 = scmp.ne.s32.totalorder %s394, %s396
      %p403 = scmp.eq.s32.totalorder %s35, 1
      %p404 = por %p402, %p403
      %p405 = scmp.ne.s32.totalorder %s396, %s397
      %p406 = scmp.eq.s32.totalorder %s35, 0
      %p407 = por %p405, %p406
      %p408 = scmp.ne.s32.totalorder %s396, %s397
      %p409 = scmp.eq.s32.totalorder %s36, 1
      %p410 = por %p408, %p409
      %p412 = scmp.ne.s32.totalorder %s397, %s411
      %p413 = scmp.eq.s32.totalorder %s36, 0
      %p414 = por %p412, %p413
      %s415 = ssub.s32 %s30, %s37
      %p416 = scmp.eq.s32.totalorder %s415, 0
      %s418 = sadd.s32 %s417, 1
      %s419 = scalar_select %p416, %s417, %s418
      %p422 = pneg %p416
      %p423 = scmp.eq.s32.totalorder %s30, 1
      %p424 = por %p422, %p423
      %p425 = scmp.ne.s32.totalorder %s417, %s420
      %p426 = scmp.eq.s32.totalorder %s30, 0
      %p427 = por %p425, %p426
      %p428 = scmp.ne.s32.totalorder %s417, %s420
      %p429 = scmp.eq.s32.totalorder %s35, 1
      %p430 = por %p428, %p429
      %p431 = scmp.ne.s32.totalorder %s420, %s421
      %p432 = scmp.eq.s32.totalorder %s35, 0
      %p433 = por %p431, %p432
      %p434 = scmp.ne.s32.totalorder %s420, %s421
      %p435 = scmp.eq.s32.totalorder %s36, 1
      %p436 = por %p434, %p435
      %p438 = scmp.ne.s32.totalorder %s421, %s437
      %p439 = scmp.eq.s32.totalorder %s36, 0
      %p440 = por %p438, %p439
      %s441 = ssub.s32 %s30, %s37
      %p442 = scmp.eq.s32.totalorder %s441, 0
      %s444 = sadd.s32 %s443, 1
      %s445 = scalar_select %p442, %s443, %s444
      %p448 = pneg %p442
      %p449 = scmp.eq.s32.totalorder %s30, 1
      %p450 = por %p448, %p449
      %p451 = scmp.ne.s32.totalorder %s443, %s446
      %p452 = scmp.eq.s32.totalorder %s30, 0
      %p453 = por %p451, %p452
      %p454 = scmp.ne.s32.totalorder %s443, %s446
      %p455 = scmp.eq.s32.totalorder %s35, 1
      %p456 = por %p454, %p455
      %p457 = scmp.ne.s32.totalorder %s446, %s447
      %p458 = scmp.eq.s32.totalorder %s35, 0
      %p459 = por %p457, %p458
      %p460 = scmp.ne.s32.totalorder %s446, %s447
      %p461 = scmp.eq.s32.totalorder %s36, 1
      %p462 = por %p460, %p461
      %p464 = scmp.ne.s32.totalorder %s447, %s463
      %p465 = scmp.eq.s32.totalorder %s36, 0
      %p466 = por %p464, %p465
      %p467 = scmp.le.s32.totalorder 1, %s30
      %p468 = scmp.lt.s32.totalorder %s30, 3
      %p469 = pnand %p467, %p468
      %p470 = pneg %p469
      // Predicated region
      $region9: #{tpu_custom_call.1} parent=5 // pred_check
        _
      $region10: #{tpu_custom_call.1} parent=5 // pred_check_branch
        %472 = sbr.rel (%p469) target = $region12
      $region11: #{tpu_custom_call.1} parent=5 // pred_region
        %s473 = ssub.s32 %s30, 1
        // Predicated region
        $region13: #{tpu_custom_call.1} parent=11 // pred_check
          %p474 = pneg %p155
        $region14: #{tpu_custom_call.1} parent=11 // pred_check_branch
          %476 = sbr.rel (%p474) target = $region16
        $region15: #{tpu_custom_call.1} parent=11 // pred_region
          %s478 = ssub.s32 32768, 32768
          %479 = vsyncadd [#allocation3], %s478
          %s480 = sshll.u32 [#allocation2], 4
          %s481 = int_to_ptr.vmem [resolvable:$true] %s480
          %486 = dma.hbm_to_vmem [thread:$0]  %s4, 32768, %s481, [#allocation3], 256, 256, 16
        $region16: #{tpu_custom_call.1} parent=11 // pred_fallthru
          _
        // Predicated region
        $region17: #{tpu_custom_call.1} parent=11 // pred_check
          %p487 = pneg %p176
        $region18: #{tpu_custom_call.1} parent=11 // pred_check_branch
          %489 = sbr.rel (%p487) target = $region20
        $region19: #{tpu_custom_call.1} parent=11 // pred_region
          %s491 = ssub.s32 32768, 32768
          %492 = vsyncadd [#allocation6], %s491
          %s493 = sshll.u32 [#allocation5], 4
          %s494 = int_to_ptr.vmem [resolvable:$true] %s493
          %499 = dma.hbm_to_vmem [thread:$0]  %s5, 32768, %s494, [#allocation6], 512, 512, 32
        $region20: #{tpu_custom_call.1} parent=11 // pred_fallthru
          _
        // Predicated region
        $region21: #{tpu_custom_call.1} parent=11 // pred_check
          %p500 = pneg %p197
        $region22: #{tpu_custom_call.1} parent=11 // pred_check_branch
          %502 = sbr.rel (%p500) target = $region24
        $region23: #{tpu_custom_call.1} parent=11 // pred_region
          _
        $region24: #{tpu_custom_call.1} parent=11 // pred_fallthru
          _
        // Predicated region
        $region25: #{tpu_custom_call.1} parent=11 // pred_check
          %p503 = pneg %p218
        $region26: #{tpu_custom_call.1} parent=11 // pred_check_branch
          %505 = sbr.rel (%p503) target = $region28
        $region27: #{tpu_custom_call.1} parent=11 // pred_region
          _
        $region28: #{tpu_custom_call.1} parent=11 // pred_fallthru
          _
        // Predicated region
        $region29: #{tpu_custom_call.1} parent=11 // pred_check
          %p506 = pneg %p239
        $region30: #{tpu_custom_call.1} parent=11 // pred_check_branch
          %508 = sbr.rel (%p506) target = $region32
        $region31: #{tpu_custom_call.1} parent=11 // pred_region
          _
        $region32: #{tpu_custom_call.1} parent=11 // pred_fallthru
          _
        // Predicated region
        $region33: #{tpu_custom_call.1} parent=11 // pred_check
          %p509 = pneg %p260
        $region34: #{tpu_custom_call.1} parent=11 // pred_check_branch
          %511 = sbr.rel (%p509) target = $region36
        $region35: #{tpu_custom_call.1} parent=11 // pred_region
          _
        $region36: #{tpu_custom_call.1} parent=11 // pred_fallthru
          _
        // Predicated region
        $region37: #{tpu_custom_call.1} parent=11 // pred_check
          %p512 = pneg %p281
        $region38: #{tpu_custom_call.1} parent=11 // pred_check_branch
          %514 = sbr.rel (%p512) target = $region40
        $region39: #{tpu_custom_call.1} parent=11 // pred_region
          _
        $region40: #{tpu_custom_call.1} parent=11 // pred_fallthru
          _
        // Predicated region
        $region41: #{tpu_custom_call.1} parent=11 // pred_check
          %p515 = pneg %p302
        $region42: #{tpu_custom_call.1} parent=11 // pred_check_branch
          %517 = sbr.rel (%p515) target = $region44
        $region43: #{tpu_custom_call.1} parent=11 // pred_region
          _
        $region44: #{tpu_custom_call.1} parent=11 // pred_fallthru
          _
        // Predicated region
        $region45: #{tpu_custom_call.1} parent=11 // pred_check
          %p518 = pneg %p323
        $region46: #{tpu_custom_call.1} parent=11 // pred_check_branch
          %520 = sbr.rel (%p518) target = $region48
        $region47: #{tpu_custom_call.1} parent=11 // pred_region
          _
        $region48: #{tpu_custom_call.1} parent=11 // pred_fallthru
          _
        // Predicated region
        $region49: #{tpu_custom_call.1} parent=11 // pred_check
          %p521 = pneg %p344
        $region50: #{tpu_custom_call.1} parent=11 // pred_check_branch
          %523 = sbr.rel (%p521) target = $region52
        $region51: #{tpu_custom_call.1} parent=11 // pred_region
          _
        $region52: #{tpu_custom_call.1} parent=11 // pred_fallthru
          _
        // Predicated region
        $region53: #{tpu_custom_call.1} parent=11 // pred_check
          %p524 = pneg %p365
        $region54: #{tpu_custom_call.1} parent=11 // pred_check_branch
          %526 = sbr.rel (%p524) target = $region56
        $region55: #{tpu_custom_call.1} parent=11 // pred_region
          _
        $region56: #{tpu_custom_call.1} parent=11 // pred_fallthru
          _
        // Predicated region
        $region57: #{tpu_custom_call.1} parent=11 // pred_check
          %p527 = pneg %p386
        $region58: #{tpu_custom_call.1} parent=11 // pred_check_branch
          %529 = sbr.rel (%p527) target = $region60
        $region59: #{tpu_custom_call.1} parent=11 // pred_region
          _
        $region60: #{tpu_custom_call.1} parent=11 // pred_fallthru
          _
        // Predicated region
        $region61: #{tpu_custom_call.1} parent=11 // pred_check
          %p530 = pneg %p407
        $region62: #{tpu_custom_call.1} parent=11 // pred_check_branch
          %532 = sbr.rel (%p530) target = $region64
        $region63: #{tpu_custom_call.1} parent=11 // pred_region
          _
        $region64: #{tpu_custom_call.1} parent=11 // pred_fallthru
          _
      $region12: #{tpu_custom_call.1} parent=5 // pred_fallthru
        _
      %p533 = scmp.lt.s32.totalorder %s30, 2
      // Predicated region
      $region65: #{tpu_custom_call.1} parent=5 // pred_check
        %p534 = pneg %p533
      $region66: #{tpu_custom_call.1} parent=5 // pred_check_branch
        %536 = sbr.rel (%p534) target = $region68
      $region67: #{tpu_custom_call.1} parent=5 // pred_region
        // Predicated region
        $region69: #{tpu_custom_call.1} parent=67 // pred_check
          %p537 = pneg %p50
        $region70: #{tpu_custom_call.1} parent=67 // pred_check_branch
          %539 = sbr.rel (%p537) target = $region72
        $region71: #{tpu_custom_call.1} parent=67 // pred_region
          %p540 = scmp.lt.s32.totalorder %s30, 1
          %s541 = scalar_select %p540, %s30, 1
          %s542 = smul.addr %s541, 6
          %s543 = smul.addr %s542, 8
          %s544 = scalar_lea.vmem %s0, %s543
        $region72: #{tpu_custom_call.1} parent=67 // pred_fallthru
          _
        // Predicated region
        $region73: #{tpu_custom_call.1} parent=67 // pred_check
          %p545 = pneg %p76
        $region74: #{tpu_custom_call.1} parent=67 // pred_check_branch
          %547 = sbr.rel (%p545) target = $region76
        $region75: #{tpu_custom_call.1} parent=67 // pred_region
          %p548 = scmp.lt.s32.totalorder %s30, 1
          %s549 = scalar_select %p548, %s30, 1
          %s550 = smul.addr %s549, 2
          %s551 = smul.addr %s550, 8
          %s552 = scalar_lea.vmem %s1, %s551
        $region76: #{tpu_custom_call.1} parent=67 // pred_fallthru
          _
        // Predicated region
        $region77: #{tpu_custom_call.1} parent=67 // pred_check
          %p553 = pneg %p102
        $region78: #{tpu_custom_call.1} parent=67 // pred_check_branch
          %555 = sbr.rel (%p553) target = $region80
        $region79: #{tpu_custom_call.1} parent=67 // pred_region
          %p556 = scmp.lt.s32.totalorder %s30, 1
          %s557 = scalar_select %p556, %s30, 1
          %s558 = smul.addr %s557, 3
          %s559 = smul.addr %s558, 8
          %s560 = scalar_lea.vmem %s2, %s559
        $region80: #{tpu_custom_call.1} parent=67 // pred_fallthru
          _
        // Predicated region
        $region81: #{tpu_custom_call.1} parent=67 // pred_check
          %p561 = pneg %p128
        $region82: #{tpu_custom_call.1} parent=67 // pred_check_branch
          %563 = sbr.rel (%p561) target = $region84
        $region83: #{tpu_custom_call.1} parent=67 // pred_region
          %p564 = scmp.lt.s32.totalorder %s30, 1
          %s565 = scalar_select %p564, %s30, 1
          %s566 = smul.addr %s565, 6
          %s567 = smul.addr %s566, 8
          %s568 = scalar_lea.vmem %s3, %s567
        $region84: #{tpu_custom_call.1} parent=67 // pred_fallthru
          _
      $region68: #{tpu_custom_call.1} parent=5 // pred_fallthru
        _
      %p569 = scmp.le.s32.totalorder 1, %s30
      %p570 = scmp.lt.s32.totalorder %s30, 3
      %p571 = pnand %p569, %p570
      %p572 = pneg %p571
      // Predicated region
      $region85: #{tpu_custom_call.1} parent=5 // pred_check
        _
      $region86: #{tpu_custom_call.1} parent=5 // pred_check_branch
        %574 = sbr.rel (%p571) target = $region88
      $region87: #{tpu_custom_call.1} parent=5 // pred_region
        %s575 = ssub.s32 %s30, 1
        // Predicated region
        $region89: #{tpu_custom_call.1} parent=87 // pred_check
          %p576 = pneg %p155
        $region90: #{tpu_custom_call.1} parent=87 // pred_check_branch
          %578 = sbr.rel (%p576) target = $region92
        $region91: #{tpu_custom_call.1} parent=87 // pred_region
          %579 = dma.done [#allocation3], 32768
        $region92: #{tpu_custom_call.1} parent=87 // pred_fallthru
          _
        // Predicated region
        $region93: #{tpu_custom_call.1} parent=87 // pred_check
          %p580 = pneg %p176
        $region94: #{tpu_custom_call.1} parent=87 // pred_check_branch
          %582 = sbr.rel (%p580) target = $region96
        $region95: #{tpu_custom_call.1} parent=87 // pred_region
          %583 = dma.done [#allocation6], 32768
        $region96: #{tpu_custom_call.1} parent=87 // pred_fallthru
          _
        %p584 = scmp.lt.s32.totalorder %s35, 1
        %s585 = scalar_select %p584, %s35, 1
        %s586 = smul.addr %s585, 6
        %s587 = smul.addr %s586, 8
        %s588 = scalar_lea.vmem %s0, %s587
        %p589 = pneg %p56
        %p590 = pneg %p53
        %p591 = scmp.lt.s32.totalorder %s35, 1
        %s592 = scalar_select %p591, %s35, 1
        %s593 = smul.addr %s592, 2
        %s594 = smul.addr %s593, 8
        %s595 = scalar_lea.vmem %s1, %s594
        %p596 = pneg %p82
        %p597 = pneg %p79
        %p598 = scmp.lt.s32.totalorder %s35, 1
        %s599 = scalar_select %p598, %s35, 1
        %s600 = smul.addr %s599, 3
        %s601 = smul.addr %s600, 8
        %s602 = scalar_lea.vmem %s2, %s601
        %p603 = pneg %p108
        %p604 = pneg %p105
        %p605 = scmp.lt.s32.totalorder %s35, 1
        %s606 = scalar_select %p605, %s35, 1
        %s607 = smul.addr %s606, 6
        %s608 = smul.addr %s607, 8
        %s609 = scalar_lea.vmem %s3, %s608
        %p610 = pneg %p134
        %p611 = pneg %p131
        %p612 = pneg %p155
        %p613 = pneg %p152
        %p614 = pneg %p176
        %p615 = pneg %p173
        %p616 = pneg %p197
        %p617 = pneg %p194
        %p618 = pneg %p218
        %p619 = pneg %p215
        %p620 = pneg %p239
        %p621 = pneg %p236
        %p622 = pneg %p260
        %p623 = pneg %p257
        %p624 = pneg %p281
        %p625 = pneg %p278
        %p626 = pneg %p302
        %p627 = pneg %p299
        %p628 = pneg %p323
        %p629 = pneg %p320
        %p630 = pneg %p344
        %p631 = pneg %p341
        %p632 = pneg %p365
        %p633 = pneg %p362
        %p634 = pneg %p386
        %p635 = pneg %p383
        %p636 = pneg %p407
        %p637 = pneg %p404
        %p638 = pneg %p433
        %p639 = pneg %p430
        %p640 = scmp.lt.s32.totalorder %s35, 1
        %s641 = scalar_select %p640, %s35, 1
        %s642 = smul.addr %s641, 6
        %s643 = smul.addr %s642, 8
        %s644 = scalar_lea.vmem %s17, %s643
        %p645 = pneg %p459
        %p646 = pneg %p456
        %s647 = sand.u32 %s446, 1
        %s648 = scalar_lea.sflag [#allocation4], %s647
        %s649 = sand.u32 %s446, 1
        %s650 = scalar_lea.vmem [#allocation7], %s649
        %p651 = scmp.lt.s32.totalorder %s35, 1
        %s652 = scalar_select %p651, %s35, 1
        %s653 = smul.addr %s652, 6
        %s654 = smul.addr %s653, 8
        %s655 = scalar_lea.vmem %s0, %s654
        %p656 = scmp.lt.s32.totalorder %s35, 1
        %s657 = scalar_select %p656, %s35, 1
        %s658 = smul.addr %s657, 2
        %s659 = smul.addr %s658, 8
        %s660 = scalar_lea.vmem %s1, %s659
        %p661 = scmp.lt.s32.totalorder %s35, 1
        %s662 = scalar_select %p661, %s35, 1
        %s663 = smul.addr %s662, 3
        %s664 = smul.addr %s663, 8
        %s665 = scalar_lea.vmem %s2, %s664
        %p666 = scmp.lt.s32.totalorder %s35, 1
        %s667 = scalar_select %p666, %s35, 1
        %s668 = smul.addr %s667, 6
        %s669 = smul.addr %s668, 8
        %s670 = scalar_lea.vmem %s3, %s669
        %p671 = scmp.lt.s32.totalorder %s35, 1
        %s672 = scalar_select %p671, %s35, 1
        %s673 = smul.addr %s672, 6
        %s674 = smul.addr %s673, 8
        %s675 = scalar_lea.vmem %s17, %s674
        %v676 = vld [vmem:[%s655] sm:$0xff]
        %v677 = vld [vmem:[%s655 + $0x8] sm:$0xff]
        %v678 = vld [vmem:[%s655 + $0x10] sm:$0xff]
        %v679 = vld [vmem:[%s655 + $0x18] sm:$0xff]
        %v680 = vpack.c.bf16 %v678, %v676
        %v681 = vpack.c.bf16 %v679, %v677
        %v682 = vld [vmem:[%s655] sm:$0xfe]
        %v683 = vld [vmem:[%s655 + $0x8] sm:$0xfe]
        %v684 = vld [vmem:[%s655 + $0x20] sm:$0x1]
        %v685 = vld [vmem:[%s655 + $0x28] sm:$0x1]
        %v686 = vpack.c.bf16 %v678, %v682
        %v687 = vpack.c.bf16 %v679, %v683
        %v688 = vpack.c.bf16 %v684, %v684
        %v689 = vpack.c.bf16 %v685, %v685
        %v690 = vld [vmem:[%s655] sm:$0xfc]
        %v691 = vld [vmem:[%s655 + $0x8] sm:$0xfc]
        %v692 = vld [vmem:[%s655 + $0x20] sm:$0x3]
        %v693 = vld [vmem:[%s655 + $0x28] sm:$0x3]
        %v694 = vpack.c.bf16 %v678, %v690
        %v695 = vpack.c.bf16 %v679, %v691
        %v696 = vpack.c.bf16 %v692, %v692
        %v697 = vpack.c.bf16 %v693, %v693
        %v698 = vld [vmem:[%s655] sm:$0xf8]
        %v699 = vld [vmem:[%s655 + $0x8] sm:$0xf8]
        %v700 = vld [vmem:[%s655 + $0x20] sm:$0x7]
        %v701 = vld [vmem:[%s655 + $0x28] sm:$0x7]
        %v702 = vpack.c.bf16 %v678, %v698
        %v703 = vpack.c.bf16 %v679, %v699
        %v704 = vpack.c.bf16 %v700, %v700
        %v705 = vpack.c.bf16 %v701, %v701
        %vm706 = vsmask.f32 7424
        %v708 = vshrl.u32 %v686, 16
        %v710 = vshll.u32 %v686, 16
        %v712 = vrot.slane %v710, 1
        %v713 = vor.u32 %v708, %v712
        %v715 = vshll.u32 %v688, 16
        %v717 = vrot.slane %v715, 1
        %v718 = vsel %vm706, %v713, %v717
        %v720 = vshrl.u32 %v687, 16
        %v722 = vshll.u32 %v687, 16
        %v724 = vrot.slane %v722, 1
        %v725 = vor.u32 %v720, %v724
        %v727 = vshll.u32 %v689, 16
        %v729 = vrot.slane %v727, 1
        %v730 = vsel %vm706, %v725, %v729
        %vm737 = vcmask 1046528
        %v738 = vrot.slane %v694, 1
        %v739 = vrot.slane %v696, 1
        %v740 = vsel %vm737, %v738, %v739
        %v741 = vrot.slane %v695, 1
        %v742 = vrot.slane %v697, 1
        %v743 = vsel %vm737, %v741, %v742
        %vm746 = vsmask.f32 6400
        %v748 = vshrl.u32 %v702, 16
        %v750 = vrot.slane %v748, 1
        %v751 = vshll.u32 %v702, 16
        %v753 = vrot.slane %v751, 2
        %v754 = vor.u32 %v750, %v753
        %v756 = vshrl.u32 %v704, 16
        %v758 = vrot.slane %v756, 1
        %v759 = vshll.u32 %v704, 16
        %v761 = vrot.slane %v759, 2
        %v762 = vor.u32 %v758, %v761
        %v763 = vsel %vm746, %v754, %v762
        %v765 = vshrl.u32 %v703, 16
        %v767 = vrot.slane %v765, 1
        %v768 = vshll.u32 %v703, 16
        %v770 = vrot.slane %v768, 2
        %v771 = vor.u32 %v767, %v770
        %v773 = vshrl.u32 %v705, 16
        %v775 = vrot.slane %v773, 1
        %v776 = vshll.u32 %v705, 16
        %v778 = vrot.slane %v776, 2
        %v779 = vor.u32 %v775, %v778
        %v780 = vsel %vm746, %v771, %v779
        %v783 = vld [vmem:[#allocation2] sm:$0xff]
        %v784 = vld [vmem:[#allocation2 + $0x8] sm:$0xff]
        %v785 = vld [vmem:[#allocation2 + $0x10] sm:$0xff]
        %v786 = vld [vmem:[#allocation2 + $0x18] sm:$0xff]
        %v787 = vld [vmem:[#allocation2 + $0x20] sm:$0xff]
        %v788 = vld [vmem:[#allocation2 + $0x28] sm:$0xff]
        %v789 = vld [vmem:[#allocation2 + $0x30] sm:$0xff]
        %v790 = vld [vmem:[#allocation2 + $0x38] sm:$0xff]
        %v791 = vld [vmem:[#allocation2 + $0x40] sm:$0xff]
        %v792 = vld [vmem:[#allocation2 + $0x48] sm:$0xff]
        %v793 = vld [vmem:[#allocation2 + $0x50] sm:$0xff]
        %v794 = vld [vmem:[#allocation2 + $0x58] sm:$0xff]
        %v795 = vld [vmem:[#allocation2 + $0x60] sm:$0xff]
        %v796 = vld [vmem:[#allocation2 + $0x68] sm:$0xff]
        %v797 = vld [vmem:[#allocation2 + $0x70] sm:$0xff]
        %v798 = vld [vmem:[#allocation2 + $0x78] sm:$0xff]
        %v799 = vld [vmem:[#allocation2 + $0x80] sm:$0xff]
        %v800 = vld [vmem:[#allocation2 + $0x88] sm:$0xff]
        %v801 = vld [vmem:[#allocation2 + $0x90] sm:$0xff]
        %v802 = vld [vmem:[#allocation2 + $0x98] sm:$0xff]
        %v803 = vld [vmem:[#allocation2 + $0xa0] sm:$0xff]
        %v804 = vld [vmem:[#allocation2 + $0xa8] sm:$0xff]
        %v805 = vld [vmem:[#allocation2 + $0xb0] sm:$0xff]
        %v806 = vld [vmem:[#allocation2 + $0xb8] sm:$0xff]
        %v807 = vld [vmem:[#allocation2 + $0xc0] sm:$0xff]
        %v808 = vld [vmem:[#allocation2 + $0xc8] sm:$0xff]
        %v809 = vld [vmem:[#allocation2 + $0xd0] sm:$0xff]
        %v810 = vld [vmem:[#allocation2 + $0xd8] sm:$0xff]
        %v811 = vld [vmem:[#allocation2 + $0xe0] sm:$0xff]
        %v812 = vld [vmem:[#allocation2 + $0xe8] sm:$0xff]
        %v813 = vld [vmem:[#allocation2 + $0xf0] sm:$0xff]
        %v814 = vld [vmem:[#allocation2 + $0xf8] sm:$0xff]
        %v815 = vld [vmem:[#allocation2 + $0x100] sm:$0xff]
        %v816 = vld [vmem:[#allocation2 + $0x108] sm:$0xff]
        %v817 = vld [vmem:[#allocation2 + $0x110] sm:$0xff]
        %v818 = vld [vmem:[#allocation2 + $0x118] sm:$0xff]
        %v819 = vld [vmem:[#allocation2 + $0x120] sm:$0xff]
        %v820 = vld [vmem:[#allocation2 + $0x128] sm:$0xff]
        %v821 = vld [vmem:[#allocation2 + $0x130] sm:$0xff]
        %v822 = vld [vmem:[#allocation2 + $0x138] sm:$0xff]
        %v823 = vld [vmem:[#allocation2 + $0x140] sm:$0xff]
        %v824 = vld [vmem:[#allocation2 + $0x148] sm:$0xff]
        %v825 = vld [vmem:[#allocation2 + $0x150] sm:$0xff]
        %v826 = vld [vmem:[#allocation2 + $0x158] sm:$0xff]
        %v827 = vld [vmem:[#allocation2 + $0x160] sm:$0xff]
        %v828 = vld [vmem:[#allocation2 + $0x168] sm:$0xff]
        %v829 = vld [vmem:[#allocation2 + $0x170] sm:$0xff]
        %v830 = vld [vmem:[#allocation2 + $0x178] sm:$0xff]
        %v831 = vld [vmem:[#allocation2 + $0x180] sm:$0xff]
        %v832 = vld [vmem:[#allocation2 + $0x188] sm:$0xff]
        %v833 = vld [vmem:[#allocation2 + $0x190] sm:$0xff]
        %v834 = vld [vmem:[#allocation2 + $0x198] sm:$0xff]
        %v835 = vld [vmem:[#allocation2 + $0x1a0] sm:$0xff]
        %v836 = vld [vmem:[#allocation2 + $0x1a8] sm:$0xff]
        %v837 = vld [vmem:[#allocation2 + $0x1b0] sm:$0xff]
        %v838 = vld [vmem:[#allocation2 + $0x1b8] sm:$0xff]
        %v839 = vld [vmem:[#allocation2 + $0x1c0] sm:$0xff]
        %v840 = vld [vmem:[#allocation2 + $0x1c8] sm:$0xff]
        %v841 = vld [vmem:[#allocation2 + $0x1d0] sm:$0xff]
        %v842 = vld [vmem:[#allocation2 + $0x1d8] sm:$0xff]
        %v843 = vld [vmem:[#allocation2 + $0x1e0] sm:$0xff]
        %v844 = vld [vmem:[#allocation2 + $0x1e8] sm:$0xff]
        %v845 = vld [vmem:[#allocation2 + $0x1f0] sm:$0xff]
        %v846 = vld [vmem:[#allocation2 + $0x1f8] sm:$0xff]
        %v847 = vld [vmem:[#allocation2 + $0x200] sm:$0xff]
        %v848 = vld [vmem:[#allocation2 + $0x208] sm:$0xff]
        %v849 = vld [vmem:[#allocation2 + $0x210] sm:$0xff]
        %v850 = vld [vmem:[#allocation2 + $0x218] sm:$0xff]
        %v851 = vld [vmem:[#allocation2 + $0x220] sm:$0xff]
        %v852 = vld [vmem:[#allocation2 + $0x228] sm:$0xff]
        %v853 = vld [vmem:[#allocation2 + $0x230] sm:$0xff]
        %v854 = vld [vmem:[#allocation2 + $0x238] sm:$0xff]
        %v855 = vld [vmem:[#allocation2 + $0x240] sm:$0xff]
        %v856 = vld [vmem:[#allocation2 + $0x248] sm:$0xff]
        %v857 = vld [vmem:[#allocation2 + $0x250] sm:$0xff]
        %v858 = vld [vmem:[#allocation2 + $0x258] sm:$0xff]
        %v859 = vld [vmem:[#allocation2 + $0x260] sm:$0xff]
        %v860 = vld [vmem:[#allocation2 + $0x268] sm:$0xff]
        %v861 = vld [vmem:[#allocation2 + $0x270] sm:$0xff]
        %v862 = vld [vmem:[#allocation2 + $0x278] sm:$0xff]
        %v863 = vld [vmem:[#allocation2 + $0x280] sm:$0xff]
        %v864 = vld [vmem:[#allocation2 + $0x288] sm:$0xff]
        %v865 = vld [vmem:[#allocation2 + $0x290] sm:$0xff]
        %v866 = vld [vmem:[#allocation2 + $0x298] sm:$0xff]
        %v867 = vld [vmem:[#allocation2 + $0x2a0] sm:$0xff]
        %v868 = vld [vmem:[#allocation2 + $0x2a8] sm:$0xff]
        %v869 = vld [vmem:[#allocation2 + $0x2b0] sm:$0xff]
        %v870 = vld [vmem:[#allocation2 + $0x2b8] sm:$0xff]
        %v871 = vld [vmem:[#allocation2 + $0x2c0] sm:$0xff]
        %v872 = vld [vmem:[#allocation2 + $0x2c8] sm:$0xff]
        %v873 = vld [vmem:[#allocation2 + $0x2d0] sm:$0xff]
        %v874 = vld [vmem:[#allocation2 + $0x2d8] sm:$0xff]
        %v875 = vld [vmem:[#allocation2 + $0x2e0] sm:$0xff]
        %v876 = vld [vmem:[#allocation2 + $0x2e8] sm:$0xff]
        %v877 = vld [vmem:[#allocation2 + $0x2f0] sm:$0xff]
        %v878 = vld [vmem:[#allocation2 + $0x2f8] sm:$0xff]
        %v879 = vld [vmem:[#allocation2 + $0x300] sm:$0xff]
        %v880 = vld [vmem:[#allocation2 + $0x308] sm:$0xff]
        %v881 = vld [vmem:[#allocation2 + $0x310] sm:$0xff]
        %v882 = vld [vmem:[#allocation2 + $0x318] sm:$0xff]
        %v883 = vld [vmem:[#allocation2 + $0x320] sm:$0xff]
        %v884 = vld [vmem:[#allocation2 + $0x328] sm:$0xff]
        %v885 = vld [vmem:[#allocation2 + $0x330] sm:$0xff]
        %v886 = vld [vmem:[#allocation2 + $0x338] sm:$0xff]
        %v887 = vld [vmem:[#allocation2 + $0x340] sm:$0xff]
        %v888 = vld [vmem:[#allocation2 + $0x348] sm:$0xff]
        %v889 = vld [vmem:[#allocation2 + $0x350] sm:$0xff]
        %v890 = vld [vmem:[#allocation2 + $0x358] sm:$0xff]
        %v891 = vld [vmem:[#allocation2 + $0x360] sm:$0xff]
        %v892 = vld [vmem:[#allocation2 + $0x368] sm:$0xff]
        %v893 = vld [vmem:[#allocation2 + $0x370] sm:$0xff]
        %v894 = vld [vmem:[#allocation2 + $0x378] sm:$0xff]
        %v895 = vld [vmem:[#allocation2 + $0x380] sm:$0xff]
        %v896 = vld [vmem:[#allocation2 + $0x388] sm:$0xff]
        %v897 = vld [vmem:[#allocation2 + $0x390] sm:$0xff]
        %v898 = vld [vmem:[#allocation2 + $0x398] sm:$0xff]
        %v899 = vld [vmem:[#allocation2 + $0x3a0] sm:$0xff]
        %v900 = vld [vmem:[#allocation2 + $0x3a8] sm:$0xff]
        %v901 = vld [vmem:[#allocation2 + $0x3b0] sm:$0xff]
        %v902 = vld [vmem:[#allocation2 + $0x3b8] sm:$0xff]
        %v903 = vld [vmem:[#allocation2 + $0x3c0] sm:$0xff]
        %v904 = vld [vmem:[#allocation2 + $0x3c8] sm:$0xff]
        %v905 = vld [vmem:[#allocation2 + $0x3d0] sm:$0xff]
        %v906 = vld [vmem:[#allocation2 + $0x3d8] sm:$0xff]
        %v907 = vld [vmem:[#allocation2 + $0x3e0] sm:$0xff]
        %v908 = vld [vmem:[#allocation2 + $0x3e8] sm:$0xff]
        %v909 = vld [vmem:[#allocation2 + $0x3f0] sm:$0xff]
        %v910 = vld [vmem:[#allocation2 + $0x3f8] sm:$0xff]
        %v911 = vld [vmem:[#allocation2 + $0x400] sm:$0xff]
        %v912 = vld [vmem:[#allocation2 + $0x408] sm:$0xff]
        %v913 = vld [vmem:[#allocation2 + $0x410] sm:$0xff]
        %v914 = vld [vmem:[#allocation2 + $0x418] sm:$0xff]
        %v915 = vld [vmem:[#allocation2 + $0x420] sm:$0xff]
        %v916 = vld [vmem:[#allocation2 + $0x428] sm:$0xff]
        %v917 = vld [vmem:[#allocation2 + $0x430] sm:$0xff]
        %v918 = vld [vmem:[#allocation2 + $0x438] sm:$0xff]
        %v919 = vld [vmem:[#allocation2 + $0x440] sm:$0xff]
        %v920 = vld [vmem:[#allocation2 + $0x448] sm:$0xff]
        %v921 = vld [vmem:[#allocation2 + $0x450] sm:$0xff]
        %v922 = vld [vmem:[#allocation2 + $0x458] sm:$0xff]
        %v923 = vld [vmem:[#allocation2 + $0x460] sm:$0xff]
        %v924 = vld [vmem:[#allocation2 + $0x468] sm:$0xff]
        %v925 = vld [vmem:[#allocation2 + $0x470] sm:$0xff]
        %v926 = vld [vmem:[#allocation2 + $0x478] sm:$0xff]
        %v927 = vld [vmem:[#allocation2 + $0x480] sm:$0xff]
        %v928 = vld [vmem:[#allocation2 + $0x488] sm:$0xff]
        %v929 = vld [vmem:[#allocation2 + $0x490] sm:$0xff]
        %v930 = vld [vmem:[#allocation2 + $0x498] sm:$0xff]
        %v931 = vld [vmem:[#allocation2 + $0x4a0] sm:$0xff]
        %v932 = vld [vmem:[#allocation2 + $0x4a8] sm:$0xff]
        %v933 = vld [vmem:[#allocation2 + $0x4b0] sm:$0xff]
        %v934 = vld [vmem:[#allocation2 + $0x4b8] sm:$0xff]
        %v935 = vld [vmem:[#allocation2 + $0x4c0] sm:$0xff]
        %v936 = vld [vmem:[#allocation2 + $0x4c8] sm:$0xff]
        %v937 = vld [vmem:[#allocation2 + $0x4d0] sm:$0xff]
        %v938 = vld [vmem:[#allocation2 + $0x4d8] sm:$0xff]
        %v939 = vld [vmem:[#allocation2 + $0x4e0] sm:$0xff]
        %v940 = vld [vmem:[#allocation2 + $0x4e8] sm:$0xff]
        %v941 = vld [vmem:[#allocation2 + $0x4f0] sm:$0xff]
        %v942 = vld [vmem:[#allocation2 + $0x4f8] sm:$0xff]
        %v943 = vld [vmem:[#allocation2 + $0x500] sm:$0xff]
        %v944 = vld [vmem:[#allocation2 + $0x508] sm:$0xff]
        %v945 = vld [vmem:[#allocation2 + $0x510] sm:$0xff]
        %v946 = vld [vmem:[#allocation2 + $0x518] sm:$0xff]
        %v947 = vld [vmem:[#allocation2 + $0x520] sm:$0xff]
        %v948 = vld [vmem:[#allocation2 + $0x528] sm:$0xff]
        %v949 = vld [vmem:[#allocation2 + $0x530] sm:$0xff]
        %v950 = vld [vmem:[#allocation2 + $0x538] sm:$0xff]
        %v951 = vld [vmem:[#allocation2 + $0x540] sm:$0xff]
        %v952 = vld [vmem:[#allocation2 + $0x548] sm:$0xff]
        %v953 = vld [vmem:[#allocation2 + $0x550] sm:$0xff]
        %v954 = vld [vmem:[#allocation2 + $0x558] sm:$0xff]
        %v955 = vld [vmem:[#allocation2 + $0x560] sm:$0xff]
        %v956 = vld [vmem:[#allocation2 + $0x568] sm:$0xff]
        %v957 = vld [vmem:[#allocation2 + $0x570] sm:$0xff]
        %v958 = vld [vmem:[#allocation2 + $0x578] sm:$0xff]
        %v959 = vld [vmem:[#allocation2 + $0x580] sm:$0xff]
        %v960 = vld [vmem:[#allocation2 + $0x588] sm:$0xff]
        %v961 = vld [vmem:[#allocation2 + $0x590] sm:$0xff]
        %v962 = vld [vmem:[#allocation2 + $0x598] sm:$0xff]
        %v963 = vld [vmem:[#allocation2 + $0x5a0] sm:$0xff]
        %v964 = vld [vmem:[#allocation2 + $0x5a8] sm:$0xff]
        %v965 = vld [vmem:[#allocation2 + $0x5b0] sm:$0xff]
        %v966 = vld [vmem:[#allocation2 + $0x5b8] sm:$0xff]
        %v967 = vld [vmem:[#allocation2 + $0x5c0] sm:$0xff]
        %v968 = vld [vmem:[#allocation2 + $0x5c8] sm:$0xff]
        %v969 = vld [vmem:[#allocation2 + $0x5d0] sm:$0xff]
        %v970 = vld [vmem:[#allocation2 + $0x5d8] sm:$0xff]
        %v971 = vld [vmem:[#allocation2 + $0x5e0] sm:$0xff]
        %v972 = vld [vmem:[#allocation2 + $0x5e8] sm:$0xff]
        %v973 = vld [vmem:[#allocation2 + $0x5f0] sm:$0xff]
        %v974 = vld [vmem:[#allocation2 + $0x5f8] sm:$0xff]
        %v975 = vld [vmem:[#allocation2 + $0x600] sm:$0xff]
        %v976 = vld [vmem:[#allocation2 + $0x608] sm:$0xff]
        %v977 = vld [vmem:[#allocation2 + $0x610] sm:$0xff]
        %v978 = vld [vmem:[#allocation2 + $0x618] sm:$0xff]
        %v979 = vld [vmem:[#allocation2 + $0x620] sm:$0xff]
        %v980 = vld [vmem:[#allocation2 + $0x628] sm:$0xff]
        %v981 = vld [vmem:[#allocation2 + $0x630] sm:$0xff]
        %v982 = vld [vmem:[#allocation2 + $0x638] sm:$0xff]
        %v983 = vld [vmem:[#allocation2 + $0x640] sm:$0xff]
        %v984 = vld [vmem:[#allocation2 + $0x648] sm:$0xff]
        %v985 = vld [vmem:[#allocation2 + $0x650] sm:$0xff]
        %v986 = vld [vmem:[#allocation2 + $0x658] sm:$0xff]
        %v987 = vld [vmem:[#allocation2 + $0x660] sm:$0xff]
        %v988 = vld [vmem:[#allocation2 + $0x668] sm:$0xff]
        %v989 = vld [vmem:[#allocation2 + $0x670] sm:$0xff]
        %v990 = vld [vmem:[#allocation2 + $0x678] sm:$0xff]
        %v991 = vld [vmem:[#allocation2 + $0x680] sm:$0xff]
        %v992 = vld [vmem:[#allocation2 + $0x688] sm:$0xff]
        %v993 = vld [vmem:[#allocation2 + $0x690] sm:$0xff]
        %v994 = vld [vmem:[#allocation2 + $0x698] sm:$0xff]
        %v995 = vld [vmem:[#allocation2 + $0x6a0] sm:$0xff]
        %v996 = vld [vmem:[#allocation2 + $0x6a8] sm:$0xff]
        %v997 = vld [vmem:[#allocation2 + $0x6b0] sm:$0xff]
        %v998 = vld [vmem:[#allocation2 + $0x6b8] sm:$0xff]
        %v999 = vld [vmem:[#allocation2 + $0x6c0] sm:$0xff]
        %v1000 = vld [vmem:[#allocation2 + $0x6c8] sm:$0xff]
        %v1001 = vld [vmem:[#allocation2 + $0x6d0] sm:$0xff]
        %v1002 = vld [vmem:[#allocation2 + $0x6d8] sm:$0xff]
        %v1003 = vld [vmem:[#allocation2 + $0x6e0] sm:$0xff]
        %v1004 = vld [vmem:[#allocation2 + $0x6e8] sm:$0xff]
        %v1005 = vld [vmem:[#allocation2 + $0x6f0] sm:$0xff]
        %v1006 = vld [vmem:[#allocation2 + $0x6f8] sm:$0xff]
        %v1007 = vld [vmem:[#allocation2 + $0x700] sm:$0xff]
        %v1008 = vld [vmem:[#allocation2 + $0x708] sm:$0xff]
        %v1009 = vld [vmem:[#allocation2 + $0x710] sm:$0xff]
        %v1010 = vld [vmem:[#allocation2 + $0x718] sm:$0xff]
        %v1011 = vld [vmem:[#allocation2 + $0x720] sm:$0xff]
        %v1012 = vld [vmem:[#allocation2 + $0x728] sm:$0xff]
        %v1013 = vld [vmem:[#allocation2 + $0x730] sm:$0xff]
        %v1014 = vld [vmem:[#allocation2 + $0x738] sm:$0xff]
        %v1015 = vld [vmem:[#allocation2 + $0x740] sm:$0xff]
        %v1016 = vld [vmem:[#allocation2 + $0x748] sm:$0xff]
        %v1017 = vld [vmem:[#allocation2 + $0x750] sm:$0xff]
        %v1018 = vld [vmem:[#allocation2 + $0x758] sm:$0xff]
        %v1019 = vld [vmem:[#allocation2 + $0x760] sm:$0xff]
        %v1020 = vld [vmem:[#allocation2 + $0x768] sm:$0xff]
        %v1021 = vld [vmem:[#allocation2 + $0x770] sm:$0xff]
        %v1022 = vld [vmem:[#allocation2 + $0x778] sm:$0xff]
        %v1023 = vld [vmem:[#allocation2 + $0x780] sm:$0xff]
        %v1024 = vld [vmem:[#allocation2 + $0x788] sm:$0xff]
        %v1025 = vld [vmem:[#allocation2 + $0x790] sm:$0xff]
        %v1026 = vld [vmem:[#allocation2 + $0x798] sm:$0xff]
        %v1027 = vld [vmem:[#allocation2 + $0x7a0] sm:$0xff]
        %v1028 = vld [vmem:[#allocation2 + $0x7a8] sm:$0xff]
        %v1029 = vld [vmem:[#allocation2 + $0x7b0] sm:$0xff]
        %v1030 = vld [vmem:[#allocation2 + $0x7b8] sm:$0xff]
        %v1031 = vld [vmem:[#allocation2 + $0x7c0] sm:$0xff]
        %v1032 = vld [vmem:[#allocation2 + $0x7c8] sm:$0xff]
        %v1033 = vld [vmem:[#allocation2 + $0x7d0] sm:$0xff]
        %v1034 = vld [vmem:[#allocation2 + $0x7d8] sm:$0xff]
        %v1035 = vld [vmem:[#allocation2 + $0x7e0] sm:$0xff]
        %v1036 = vld [vmem:[#allocation2 + $0x7e8] sm:$0xff]
        %v1037 = vld [vmem:[#allocation2 + $0x7f0] sm:$0xff]
        %v1038 = vld [vmem:[#allocation2 + $0x7f8] sm:$0xff]
        %v1295 = vunpack.c.l.b16 %v783
        %v1296 = vunpack.c.h.b16 %v783
        %v1297 = vunpack.c.l.b16 %v784
        %v1298 = vunpack.c.h.b16 %v784
        %v1299 = vunpack.c.l.b16 %v785
        %v1300 = vunpack.c.h.b16 %v785
        %v1301 = vunpack.c.l.b16 %v786
        %v1302 = vunpack.c.h.b16 %v786
        %v1303 = vunpack.c.l.b16 %v787
        %v1304 = vunpack.c.h.b16 %v787
        %v1305 = vunpack.c.l.b16 %v788
        %v1306 = vunpack.c.h.b16 %v788
        %v1307 = vunpack.c.l.b16 %v789
        %v1308 = vunpack.c.h.b16 %v789
        %v1309 = vunpack.c.l.b16 %v790
        %v1310 = vunpack.c.h.b16 %v790
        %v1311 = vunpack.c.l.b16 %v791
        %v1312 = vunpack.c.h.b16 %v791
        %v1313 = vunpack.c.l.b16 %v792
        %v1314 = vunpack.c.h.b16 %v792
        %v1315 = vunpack.c.l.b16 %v793
        %v1316 = vunpack.c.h.b16 %v793
        %v1317 = vunpack.c.l.b16 %v794
        %v1318 = vunpack.c.h.b16 %v794
        %v1319 = vunpack.c.l.b16 %v795
        %v1320 = vunpack.c.h.b16 %v795
        %v1321 = vunpack.c.l.b16 %v796
        %v1322 = vunpack.c.h.b16 %v796
        %v1323 = vunpack.c.l.b16 %v797
        %v1324 = vunpack.c.h.b16 %v797
        %v1325 = vunpack.c.l.b16 %v798
        %v1326 = vunpack.c.h.b16 %v798
        %v1327 = vunpack.c.l.b16 %v799
        %v1328 = vunpack.c.h.b16 %v799
        %v1329 = vunpack.c.l.b16 %v800
        %v1330 = vunpack.c.h.b16 %v800
        %v1331 = vunpack.c.l.b16 %v801
        %v1332 = vunpack.c.h.b16 %v801
        %v1333 = vunpack.c.l.b16 %v802
        %v1334 = vunpack.c.h.b16 %v802
        %v1335 = vunpack.c.l.b16 %v803
        %v1336 = vunpack.c.h.b16 %v803
        %v1337 = vunpack.c.l.b16 %v804
        %v1338 = vunpack.c.h.b16 %v804
        %v1339 = vunpack.c.l.b16 %v805
        %v1340 = vunpack.c.h.b16 %v805
        %v1341 = vunpack.c.l.b16 %v806
        %v1342 = vunpack.c.h.b16 %v806
        %v1343 = vunpack.c.l.b16 %v807
        %v1344 = vunpack.c.h.b16 %v807
        %v1345 = vunpack.c.l.b16 %v808
        %v1346 = vunpack.c.h.b16 %v808
        %v1347 = vunpack.c.l.b16 %v809
        %v1348 = vunpack.c.h.b16 %v809
        %v1349 = vunpack.c.l.b16 %v810
        %v1350 = vunpack.c.h.b16 %v810
        %v1351 = vunpack.c.l.b16 %v811
        %v1352 = vunpack.c.h.b16 %v811
        %v1353 = vunpack.c.l.b16 %v812
        %v1354 = vunpack.c.h.b16 %v812
        %v1355 = vunpack.c.l.b16 %v813
        %v1356 = vunpack.c.h.b16 %v813
        %v1357 = vunpack.c.l.b16 %v814
        %v1358 = vunpack.c.h.b16 %v814
        %v1359 = vunpack.c.l.b16 %v815
        %v1360 = vunpack.c.h.b16 %v815
        %v1361 = vunpack.c.l.b16 %v816
        %v1362 = vunpack.c.h.b16 %v816
        %v1363 = vunpack.c.l.b16 %v817
        %v1364 = vunpack.c.h.b16 %v817
        %v1365 = vunpack.c.l.b16 %v818
        %v1366 = vunpack.c.h.b16 %v818
        %v1367 = vunpack.c.l.b16 %v819
        %v1368 = vunpack.c.h.b16 %v819
        %v1369 = vunpack.c.l.b16 %v820
        %v1370 = vunpack.c.h.b16 %v820
        %v1371 = vunpack.c.l.b16 %v821
        %v1372 = vunpack.c.h.b16 %v821
        %v1373 = vunpack.c.l.b16 %v822
        %v1374 = vunpack.c.h.b16 %v822
        %v1375 = vunpack.c.l.b16 %v823
        %v1376 = vunpack.c.h.b16 %v823
        %v1377 = vunpack.c.l.b16 %v824
        %v1378 = vunpack.c.h.b16 %v824
        %v1379 = vunpack.c.l.b16 %v825
        %v1380 = vunpack.c.h.b16 %v825
        %v1381 = vunpack.c.l.b16 %v826
        %v1382 = vunpack.c.h.b16 %v826
        %v1383 = vunpack.c.l.b16 %v827
        %v1384 = vunpack.c.h.b16 %v827
        %v1385 = vunpack.c.l.b16 %v828
        %v1386 = vunpack.c.h.b16 %v828
        %v1387 = vunpack.c.l.b16 %v829
        %v1388 = vunpack.c.h.b16 %v829
        %v1389 = vunpack.c.l.b16 %v830
        %v1390 = vunpack.c.h.b16 %v830
        %v1391 = vunpack.c.l.b16 %v831
        %v1392 = vunpack.c.h.b16 %v831
        %v1393 = vunpack.c.l.b16 %v832
        %v1394 = vunpack.c.h.b16 %v832
        %v1395 = vunpack.c.l.b16 %v833
        %v1396 = vunpack.c.h.b16 %v833
        %v1397 = vunpack.c.l.b16 %v834
        %v1398 = vunpack.c.h.b16 %v834
        %v1399 = vunpack.c.l.b16 %v835
        %v1400 = vunpack.c.h.b16 %v835
        %v1401 = vunpack.c.l.b16 %v836
        %v1402 = vunpack.c.h.b16 %v836
        %v1403 = vunpack.c.l.b16 %v837
        %v1404 = vunpack.c.h.b16 %v837
        %v1405 = vunpack.c.l.b16 %v838
        %v1406 = vunpack.c.h.b16 %v838
        %v1407 = vunpack.c.l.b16 %v839
        %v1408 = vunpack.c.h.b16 %v839
        %v1409 = vunpack.c.l.b16 %v840
        %v1410 = vunpack.c.h.b16 %v840
        %v1411 = vunpack.c.l.b16 %v841
        %v1412 = vunpack.c.h.b16 %v841
        %v1413 = vunpack.c.l.b16 %v842
        %v1414 = vunpack.c.h.b16 %v842
        %v1415 = vunpack.c.l.b16 %v843
        %v1416 = vunpack.c.h.b16 %v843
        %v1417 = vunpack.c.l.b16 %v844
        %v1418 = vunpack.c.h.b16 %v844
        %v1419 = vunpack.c.l.b16 %v845
        %v1420 = vunpack.c.h.b16 %v845
        %v1421 = vunpack.c.l.b16 %v846
        %v1422 = vunpack.c.h.b16 %v846
        %v1423 = vunpack.c.l.b16 %v847
        %v1424 = vunpack.c.h.b16 %v847
        %v1425 = vunpack.c.l.b16 %v848
        %v1426 = vunpack.c.h.b16 %v848
        %v1427 = vunpack.c.l.b16 %v849
        %v1428 = vunpack.c.h.b16 %v849
        %v1429 = vunpack.c.l.b16 %v850
        %v1430 = vunpack.c.h.b16 %v850
        %v1431 = vunpack.c.l.b16 %v851
        %v1432 = vunpack.c.h.b16 %v851
        %v1433 = vunpack.c.l.b16 %v852
        %v1434 = vunpack.c.h.b16 %v852
        %v1435 = vunpack.c.l.b16 %v853
        %v1436 = vunpack.c.h.b16 %v853
        %v1437 = vunpack.c.l.b16 %v854
        %v1438 = vunpack.c.h.b16 %v854
        %v1439 = vunpack.c.l.b16 %v855
        %v1440 = vunpack.c.h.b16 %v855
        %v1441 = vunpack.c.l.b16 %v856
        %v1442 = vunpack.c.h.b16 %v856
        %v1443 = vunpack.c.l.b16 %v857
        %v1444 = vunpack.c.h.b16 %v857
        %v1445 = vunpack.c.l.b16 %v858
        %v1446 = vunpack.c.h.b16 %v858
        %v1447 = vunpack.c.l.b16 %v859
        %v1448 = vunpack.c.h.b16 %v859
        %v1449 = vunpack.c.l.b16 %v860
        %v1450 = vunpack.c.h.b16 %v860
        %v1451 = vunpack.c.l.b16 %v861
        %v1452 = vunpack.c.h.b16 %v861
        %v1453 = vunpack.c.l.b16 %v862
        %v1454 = vunpack.c.h.b16 %v862
        %v1455 = vunpack.c.l.b16 %v863
        %v1456 = vunpack.c.h.b16 %v863
        %v1457 = vunpack.c.l.b16 %v864
        %v1458 = vunpack.c.h.b16 %v864
        %v1459 = vunpack.c.l.b16 %v865
        %v1460 = vunpack.c.h.b16 %v865
        %v1461 = vunpack.c.l.b16 %v866
        %v1462 = vunpack.c.h.b16 %v866
        %v1463 = vunpack.c.l.b16 %v867
        %v1464 = vunpack.c.h.b16 %v867
        %v1465 = vunpack.c.l.b16 %v868
        %v1466 = vunpack.c.h.b16 %v868
        %v1467 = vunpack.c.l.b16 %v869
        %v1468 = vunpack.c.h.b16 %v869
        %v1469 = vunpack.c.l.b16 %v870
        %v1470 = vunpack.c.h.b16 %v870
        %v1471 = vunpack.c.l.b16 %v871
        %v1472 = vunpack.c.h.b16 %v871
        %v1473 = vunpack.c.l.b16 %v872
        %v1474 = vunpack.c.h.b16 %v872
        %v1475 = vunpack.c.l.b16 %v873
        %v1476 = vunpack.c.h.b16 %v873
        %v1477 = vunpack.c.l.b16 %v874
        %v1478 = vunpack.c.h.b16 %v874
        %v1479 = vunpack.c.l.b16 %v875
        %v1480 = vunpack.c.h.b16 %v875
        %v1481 = vunpack.c.l.b16 %v876
        %v1482 = vunpack.c.h.b16 %v876
        %v1483 = vunpack.c.l.b16 %v877
        %v1484 = vunpack.c.h.b16 %v877
        %v1485 = vunpack.c.l.b16 %v878
        %v1486 = vunpack.c.h.b16 %v878
        %v1487 = vunpack.c.l.b16 %v879
        %v1488 = vunpack.c.h.b16 %v879
        %v1489 = vunpack.c.l.b16 %v880
        %v1490 = vunpack.c.h.b16 %v880
        %v1491 = vunpack.c.l.b16 %v881
        %v1492 = vunpack.c.h.b16 %v881
        %v1493 = vunpack.c.l.b16 %v882
        %v1494 = vunpack.c.h.b16 %v882
        %v1495 = vunpack.c.l.b16 %v883
        %v1496 = vunpack.c.h.b16 %v883
        %v1497 = vunpack.c.l.b16 %v884
        %v1498 = vunpack.c.h.b16 %v884
        %v1499 = vunpack.c.l.b16 %v885
        %v1500 = vunpack.c.h.b16 %v885
        %v1501 = vunpack.c.l.b16 %v886
        %v1502 = vunpack.c.h.b16 %v886
        %v1503 = vunpack.c.l.b16 %v887
        %v1504 = vunpack.c.h.b16 %v887
        %v1505 = vunpack.c.l.b16 %v888
        %v1506 = vunpack.c.h.b16 %v888
        %v1507 = vunpack.c.l.b16 %v889
        %v1508 = vunpack.c.h.b16 %v889
        %v1509 = vunpack.c.l.b16 %v890
        %v1510 = vunpack.c.h.b16 %v890
        %v1511 = vunpack.c.l.b16 %v891
        %v1512 = vunpack.c.h.b16 %v891
        %v1513 = vunpack.c.l.b16 %v892
        %v1514 = vunpack.c.h.b16 %v892
        %v1515 = vunpack.c.l.b16 %v893
        %v1516 = vunpack.c.h.b16 %v893
        %v1517 = vunpack.c.l.b16 %v894
        %v1518 = vunpack.c.h.b16 %v894
        %v1519 = vunpack.c.l.b16 %v895
        %v1520 = vunpack.c.h.b16 %v895
        %v1521 = vunpack.c.l.b16 %v896
        %v1522 = vunpack.c.h.b16 %v896
        %v1523 = vunpack.c.l.b16 %v897
        %v1524 = vunpack.c.h.b16 %v897
        %v1525 = vunpack.c.l.b16 %v898
        %v1526 = vunpack.c.h.b16 %v898
        %v1527 = vunpack.c.l.b16 %v899
        %v1528 = vunpack.c.h.b16 %v899
        %v1529 = vunpack.c.l.b16 %v900
        %v1530 = vunpack.c.h.b16 %v900
        %v1531 = vunpack.c.l.b16 %v901
        %v1532 = vunpack.c.h.b16 %v901
        %v1533 = vunpack.c.l.b16 %v902
        %v1534 = vunpack.c.h.b16 %v902
        %v1535 = vunpack.c.l.b16 %v903
        %v1536 = vunpack.c.h.b16 %v903
        %v1537 = vunpack.c.l.b16 %v904
        %v1538 = vunpack.c.h.b16 %v904
        %v1539 = vunpack.c.l.b16 %v905
        %v1540 = vunpack.c.h.b16 %v905
        %v1541 = vunpack.c.l.b16 %v906
        %v1542 = vunpack.c.h.b16 %v906
        %v1543 = vunpack.c.l.b16 %v907
        %v1544 = vunpack.c.h.b16 %v907
        %v1545 = vunpack.c.l.b16 %v908
        %v1546 = vunpack.c.h.b16 %v908
        %v1547 = vunpack.c.l.b16 %v909
        %v1548 = vunpack.c.h.b16 %v909
        %v1549 = vunpack.c.l.b16 %v910
        %v1550 = vunpack.c.h.b16 %v910
        %v1551 = vunpack.c.l.b16 %v911
        %v1552 = vunpack.c.h.b16 %v911
        %v1553 = vunpack.c.l.b16 %v912
        %v1554 = vunpack.c.h.b16 %v912
        %v1555 = vunpack.c.l.b16 %v913
        %v1556 = vunpack.c.h.b16 %v913
        %v1557 = vunpack.c.l.b16 %v914
        %v1558 = vunpack.c.h.b16 %v914
        %v1559 = vunpack.c.l.b16 %v915
        %v1560 = vunpack.c.h.b16 %v915
        %v1561 = vunpack.c.l.b16 %v916
        %v1562 = vunpack.c.h.b16 %v916
        %v1563 = vunpack.c.l.b16 %v917
        %v1564 = vunpack.c.h.b16 %v917
        %v1565 = vunpack.c.l.b16 %v918
        %v1566 = vunpack.c.h.b16 %v918
        %v1567 = vunpack.c.l.b16 %v919
        %v1568 = vunpack.c.h.b16 %v919
        %v1569 = vunpack.c.l.b16 %v920
        %v1570 = vunpack.c.h.b16 %v920
        %v1571 = vunpack.c.l.b16 %v921
        %v1572 = vunpack.c.h.b16 %v921
        %v1573 = vunpack.c.l.b16 %v922
        %v1574 = vunpack.c.h.b16 %v922
        %v1575 = vunpack.c.l.b16 %v923
        %v1576 = vunpack.c.h.b16 %v923
        %v1577 = vunpack.c.l.b16 %v924
        %v1578 = vunpack.c.h.b16 %v924
        %v1579 = vunpack.c.l.b16 %v925
        %v1580 = vunpack.c.h.b16 %v925
        %v1581 = vunpack.c.l.b16 %v926
        %v1582 = vunpack.c.h.b16 %v926
        %v1583 = vunpack.c.l.b16 %v927
        %v1584 = vunpack.c.h.b16 %v927
        %v1585 = vunpack.c.l.b16 %v928
        %v1586 = vunpack.c.h.b16 %v928
        %v1587 = vunpack.c.l.b16 %v929
        %v1588 = vunpack.c.h.b16 %v929
        %v1589 = vunpack.c.l.b16 %v930
        %v1590 = vunpack.c.h.b16 %v930
        %v1591 = vunpack.c.l.b16 %v931
        %v1592 = vunpack.c.h.b16 %v931
        %v1593 = vunpack.c.l.b16 %v932
        %v1594 = vunpack.c.h.b16 %v932
        %v1595 = vunpack.c.l.b16 %v933
        %v1596 = vunpack.c.h.b16 %v933
        %v1597 = vunpack.c.l.b16 %v934
        %v1598 = vunpack.c.h.b16 %v934
        %v1599 = vunpack.c.l.b16 %v935
        %v1600 = vunpack.c.h.b16 %v935
        %v1601 = vunpack.c.l.b16 %v936
        %v1602 = vunpack.c.h.b16 %v936
        %v1603 = vunpack.c.l.b16 %v937
        %v1604 = vunpack.c.h.b16 %v937
        %v1605 = vunpack.c.l.b16 %v938
        %v1606 = vunpack.c.h.b16 %v938
        %v1607 = vunpack.c.l.b16 %v939
        %v1608 = vunpack.c.h.b16 %v939
        %v1609 = vunpack.c.l.b16 %v940
        %v1610 = vunpack.c.h.b16 %v940
        %v1611 = vunpack.c.l.b16 %v941
        %v1612 = vunpack.c.h.b16 %v941
        %v1613 = vunpack.c.l.b16 %v942
        %v1614 = vunpack.c.h.b16 %v942
        %v1615 = vunpack.c.l.b16 %v943
        %v1616 = vunpack.c.h.b16 %v943
        %v1617 = vunpack.c.l.b16 %v944
        %v1618 = vunpack.c.h.b16 %v944
        %v1619 = vunpack.c.l.b16 %v945
        %v1620 = vunpack.c.h.b16 %v945
        %v1621 = vunpack.c.l.b16 %v946
        %v1622 = vunpack.c.h.b16 %v946
        %v1623 = vunpack.c.l.b16 %v947
        %v1624 = vunpack.c.h.b16 %v947
        %v1625 = vunpack.c.l.b16 %v948
        %v1626 = vunpack.c.h.b16 %v948
        %v1627 = vunpack.c.l.b16 %v949
        %v1628 = vunpack.c.h.b16 %v949
        %v1629 = vunpack.c.l.b16 %v950
        %v1630 = vunpack.c.h.b16 %v950
        %v1631 = vunpack.c.l.b16 %v951
        %v1632 = vunpack.c.h.b16 %v951
        %v1633 = vunpack.c.l.b16 %v952
        %v1634 = vunpack.c.h.b16 %v952
        %v1635 = vunpack.c.l.b16 %v953
        %v1636 = vunpack.c.h.b16 %v953
        %v1637 = vunpack.c.l.b16 %v954
        %v1638 = vunpack.c.h.b16 %v954
        %v1639 = vunpack.c.l.b16 %v955
        %v1640 = vunpack.c.h.b16 %v955
        %v1641 = vunpack.c.l.b16 %v956
        %v1642 = vunpack.c.h.b16 %v956
        %v1643 = vunpack.c.l.b16 %v957
        %v1644 = vunpack.c.h.b16 %v957
        %v1645 = vunpack.c.l.b16 %v958
        %v1646 = vunpack.c.h.b16 %v958
        %v1647 = vunpack.c.l.b16 %v959
        %v1648 = vunpack.c.h.b16 %v959
        %v1649 = vunpack.c.l.b16 %v960
        %v1650 = vunpack.c.h.b16 %v960
        %v1651 = vunpack.c.l.b16 %v961
        %v1652 = vunpack.c.h.b16 %v961
        %v1653 = vunpack.c.l.b16 %v962
        %v1654 = vunpack.c.h.b16 %v962
        %v1655 = vunpack.c.l.b16 %v963
        %v1656 = vunpack.c.h.b16 %v963
        %v1657 = vunpack.c.l.b16 %v964
        %v1658 = vunpack.c.h.b16 %v964
        %v1659 = vunpack.c.l.b16 %v965
        %v1660 = vunpack.c.h.b16 %v965
        %v1661 = vunpack.c.l.b16 %v966
        %v1662 = vunpack.c.h.b16 %v966
        %v1663 = vunpack.c.l.b16 %v967
        %v1664 = vunpack.c.h.b16 %v967
        %v1665 = vunpack.c.l.b16 %v968
        %v1666 = vunpack.c.h.b16 %v968
        %v1667 = vunpack.c.l.b16 %v969
        %v1668 = vunpack.c.h.b16 %v969
        %v1669 = vunpack.c.l.b16 %v970
        %v1670 = vunpack.c.h.b16 %v970
        %v1671 = vunpack.c.l.b16 %v971
        %v1672 = vunpack.c.h.b16 %v971
        %v1673 = vunpack.c.l.b16 %v972
        %v1674 = vunpack.c.h.b16 %v972
        %v1675 = vunpack.c.l.b16 %v973
        %v1676 = vunpack.c.h.b16 %v973
        %v1677 = vunpack.c.l.b16 %v974
        %v1678 = vunpack.c.h.b16 %v974
        %v1679 = vunpack.c.l.b16 %v975
        %v1680 = vunpack.c.h.b16 %v975
        %v1681 = vunpack.c.l.b16 %v976
        %v1682 = vunpack.c.h.b16 %v976
        %v1683 = vunpack.c.l.b16 %v977
        %v1684 = vunpack.c.h.b16 %v977
        %v1685 = vunpack.c.l.b16 %v978
        %v1686 = vunpack.c.h.b16 %v978
        %v1687 = vunpack.c.l.b16 %v979
        %v1688 = vunpack.c.h.b16 %v979
        %v1689 = vunpack.c.l.b16 %v980
        %v1690 = vunpack.c.h.b16 %v980
        %v1691 = vunpack.c.l.b16 %v981
        %v1692 = vunpack.c.h.b16 %v981
        %v1693 = vunpack.c.l.b16 %v982
        %v1694 = vunpack.c.h.b16 %v982
        %v1695 = vunpack.c.l.b16 %v983
        %v1696 = vunpack.c.h.b16 %v983
        %v1697 = vunpack.c.l.b16 %v984
        %v1698 = vunpack.c.h.b16 %v984
        %v1699 = vunpack.c.l.b16 %v985
        %v1700 = vunpack.c.h.b16 %v985
        %v1701 = vunpack.c.l.b16 %v986
        %v1702 = vunpack.c.h.b16 %v986
        %v1703 = vunpack.c.l.b16 %v987
        %v1704 = vunpack.c.h.b16 %v987
        %v1705 = vunpack.c.l.b16 %v988
        %v1706 = vunpack.c.h.b16 %v988
        %v1707 = vunpack.c.l.b16 %v989
        %v1708 = vunpack.c.h.b16 %v989
        %v1709 = vunpack.c.l.b16 %v990
        %v1710 = vunpack.c.h.b16 %v990
        %v1711 = vunpack.c.l.b16 %v991
        %v1712 = vunpack.c.h.b16 %v991
        %v1713 = vunpack.c.l.b16 %v992
        %v1714 = vunpack.c.h.b16 %v992
        %v1715 = vunpack.c.l.b16 %v993
        %v1716 = vunpack.c.h.b16 %v993
        %v1717 = vunpack.c.l.b16 %v994
        %v1718 = vunpack.c.h.b16 %v994
        %v1719 = vunpack.c.l.b16 %v995
        %v1720 = vunpack.c.h.b16 %v995
        %v1721 = vunpack.c.l.b16 %v996
        %v1722 = vunpack.c.h.b16 %v996
        %v1723 = vunpack.c.l.b16 %v997
        %v1724 = vunpack.c.h.b16 %v997
        %v1725 = vunpack.c.l.b16 %v998
        %v1726 = vunpack.c.h.b16 %v998
        %v1727 = vunpack.c.l.b16 %v999
        %v1728 = vunpack.c.h.b16 %v999
        %v1729 = vunpack.c.l.b16 %v1000
        %v1730 = vunpack.c.h.b16 %v1000
        %v1731 = vunpack.c.l.b16 %v1001
        %v1732 = vunpack.c.h.b16 %v1001
        %v1733 = vunpack.c.l.b16 %v1002
        %v1734 = vunpack.c.h.b16 %v1002
        %v1735 = vunpack.c.l.b16 %v1003
        %v1736 = vunpack.c.h.b16 %v1003
        %v1737 = vunpack.c.l.b16 %v1004
        %v1738 = vunpack.c.h.b16 %v1004
        %v1739 = vunpack.c.l.b16 %v1005
        %v1740 = vunpack.c.h.b16 %v1005
        %v1741 = vunpack.c.l.b16 %v1006
        %v1742 = vunpack.c.h.b16 %v1006
        %v1743 = vunpack.c.l.b16 %v1007
        %v1744 = vunpack.c.h.b16 %v1007
        %v1745 = vunpack.c.l.b16 %v1008
        %v1746 = vunpack.c.h.b16 %v1008
        %v1747 = vunpack.c.l.b16 %v1009
        %v1748 = vunpack.c.h.b16 %v1009
        %v1749 = vunpack.c.l.b16 %v1010
        %v1750 = vunpack.c.h.b16 %v1010
        %v1751 = vunpack.c.l.b16 %v1011
        %v1752 = vunpack.c.h.b16 %v1011
        %v1753 = vunpack.c.l.b16 %v1012
        %v1754 = vunpack.c.h.b16 %v1012
        %v1755 = vunpack.c.l.b16 %v1013
        %v1756 = vunpack.c.h.b16 %v1013
        %v1757 = vunpack.c.l.b16 %v1014
        %v1758 = vunpack.c.h.b16 %v1014
        %v1759 = vunpack.c.l.b16 %v1015
        %v1760 = vunpack.c.h.b16 %v1015
        %v1761 = vunpack.c.l.b16 %v1016
        %v1762 = vunpack.c.h.b16 %v1016
        %v1763 = vunpack.c.l.b16 %v1017
        %v1764 = vunpack.c.h.b16 %v1017
        %v1765 = vunpack.c.l.b16 %v1018
        %v1766 = vunpack.c.h.b16 %v1018
        %v1767 = vunpack.c.l.b16 %v1019
        %v1768 = vunpack.c.h.b16 %v1019
        %v1769 = vunpack.c.l.b16 %v1020
        %v1770 = vunpack.c.h.b16 %v1020
        %v1771 = vunpack.c.l.b16 %v1021
        %v1772 = vunpack.c.h.b16 %v1021
        %v1773 = vunpack.c.l.b16 %v1022
        %v1774 = vunpack.c.h.b16 %v1022
        %v1775 = vunpack.c.l.b16 %v1023
        %v1776 = vunpack.c.h.b16 %v1023
        %v1777 = vunpack.c.l.b16 %v1024
        %v1778 = vunpack.c.h.b16 %v1024
        %v1779 = vunpack.c.l.b16 %v1025
        %v1780 = vunpack.c.h.b16 %v1025
        %v1781 = vunpack.c.l.b16 %v1026
        %v1782 = vunpack.c.h.b16 %v1026
        %v1783 = vunpack.c.l.b16 %v1027
        %v1784 = vunpack.c.h.b16 %v1027
        %v1785 = vunpack.c.l.b16 %v1028
        %v1786 = vunpack.c.h.b16 %v1028
        %v1787 = vunpack.c.l.b16 %v1029
        %v1788 = vunpack.c.h.b16 %v1029
        %v1789 = vunpack.c.l.b16 %v1030
        %v1790 = vunpack.c.h.b16 %v1030
        %v1791 = vunpack.c.l.b16 %v1031
        %v1792 = vunpack.c.h.b16 %v1031
        %v1793 = vunpack.c.l.b16 %v1032
        %v1794 = vunpack.c.h.b16 %v1032
        %v1795 = vunpack.c.l.b16 %v1033
        %v1796 = vunpack.c.h.b16 %v1033
        %v1797 = vunpack.c.l.b16 %v1034
        %v1798 = vunpack.c.h.b16 %v1034
        %v1799 = vunpack.c.l.b16 %v1035
        %v1800 = vunpack.c.h.b16 %v1035
        %v1801 = vunpack.c.l.b16 %v1036
        %v1802 = vunpack.c.h.b16 %v1036
        %v1803 = vunpack.c.l.b16 %v1037
        %v1804 = vunpack.c.h.b16 %v1037
        %v1805 = vunpack.c.l.b16 %v1038
        %v1806 = vunpack.c.h.b16 %v1038
        %v1807 = vpack.c.b16 %v1299, %v1295
        %v1808 = vpack.c.b16 %v1300, %v1296
        %v1809 = vpack.c.b16 %v1301, %v1297
        %v1810 = vpack.c.b16 %v1302, %v1298
        %v1811 = vpack.c.b16 %v1307, %v1303
        %v1812 = vpack.c.b16 %v1308, %v1304
        %v1813 = vpack.c.b16 %v1309, %v1305
        %v1814 = vpack.c.b16 %v1310, %v1306
        %v1815 = vpack.c.b16 %v1315, %v1311
        %v1816 = vpack.c.b16 %v1316, %v1312
        %v1817 = vpack.c.b16 %v1317, %v1313
        %v1818 = vpack.c.b16 %v1318, %v1314
        %v1819 = vpack.c.b16 %v1323, %v1319
        %v1820 = vpack.c.b16 %v1324, %v1320
        %v1821 = vpack.c.b16 %v1325, %v1321
        %v1822 = vpack.c.b16 %v1326, %v1322
        %v1823 = vpack.c.b16 %v1331, %v1327
        %v1824 = vpack.c.b16 %v1332, %v1328
        %v1825 = vpack.c.b16 %v1333, %v1329
        %v1826 = vpack.c.b16 %v1334, %v1330
        %v1827 = vpack.c.b16 %v1339, %v1335
        %v1828 = vpack.c.b16 %v1340, %v1336
        %v1829 = vpack.c.b16 %v1341, %v1337
        %v1830 = vpack.c.b16 %v1342, %v1338
        %v1831 = vpack.c.b16 %v1347, %v1343
        %v1832 = vpack.c.b16 %v1348, %v1344
        %v1833 = vpack.c.b16 %v1349, %v1345
        %v1834 = vpack.c.b16 %v1350, %v1346
        %v1835 = vpack.c.b16 %v1355, %v1351
        %v1836 = vpack.c.b16 %v1356, %v1352
        %v1837 = vpack.c.b16 %v1357, %v1353
        %v1838 = vpack.c.b16 %v1358, %v1354
        %v1839 = vpack.c.b16 %v1363, %v1359
        %v1840 = vpack.c.b16 %v1364, %v1360
        %v1841 = vpack.c.b16 %v1365, %v1361
        %v1842 = vpack.c.b16 %v1366, %v1362
        %v1843 = vpack.c.b16 %v1371, %v1367
        %v1844 = vpack.c.b16 %v1372, %v1368
        %v1845 = vpack.c.b16 %v1373, %v1369
        %v1846 = vpack.c.b16 %v1374, %v1370
        %v1847 = vpack.c.b16 %v1379, %v1375
        %v1848 = vpack.c.b16 %v1380, %v1376
        %v1849 = vpack.c.b16 %v1381, %v1377
        %v1850 = vpack.c.b16 %v1382, %v1378
        %v1851 = vpack.c.b16 %v1387, %v1383
        %v1852 = vpack.c.b16 %v1388, %v1384
        %v1853 = vpack.c.b16 %v1389, %v1385
        %v1854 = vpack.c.b16 %v1390, %v1386
        %v1855 = vpack.c.b16 %v1395, %v1391
        %v1856 = vpack.c.b16 %v1396, %v1392
        %v1857 = vpack.c.b16 %v1397, %v1393
        %v1858 = vpack.c.b16 %v1398, %v1394
        %v1859 = vpack.c.b16 %v1403, %v1399
        %v1860 = vpack.c.b16 %v1404, %v1400
        %v1861 = vpack.c.b16 %v1405, %v1401
        %v1862 = vpack.c.b16 %v1406, %v1402
        %v1863 = vpack.c.b16 %v1411, %v1407
        %v1864 = vpack.c.b16 %v1412, %v1408
        %v1865 = vpack.c.b16 %v1413, %v1409
        %v1866 = vpack.c.b16 %v1414, %v1410
        %v1867 = vpack.c.b16 %v1419, %v1415
        %v1868 = vpack.c.b16 %v1420, %v1416
        %v1869 = vpack.c.b16 %v1421, %v1417
        %v1870 = vpack.c.b16 %v1422, %v1418
        %v1871 = vpack.c.b16 %v1427, %v1423
        %v1872 = vpack.c.b16 %v1428, %v1424
        %v1873 = vpack.c.b16 %v1429, %v1425
        %v1874 = vpack.c.b16 %v1430, %v1426
        %v1875 = vpack.c.b16 %v1435, %v1431
        %v1876 = vpack.c.b16 %v1436, %v1432
        %v1877 = vpack.c.b16 %v1437, %v1433
        %v1878 = vpack.c.b16 %v1438, %v1434
        %v1879 = vpack.c.b16 %v1443, %v1439
        %v1880 = vpack.c.b16 %v1444, %v1440
        %v1881 = vpack.c.b16 %v1445, %v1441
        %v1882 = vpack.c.b16 %v1446, %v1442
        %v1883 = vpack.c.b16 %v1451, %v1447
        %v1884 = vpack.c.b16 %v1452, %v1448
        %v1885 = vpack.c.b16 %v1453, %v1449
        %v1886 = vpack.c.b16 %v1454, %v1450
        %v1887 = vpack.c.b16 %v1459, %v1455
        %v1888 = vpack.c.b16 %v1460, %v1456
        %v1889 = vpack.c.b16 %v1461, %v1457
        %v1890 = vpack.c.b16 %v1462, %v1458
        %v1891 = vpack.c.b16 %v1467, %v1463
        %v1892 = vpack.c.b16 %v1468, %v1464
        %v1893 = vpack.c.b16 %v1469, %v1465
        %v1894 = vpack.c.b16 %v1470, %v1466
        %v1895 = vpack.c.b16 %v1475, %v1471
        %v1896 = vpack.c.b16 %v1476, %v1472
        %v1897 = vpack.c.b16 %v1477, %v1473
        %v1898 = vpack.c.b16 %v1478, %v1474
        %v1899 = vpack.c.b16 %v1483, %v1479
        %v1900 = vpack.c.b16 %v1484, %v1480
        %v1901 = vpack.c.b16 %v1485, %v1481
        %v1902 = vpack.c.b16 %v1486, %v1482
        %v1903 = vpack.c.b16 %v1491, %v1487
        %v1904 = vpack.c.b16 %v1492, %v1488
        %v1905 = vpack.c.b16 %v1493, %v1489
        %v1906 = vpack.c.b16 %v1494, %v1490
        %v1907 = vpack.c.b16 %v1499, %v1495
        %v1908 = vpack.c.b16 %v1500, %v1496
        %v1909 = vpack.c.b16 %v1501, %v1497
        %v1910 = vpack.c.b16 %v1502, %v1498
        %v1911 = vpack.c.b16 %v1507, %v1503
        %v1912 = vpack.c.b16 %v1508, %v1504
        %v1913 = vpack.c.b16 %v1509, %v1505
        %v1914 = vpack.c.b16 %v1510, %v1506
        %v1915 = vpack.c.b16 %v1515, %v1511
        %v1916 = vpack.c.b16 %v1516, %v1512
        %v1917 = vpack.c.b16 %v1517, %v1513
        %v1918 = vpack.c.b16 %v1518, %v1514
        %v1919 = vpack.c.b16 %v1523, %v1519
        %v1920 = vpack.c.b16 %v1524, %v1520
        %v1921 = vpack.c.b16 %v1525, %v1521
        %v1922 = vpack.c.b16 %v1526, %v1522
        %v1923 = vpack.c.b16 %v1531, %v1527
        %v1924 = vpack.c.b16 %v1532, %v1528
        %v1925 = vpack.c.b16 %v1533, %v1529
        %v1926 = vpack.c.b16 %v1534, %v1530
        %v1927 = vpack.c.b16 %v1539, %v1535
        %v1928 = vpack.c.b16 %v1540, %v1536
        %v1929 = vpack.c.b16 %v1541, %v1537
        %v1930 = vpack.c.b16 %v1542, %v1538
        %v1931 = vpack.c.b16 %v1547, %v1543
        %v1932 = vpack.c.b16 %v1548, %v1544
        %v1933 = vpack.c.b16 %v1549, %v1545
        %v1934 = vpack.c.b16 %v1550, %v1546
        %v1935 = vpack.c.b16 %v1555, %v1551
        %v1936 = vpack.c.b16 %v1556, %v1552
        %v1937 = vpack.c.b16 %v1557, %v1553
        %v1938 = vpack.c.b16 %v1558, %v1554
        %v1939 = vpack.c.b16 %v1563, %v1559
        %v1940 = vpack.c.b16 %v1564, %v1560
        %v1941 = vpack.c.b16 %v1565, %v1561
        %v1942 = vpack.c.b16 %v1566, %v1562
        %v1943 = vpack.c.b16 %v1571, %v1567
        %v1944 = vpack.c.b16 %v1572, %v1568
        %v1945 = vpack.c.b16 %v1573, %v1569
        %v1946 = vpack.c.b16 %v1574, %v1570
        %v1947 = vpack.c.b16 %v1579, %v1575
        %v1948 = vpack.c.b16 %v1580, %v1576
        %v1949 = vpack.c.b16 %v1581, %v1577
        %v1950 = vpack.c.b16 %v1582, %v1578
        %v1951 = vpack.c.b16 %v1587, %v1583
        %v1952 = vpack.c.b16 %v1588, %v1584
        %v1953 = vpack.c.b16 %v1589, %v1585
        %v1954 = vpack.c.b16 %v1590, %v1586
        %v1955 = vpack.c.b16 %v1595, %v1591
        %v1956 = vpack.c.b16 %v1596, %v1592
        %v1957 = vpack.c.b16 %v1597, %v1593
        %v1958 = vpack.c.b16 %v1598, %v1594
        %v1959 = vpack.c.b16 %v1603, %v1599
        %v1960 = vpack.c.b16 %v1604, %v1600
        %v1961 = vpack.c.b16 %v1605, %v1601
        %v1962 = vpack.c.b16 %v1606, %v1602
        %v1963 = vpack.c.b16 %v1611, %v1607
        %v1964 = vpack.c.b16 %v1612, %v1608
        %v1965 = vpack.c.b16 %v1613, %v1609
        %v1966 = vpack.c.b16 %v1614, %v1610
        %v1967 = vpack.c.b16 %v1619, %v1615
        %v1968 = vpack.c.b16 %v1620, %v1616
        %v1969 = vpack.c.b16 %v1621, %v1617
        %v1970 = vpack.c.b16 %v1622, %v1618
        %v1971 = vpack.c.b16 %v1627, %v1623
        %v1972 = vpack.c.b16 %v1628, %v1624
        %v1973 = vpack.c.b16 %v1629, %v1625
        %v1974 = vpack.c.b16 %v1630, %v1626
        %v1975 = vpack.c.b16 %v1635, %v1631
        %v1976 = vpack.c.b16 %v1636, %v1632
        %v1977 = vpack.c.b16 %v1637, %v1633
        %v1978 = vpack.c.b16 %v1638, %v1634
        %v1979 = vpack.c.b16 %v1643, %v1639
        %v1980 = vpack.c.b16 %v1644, %v1640
        %v1981 = vpack.c.b16 %v1645, %v1641
        %v1982 = vpack.c.b16 %v1646, %v1642
        %v1983 = vpack.c.b16 %v1651, %v1647
        %v1984 = vpack.c.b16 %v1652, %v1648
        %v1985 = vpack.c.b16 %v1653, %v1649
        %v1986 = vpack.c.b16 %v1654, %v1650
        %v1987 = vpack.c.b16 %v1659, %v1655
        %v1988 = vpack.c.b16 %v1660, %v1656
        %v1989 = vpack.c.b16 %v1661, %v1657
        %v1990 = vpack.c.b16 %v1662, %v1658
        %v1991 = vpack.c.b16 %v1667, %v1663
        %v1992 = vpack.c.b16 %v1668, %v1664
        %v1993 = vpack.c.b16 %v1669, %v1665
        %v1994 = vpack.c.b16 %v1670, %v1666
        %v1995 = vpack.c.b16 %v1675, %v1671
        %v1996 = vpack.c.b16 %v1676, %v1672
        %v1997 = vpack.c.b16 %v1677, %v1673
        %v1998 = vpack.c.b16 %v1678, %v1674
        %v1999 = vpack.c.b16 %v1683, %v1679
        %v2000 = vpack.c.b16 %v1684, %v1680
        %v2001 = vpack.c.b16 %v1685, %v1681
        %v2002 = vpack.c.b16 %v1686, %v1682
        %v2003 = vpack.c.b16 %v1691, %v1687
        %v2004 = vpack.c.b16 %v1692, %v1688
        %v2005 = vpack.c.b16 %v1693, %v1689
        %v2006 = vpack.c.b16 %v1694, %v1690
        %v2007 = vpack.c.b16 %v1699, %v1695
        %v2008 = vpack.c.b16 %v1700, %v1696
        %v2009 = vpack.c.b16 %v1701, %v1697
        %v2010 = vpack.c.b16 %v1702, %v1698
        %v2011 = vpack.c.b16 %v1707, %v1703
        %v2012 = vpack.c.b16 %v1708, %v1704
        %v2013 = vpack.c.b16 %v1709, %v1705
        %v2014 = vpack.c.b16 %v1710, %v1706
        %v2015 = vpack.c.b16 %v1715, %v1711
        %v2016 = vpack.c.b16 %v1716, %v1712
        %v2017 = vpack.c.b16 %v1717, %v1713
        %v2018 = vpack.c.b16 %v1718, %v1714
        %v2019 = vpack.c.b16 %v1723, %v1719
        %v2020 = vpack.c.b16 %v1724, %v1720
        %v2021 = vpack.c.b16 %v1725, %v1721
        %v2022 = vpack.c.b16 %v1726, %v1722
        %v2023 = vpack.c.b16 %v1731, %v1727
        %v2024 = vpack.c.b16 %v1732, %v1728
        %v2025 = vpack.c.b16 %v1733, %v1729
        %v2026 = vpack.c.b16 %v1734, %v1730
        %v2027 = vpack.c.b16 %v1739, %v1735
        %v2028 = vpack.c.b16 %v1740, %v1736
        %v2029 = vpack.c.b16 %v1741, %v1737
        %v2030 = vpack.c.b16 %v1742, %v1738
        %v2031 = vpack.c.b16 %v1747, %v1743
        %v2032 = vpack.c.b16 %v1748, %v1744
        %v2033 = vpack.c.b16 %v1749, %v1745
        %v2034 = vpack.c.b16 %v1750, %v1746
        %v2035 = vpack.c.b16 %v1755, %v1751
        %v2036 = vpack.c.b16 %v1756, %v1752
        %v2037 = vpack.c.b16 %v1757, %v1753
        %v2038 = vpack.c.b16 %v1758, %v1754
        %v2039 = vpack.c.b16 %v1763, %v1759
        %v2040 = vpack.c.b16 %v1764, %v1760
        %v2041 = vpack.c.b16 %v1765, %v1761
        %v2042 = vpack.c.b16 %v1766, %v1762
        %v2043 = vpack.c.b16 %v1771, %v1767
        %v2044 = vpack.c.b16 %v1772, %v1768
        %v2045 = vpack.c.b16 %v1773, %v1769
        %v2046 = vpack.c.b16 %v1774, %v1770
        %v2047 = vpack.c.b16 %v1779, %v1775
        %v2048 = vpack.c.b16 %v1780, %v1776
        %v2049 = vpack.c.b16 %v1781, %v1777
        %v2050 = vpack.c.b16 %v1782, %v1778
        %v2051 = vpack.c.b16 %v1787, %v1783
        %v2052 = vpack.c.b16 %v1788, %v1784
        %v2053 = vpack.c.b16 %v1789, %v1785
        %v2054 = vpack.c.b16 %v1790, %v1786
        %v2055 = vpack.c.b16 %v1795, %v1791
        %v2056 = vpack.c.b16 %v1796, %v1792
        %v2057 = vpack.c.b16 %v1797, %v1793
        %v2058 = vpack.c.b16 %v1798, %v1794
        %v2059 = vpack.c.b16 %v1803, %v1799
        %v2060 = vpack.c.b16 %v1804, %v1800
        %v2061 = vpack.c.b16 %v1805, %v1801
        %v2062 = vpack.c.b16 %v1806, %v1802
        %2319 = vmatprep.subr.bf16.mxu0 %v1836
        %2320 = vmatpush1.bf16.msra.mxu0 %v1835
        %2321 = vmatprep.subr.bf16.mxu0 %v1832
        %2322 = vmatpush1.bf16.msra.mxu0 %v1831
        %2323 = vmatprep.subr.bf16.mxu0 %v1828
        %2324 = vmatpush1.bf16.msra.mxu0 %v1827
        %2325 = vmatprep.subr.bf16.mxu0 %v1824
        %2326 = vmatpush1.bf16.msra.mxu0 %v1823
        %2327 = vmatprep.subr.bf16.mxu0 %v1820
        %2328 = vmatpush1.bf16.msra.mxu0 %v1819
        %2329 = vmatprep.subr.bf16.mxu0 %v1816
        %2330 = vmatpush1.bf16.msra.mxu0 %v1815
        %2331 = vmatprep.subr.bf16.mxu0 %v1812
        %2332 = vmatpush1.bf16.msra.mxu0 %v1811
        %2333 = vmatprep.subr.bf16.mxu0 %v1808
        %2334 = vmatpush1.bf16.msra.mxu0 %v1807
        %2335 = vmatprep.subr.bf16.mxu0 %v1868
        %2336 = vmatpush2.bf16.msra.mxu0 %v1867
        %2337 = vmatprep.subr.bf16.mxu0 %v1864
        %2338 = vmatpush2.bf16.msra.mxu0 %v1863
        %2339 = vmatprep.subr.bf16.mxu0 %v1860
        %2340 = vmatpush2.bf16.msra.mxu0 %v1859
        %2341 = vmatprep.subr.bf16.mxu0 %v1856
        %2342 = vmatpush2.bf16.msra.mxu0 %v1855
        %2343 = vmatprep.subr.bf16.mxu0 %v1852
        %2344 = vmatpush2.bf16.msra.mxu0 %v1851
        %2345 = vmatprep.subr.bf16.mxu0 %v1848
        %2346 = vmatpush2.bf16.msra.mxu0 %v1847
        %2347 = vmatprep.subr.bf16.mxu0 %v1844
        %2348 = vmatpush2.bf16.msra.mxu0 %v1843
        %2349 = vmatprep.subr.bf16.mxu0 %v1840
        %2350 = vmatpush2.bf16.msra.mxu0 %v1839
        %2351 = vmatprep.mubr.bf16.mxu0 %v681
        %2352 = vmatmul.mubr.bf16.gmra.mxu0 %v680
        %v2353 = vpop.f32.mrf.mxu0
        %v2354 = vadd.f32 0.0, %v2353
        %v2355 = vpop.f32.mrf.mxu0
        %v2356 = vadd.f32 0.0, %v2355
        %v2357 = vpop.f32.mrf.mxu0
        %v2358 = vadd.f32 0.0, %v2357
        %v2359 = vpop.f32.mrf.mxu0
        %v2360 = vadd.f32 0.0, %v2359
        %2361 = vdwg.mxu0
        %2362 = vmatprep.subr.bf16.mxu0 %v1900
        %2363 = vmatpush1.bf16.msra.mxu0 %v1899
        %2364 = vmatprep.subr.bf16.mxu0 %v1896
        %2365 = vmatpush1.bf16.msra.mxu0 %v1895
        %2366 = vmatprep.subr.bf16.mxu0 %v1892
        %2367 = vmatpush1.bf16.msra.mxu0 %v1891
        %2368 = vmatprep.subr.bf16.mxu0 %v1888
        %2369 = vmatpush1.bf16.msra.mxu0 %v1887
        %2370 = vmatprep.subr.bf16.mxu0 %v1884
        %2371 = vmatpush1.bf16.msra.mxu0 %v1883
        %2372 = vmatprep.subr.bf16.mxu0 %v1880
        %2373 = vmatpush1.bf16.msra.mxu0 %v1879
        %2374 = vmatprep.subr.bf16.mxu0 %v1876
        %2375 = vmatpush1.bf16.msra.mxu0 %v1875
        %2376 = vmatprep.subr.bf16.mxu0 %v1872
        %2377 = vmatpush1.bf16.msra.mxu0 %v1871
        %2378 = vmatprep.subr.bf16.mxu0 %v1932
        %2379 = vmatpush2.bf16.msra.mxu0 %v1931
        %2380 = vmatprep.subr.bf16.mxu0 %v1928
        %2381 = vmatpush2.bf16.msra.mxu0 %v1927
        %2382 = vmatprep.subr.bf16.mxu0 %v1924
        %2383 = vmatpush2.bf16.msra.mxu0 %v1923
        %2384 = vmatprep.subr.bf16.mxu0 %v1920
        %2385 = vmatpush2.bf16.msra.mxu0 %v1919
        %2386 = vmatprep.subr.bf16.mxu0 %v1916
        %2387 = vmatpush2.bf16.msra.mxu0 %v1915
        %2388 = vmatprep.subr.bf16.mxu0 %v1912
        %2389 = vmatpush2.bf16.msra.mxu0 %v1911
        %2390 = vmatprep.subr.bf16.mxu0 %v1908
        %2391 = vmatpush2.bf16.msra.mxu0 %v1907
        %2392 = vmatprep.subr.bf16.mxu0 %v1904
        %2393 = vmatpush2.bf16.msra.mxu0 %v1903
        %2394 = vmatprep.mubr.bf16.mxu0 %v730
        %2395 = vmatmul.mubr.bf16.gmra.mxu0 %v718
        %v2396 = vpop.f32.mrf.mxu0
        %v2397 = vadd.f32 %v2354, %v2396
        %v2398 = vpop.f32.mrf.mxu0
        %v2399 = vadd.f32 %v2356, %v2398
        %v2400 = vpop.f32.mrf.mxu0
        %v2401 = vadd.f32 %v2358, %v2400
        %v2402 = vpop.f32.mrf.mxu0
        %v2403 = vadd.f32 %v2360, %v2402
        %2404 = vdwg.mxu0
        %2405 = vmatprep.subr.bf16.mxu0 %v1964
        %2406 = vmatpush1.bf16.msra.mxu0 %v1963
        %2407 = vmatprep.subr.bf16.mxu0 %v1960
        %2408 = vmatpush1.bf16.msra.mxu0 %v1959
        %2409 = vmatprep.subr.bf16.mxu0 %v1956
        %2410 = vmatpush1.bf16.msra.mxu0 %v1955
        %2411 = vmatprep.subr.bf16.mxu0 %v1952
        %2412 = vmatpush1.bf16.msra.mxu0 %v1951
        %2413 = vmatprep.subr.bf16.mxu0 %v1948
        %2414 = vmatpush1.bf16.msra.mxu0 %v1947
        %2415 = vmatprep.subr.bf16.mxu0 %v1944
        %2416 = vmatpush1.bf16.msra.mxu0 %v1943
        %2417 = vmatprep.subr.bf16.mxu0 %v1940
        %2418 = vmatpush1.bf16.msra.mxu0 %v1939
        %2419 = vmatprep.subr.bf16.mxu0 %v1936
        %2420 = vmatpush1.bf16.msra.mxu0 %v1935
        %2421 = vmatprep.subr.bf16.mxu0 %v1996
        %2422 = vmatpush2.bf16.msra.mxu0 %v1995
        %2423 = vmatprep.subr.bf16.mxu0 %v1992
        %2424 = vmatpush2.bf16.msra.mxu0 %v1991
        %2425 = vmatprep.subr.bf16.mxu0 %v1988
        %2426 = vmatpush2.bf16.msra.mxu0 %v1987
        %2427 = vmatprep.subr.bf16.mxu0 %v1984
        %2428 = vmatpush2.bf16.msra.mxu0 %v1983
        %2429 = vmatprep.subr.bf16.mxu0 %v1980
        %2430 = vmatpush2.bf16.msra.mxu0 %v1979
        %2431 = vmatprep.subr.bf16.mxu0 %v1976
        %2432 = vmatpush2.bf16.msra.mxu0 %v1975
        %2433 = vmatprep.subr.bf16.mxu0 %v1972
        %2434 = vmatpush2.bf16.msra.mxu0 %v1971
        %2435 = vmatprep.subr.bf16.mxu0 %v1968
        %2436 = vmatpush2.bf16.msra.mxu0 %v1967
        %2437 = vmatprep.mubr.bf16.mxu0 %v743
        %2438 = vmatmul.mubr.bf16.gmra.mxu0 %v740
        %v2439 = vpop.f32.mrf.mxu0
        %v2440 = vadd.f32 %v2397, %v2439
        %v2441 = vpop.f32.mrf.mxu0
        %v2442 = vadd.f32 %v2399, %v2441
        %v2443 = vpop.f32.mrf.mxu0
        %v2444 = vadd.f32 %v2401, %v2443
        %v2445 = vpop.f32.mrf.mxu0
        %v2446 = vadd.f32 %v2403, %v2445
        %2447 = vdwg.mxu0
        %2448 = vmatprep.subr.bf16.mxu0 %v2028
        %2449 = vmatpush1.bf16.msra.mxu0 %v2027
        %2450 = vmatprep.subr.bf16.mxu0 %v2024
        %2451 = vmatpush1.bf16.msra.mxu0 %v2023
        %2452 = vmatprep.subr.bf16.mxu0 %v2020
        %2453 = vmatpush1.bf16.msra.mxu0 %v2019
        %2454 = vmatprep.subr.bf16.mxu0 %v2016
        %2455 = vmatpush1.bf16.msra.mxu0 %v2015
        %2456 = vmatprep.subr.bf16.mxu0 %v2012
        %2457 = vmatpush1.bf16.msra.mxu0 %v2011
        %2458 = vmatprep.subr.bf16.mxu0 %v2008
        %2459 = vmatpush1.bf16.msra.mxu0 %v2007
        %2460 = vmatprep.subr.bf16.mxu0 %v2004
        %2461 = vmatpush1.bf16.msra.mxu0 %v2003
        %2462 = vmatprep.subr.bf16.mxu0 %v2000
        %2463 = vmatpush1.bf16.msra.mxu0 %v1999
        %2464 = vmatprep.subr.bf16.mxu0 %v2060
        %2465 = vmatpush2.bf16.msra.mxu0 %v2059
        %2466 = vmatprep.subr.bf16.mxu0 %v2056
        %2467 = vmatpush2.bf16.msra.mxu0 %v2055
        %2468 = vmatprep.subr.bf16.mxu0 %v2052
        %2469 = vmatpush2.bf16.msra.mxu0 %v2051
        %2470 = vmatprep.subr.bf16.mxu0 %v2048
        %2471 = vmatpush2.bf16.msra.mxu0 %v2047
        %2472 = vmatprep.subr.bf16.mxu0 %v2044
        %2473 = vmatpush2.bf16.msra.mxu0 %v2043
        %2474 = vmatprep.subr.bf16.mxu0 %v2040
        %2475 = vmatpush2.bf16.msra.mxu0 %v2039
        %2476 = vmatprep.subr.bf16.mxu0 %v2036
        %2477 = vmatpush2.bf16.msra.mxu0 %v2035
        %2478 = vmatprep.subr.bf16.mxu0 %v2032
        %2479 = vmatpush2.bf16.msra.mxu0 %v2031
        %2480 = vmatprep.mubr.bf16.mxu0 %v780
        %2481 = vmatmul.mubr.bf16.gmra.mxu0 %v763
        %v2482 = vpop.f32.mrf.mxu0
        %v2483 = vadd.f32 %v2440, %v2482
        %v2484 = vpop.f32.mrf.mxu0
        %v2485 = vadd.f32 %v2442, %v2484
        %v2486 = vpop.f32.mrf.mxu0
        %v2487 = vadd.f32 %v2444, %v2486
        %v2488 = vpop.f32.mrf.mxu0
        %v2489 = vadd.f32 %v2446, %v2488
        %2490 = vdwg.mxu0
        %2491 = vmatprep.subr.bf16.mxu0 %v1838
        %2492 = vmatpush1.bf16.msra.mxu0 %v1837
        %2493 = vmatprep.subr.bf16.mxu0 %v1834
        %2494 = vmatpush1.bf16.msra.mxu0 %v1833
        %2495 = vmatprep.subr.bf16.mxu0 %v1830
        %2496 = vmatpush1.bf16.msra.mxu0 %v1829
        %2497 = vmatprep.subr.bf16.mxu0 %v1826
        %2498 = vmatpush1.bf16.msra.mxu0 %v1825
        %2499 = vmatprep.subr.bf16.mxu0 %v1822
        %2500 = vmatpush1.bf16.msra.mxu0 %v1821
        %2501 = vmatprep.subr.bf16.mxu0 %v1818
        %2502 = vmatpush1.bf16.msra.mxu0 %v1817
        %2503 = vmatprep.subr.bf16.mxu0 %v1814
        %2504 = vmatpush1.bf16.msra.mxu0 %v1813
        %2505 = vmatprep.subr.bf16.mxu0 %v1810
        %2506 = vmatpush1.bf16.msra.mxu0 %v1809
        %2507 = vmatprep.subr.bf16.mxu0 %v1870
        %2508 = vmatpush2.bf16.msra.mxu0 %v1869
        %2509 = vmatprep.subr.bf16.mxu0 %v1866
        %2510 = vmatpush2.bf16.msra.mxu0 %v1865
        %2511 = vmatprep.subr.bf16.mxu0 %v1862
        %2512 = vmatpush2.bf16.msra.mxu0 %v1861
        %2513 = vmatprep.subr.bf16.mxu0 %v1858
        %2514 = vmatpush2.bf16.msra.mxu0 %v1857
        %2515 = vmatprep.subr.bf16.mxu0 %v1854
        %2516 = vmatpush2.bf16.msra.mxu0 %v1853
        %2517 = vmatprep.subr.bf16.mxu0 %v1850
        %2518 = vmatpush2.bf16.msra.mxu0 %v1849
        %2519 = vmatprep.subr.bf16.mxu0 %v1846
        %2520 = vmatpush2.bf16.msra.mxu0 %v1845
        %2521 = vmatprep.subr.bf16.mxu0 %v1842
        %2522 = vmatpush2.bf16.msra.mxu0 %v1841
        %2523 = vmatprep.mubr.bf16.mxu0 %v681
        %2524 = vmatmul.mubr.bf16.gmra.mxu0 %v680
        %v2525 = vpop.f32.mrf.mxu0
        %v2526 = vadd.f32 0.0, %v2525
        %v2527 = vpop.f32.mrf.mxu0
        %v2528 = vadd.f32 0.0, %v2527
        %v2529 = vpop.f32.mrf.mxu0
        %v2530 = vadd.f32 0.0, %v2529
        %v2531 = vpop.f32.mrf.mxu0
        %v2532 = vadd.f32 0.0, %v2531
        %2533 = vdwg.mxu0
        %2534 = vmatprep.subr.bf16.mxu0 %v1902
        %2535 = vmatpush1.bf16.msra.mxu0 %v1901
        %2536 = vmatprep.subr.bf16.mxu0 %v1898
        %2537 = vmatpush1.bf16.msra.mxu0 %v1897
        %2538 = vmatprep.subr.bf16.mxu0 %v1894
        %2539 = vmatpush1.bf16.msra.mxu0 %v1893
        %2540 = vmatprep.subr.bf16.mxu0 %v1890
        %2541 = vmatpush1.bf16.msra.mxu0 %v1889
        %2542 = vmatprep.subr.bf16.mxu0 %v1886
        %2543 = vmatpush1.bf16.msra.mxu0 %v1885
        %2544 = vmatprep.subr.bf16.mxu0 %v1882
        %2545 = vmatpush1.bf16.msra.mxu0 %v1881
        %2546 = vmatprep.subr.bf16.mxu0 %v1878
        %2547 = vmatpush1.bf16.msra.mxu0 %v1877
        %2548 = vmatprep.subr.bf16.mxu0 %v1874
        %2549 = vmatpush1.bf16.msra.mxu0 %v1873
        %2550 = vmatprep.subr.bf16.mxu0 %v1934
        %2551 = vmatpush2.bf16.msra.mxu0 %v1933
        %2552 = vmatprep.subr.bf16.mxu0 %v1930
        %2553 = vmatpush2.bf16.msra.mxu0 %v1929
        %2554 = vmatprep.subr.bf16.mxu0 %v1926
        %2555 = vmatpush2.bf16.msra.mxu0 %v1925
        %2556 = vmatprep.subr.bf16.mxu0 %v1922
        %2557 = vmatpush2.bf16.msra.mxu0 %v1921
        %2558 = vmatprep.subr.bf16.mxu0 %v1918
        %2559 = vmatpush2.bf16.msra.mxu0 %v1917
        %2560 = vmatprep.subr.bf16.mxu0 %v1914
        %2561 = vmatpush2.bf16.msra.mxu0 %v1913
        %2562 = vmatprep.subr.bf16.mxu0 %v1910
        %2563 = vmatpush2.bf16.msra.mxu0 %v1909
        %2564 = vmatprep.subr.bf16.mxu0 %v1906
        %2565 = vmatpush2.bf16.msra.mxu0 %v1905
        %2566 = vmatprep.mubr.bf16.mxu0 %v730
        %2567 = vmatmul.mubr.bf16.gmra.mxu0 %v718
        %v2568 = vpop.f32.mrf.mxu0
        %v2569 = vadd.f32 %v2526, %v2568
        %v2570 = vpop.f32.mrf.mxu0
        %v2571 = vadd.f32 %v2528, %v2570
        %v2572 = vpop.f32.mrf.mxu0
        %v2573 = vadd.f32 %v2530, %v2572
        %v2574 = vpop.f32.mrf.mxu0
        %v2575 = vadd.f32 %v2532, %v2574
        %2576 = vdwg.mxu0
        %2577 = vmatprep.subr.bf16.mxu0 %v1966
        %2578 = vmatpush1.bf16.msra.mxu0 %v1965
        %2579 = vmatprep.subr.bf16.mxu0 %v1962
        %2580 = vmatpush1.bf16.msra.mxu0 %v1961
        %2581 = vmatprep.subr.bf16.mxu0 %v1958
        %2582 = vmatpush1.bf16.msra.mxu0 %v1957
        %2583 = vmatprep.subr.bf16.mxu0 %v1954
        %2584 = vmatpush1.bf16.msra.mxu0 %v1953
        %2585 = vmatprep.subr.bf16.mxu0 %v1950
        %2586 = vmatpush1.bf16.msra.mxu0 %v1949
        %2587 = vmatprep.subr.bf16.mxu0 %v1946
        %2588 = vmatpush1.bf16.msra.mxu0 %v1945
        %2589 = vmatprep.subr.bf16.mxu0 %v1942
        %2590 = vmatpush1.bf16.msra.mxu0 %v1941
        %2591 = vmatprep.subr.bf16.mxu0 %v1938
        %2592 = vmatpush1.bf16.msra.mxu0 %v1937
        %2593 = vmatprep.subr.bf16.mxu0 %v1998
        %2594 = vmatpush2.bf16.msra.mxu0 %v1997
        %2595 = vmatprep.subr.bf16.mxu0 %v1994
        %2596 = vmatpush2.bf16.msra.mxu0 %v1993
        %2597 = vmatprep.subr.bf16.mxu0 %v1990
        %2598 = vmatpush2.bf16.msra.mxu0 %v1989
        %2599 = vmatprep.subr.bf16.mxu0 %v1986
        %2600 = vmatpush2.bf16.msra.mxu0 %v1985
        %2601 = vmatprep.subr.bf16.mxu0 %v1982
        %2602 = vmatpush2.bf16.msra.mxu0 %v1981
        %2603 = vmatprep.subr.bf16.mxu0 %v1978
        %2604 = vmatpush2.bf16.msra.mxu0 %v1977
        %2605 = vmatprep.subr.bf16.mxu0 %v1974
        %2606 = vmatpush2.bf16.msra.mxu0 %v1973
        %2607 = vmatprep.subr.bf16.mxu0 %v1970
        %2608 = vmatpush2.bf16.msra.mxu0 %v1969
        %2609 = vmatprep.mubr.bf16.mxu0 %v743
        %2610 = vmatmul.mubr.bf16.gmra.mxu0 %v740
        %v2611 = vpop.f32.mrf.mxu0
        %v2612 = vadd.f32 %v2569, %v2611
        %v2613 = vpop.f32.mrf.mxu0
        %v2614 = vadd.f32 %v2571, %v2613
        %v2615 = vpop.f32.mrf.mxu0
        %v2616 = vadd.f32 %v2573, %v2615
        %v2617 = vpop.f32.mrf.mxu0
        %v2618 = vadd.f32 %v2575, %v2617
        %2619 = vdwg.mxu0
        %2620 = vmatprep.subr.bf16.mxu0 %v2030
        %2621 = vmatpush1.bf16.msra.mxu0 %v2029
        %2622 = vmatprep.subr.bf16.mxu0 %v2026
        %2623 = vmatpush1.bf16.msra.mxu0 %v2025
        %2624 = vmatprep.subr.bf16.mxu0 %v2022
        %2625 = vmatpush1.bf16.msra.mxu0 %v2021
        %2626 = vmatprep.subr.bf16.mxu0 %v2018
        %2627 = vmatpush1.bf16.msra.mxu0 %v2017
        %2628 = vmatprep.subr.bf16.mxu0 %v2014
        %2629 = vmatpush1.bf16.msra.mxu0 %v2013
        %2630 = vmatprep.subr.bf16.mxu0 %v2010
        %2631 = vmatpush1.bf16.msra.mxu0 %v2009
        %2632 = vmatprep.subr.bf16.mxu0 %v2006
        %2633 = vmatpush1.bf16.msra.mxu0 %v2005
        %2634 = vmatprep.subr.bf16.mxu0 %v2002
        %2635 = vmatpush1.bf16.msra.mxu0 %v2001
        %2636 = vmatprep.subr.bf16.mxu0 %v2062
        %2637 = vmatpush2.bf16.msra.mxu0 %v2061
        %2638 = vmatprep.subr.bf16.mxu0 %v2058
        %2639 = vmatpush2.bf16.msra.mxu0 %v2057
        %2640 = vmatprep.subr.bf16.mxu0 %v2054
        %2641 = vmatpush2.bf16.msra.mxu0 %v2053
        %2642 = vmatprep.subr.bf16.mxu0 %v2050
        %2643 = vmatpush2.bf16.msra.mxu0 %v2049
        %2644 = vmatprep.subr.bf16.mxu0 %v2046
        %2645 = vmatpush2.bf16.msra.mxu0 %v2045
        %2646 = vmatprep.subr.bf16.mxu0 %v2042
        %2647 = vmatpush2.bf16.msra.mxu0 %v2041
        %2648 = vmatprep.subr.bf16.mxu0 %v2038
        %2649 = vmatpush2.bf16.msra.mxu0 %v2037
        %2650 = vmatprep.subr.bf16.mxu0 %v2034
        %2651 = vmatpush2.bf16.msra.mxu0 %v2033
        %2652 = vmatprep.mubr.bf16.mxu0 %v780
        %2653 = vmatmul.mubr.bf16.gmra.mxu0 %v763
        %v2654 = vpop.f32.mrf.mxu0
        %v2655 = vadd.f32 %v2612, %v2654
        %v2656 = vpop.f32.mrf.mxu0
        %v2657 = vadd.f32 %v2614, %v2656
        %v2658 = vpop.f32.mrf.mxu0
        %v2659 = vadd.f32 %v2616, %v2658
        %v2660 = vpop.f32.mrf.mxu0
        %v2661 = vadd.f32 %v2618, %v2660
        %2662 = vdwg.mxu0
        %v2663 = vld [vmem:[%s665] sm:$0xff]
        %v2664 = vld [vmem:[%s665 + $0x8] sm:$0xff]
        %v2665 = vld [vmem:[%s665 + $0x10] sm:$0xff]
        %v2666 = vld [vmem:[%s6] sm:$0xff]
        %v2667 = vld [vmem:[%s6 + $0x8] sm:$0xff]
        %v2668 = vld [vmem:[%s6 + $0x10] sm:$0xff]
        %v2669 = vld [vmem:[%s6 + $0x18] sm:$0xff]
        %v2670 = vld [vmem:[%s6 + $0x20] sm:$0xff]
        %v2671 = vld [vmem:[%s6 + $0x28] sm:$0xff]
        %v2672 = vld [vmem:[%s6 + $0x30] sm:$0xff]
        %v2673 = vld [vmem:[%s6 + $0x38] sm:$0xff]
        %v2674 = vld [vmem:[%s7] sm:$0x1]
        %v2676 = vlaneseq
        %v2677 = vshrl.u32 %v2676, 7
        %v2678 = vsub.s32 0, %v2677
        %v2679 = vrot.slane %v2674, %v2678
        %vm2681 = vcmask 523264
        %v2683 = vsel %vm2681, %v2663, 0
        %v2686 = vsel %vm2681, %v2664, 0
        %v2689 = vsel %vm2681, %v2665, 0
        %2691 = vmatprep.subr.mxu0 0.0
        %2692 = vmatpush1.msra.mxu0 0.0
        %2693 = vmatprep.subr.mxu0 0.0
        %2694 = vmatpush1.msra.mxu0 0.0
        %2695 = vmatprep.subr.mxu0 0.0
        %2696 = vmatpush1.msra.mxu0 0.0
        %2697 = vmatprep.subr.mxu0 0.0
        %2698 = vmatpush1.msra.mxu0 0.0
        %2699 = vmatprep.subr.mxu0 0.0
        %2700 = vmatpush1.msra.mxu0 0.0
        %2701 = vmatprep.subr.mxu0 0.0
        %2702 = vmatpush1.msra.mxu0 0.0
        %2703 = vmatprep.subr.mxu0 0.0
        %2704 = vmatpush1.msra.mxu0 0.0
        %2705 = vmatprep.subr.mxu0 0.0
        %2706 = vmatpush1.msra.mxu0 0.0
        %2707 = vmatprep.subr.mxu0 0.0
        %2708 = vmatpush1.msra.mxu0 %v2673
        %2709 = vmatprep.subr.mxu0 0.0
        %2710 = vmatpush1.msra.mxu0 %v2672
        %2711 = vmatprep.subr.mxu0 0.0
        %2712 = vmatpush1.msra.mxu0 %v2671
        %2713 = vmatprep.subr.mxu0 0.0
        %2714 = vmatpush1.msra.mxu0 %v2670
        %2715 = vmatprep.subr.mxu0 0.0
        %2716 = vmatpush1.msra.mxu0 %v2669
        %2717 = vmatprep.subr.mxu0 0.0
        %2718 = vmatpush1.msra.mxu0 %v2668
        %2719 = vmatprep.subr.mxu0 0.0
        %2720 = vmatpush1.msra.mxu0 %v2667
        %2721 = vmatprep.subr.mxu0 0.0
        %2722 = vmatpush1.msra.mxu0 %v2666
        %2723 = vmatprep.subr.mxu0 0.0
        %2724 = vmatpush2.msra.mxu0 0.0
        %2725 = vmatprep.subr.mxu0 0.0
        %2726 = vmatpush2.msra.mxu0 0.0
        %2727 = vmatprep.subr.mxu0 0.0
        %2728 = vmatpush2.msra.mxu0 0.0
        %2729 = vmatprep.subr.mxu0 0.0
        %2730 = vmatpush2.msra.mxu0 0.0
        %2731 = vmatprep.subr.mxu0 0.0
        %2732 = vmatpush2.msra.mxu0 0.0
        %2733 = vmatprep.subr.mxu0 0.0
        %2734 = vmatpush2.msra.mxu0 0.0
        %2735 = vmatprep.subr.mxu0 0.0
        %2736 = vmatpush2.msra.mxu0 0.0
        %2737 = vmatprep.subr.mxu0 0.0
        %2738 = vmatpush2.msra.mxu0 0.0
        %2739 = vmatprep.subr.mxu0 0.0
        %2740 = vmatpush2.msra.mxu0 0.0
        %2741 = vmatprep.subr.mxu0 0.0
        %2742 = vmatpush2.msra.mxu0 0.0
        %2743 = vmatprep.subr.mxu0 0.0
        %2744 = vmatpush2.msra.mxu0 0.0
        %2745 = vmatprep.subr.mxu0 0.0
        %2746 = vmatpush2.msra.mxu0 0.0
        %2747 = vmatprep.subr.mxu0 0.0
        %2748 = vmatpush2.msra.mxu0 0.0
        %2749 = vmatprep.subr.mxu0 0.0
        %2750 = vmatpush2.msra.mxu0 0.0
        %2751 = vmatprep.subr.mxu0 0.0
        %2752 = vmatpush2.msra.mxu0 0.0
        %2753 = vmatprep.subr.mxu0 0.0
        %2754 = vmatpush2.msra.mxu0 0.0
        %2755 = vmatprep.mubr.f32.mxu0 0.0
        %2756 = vmatmul.mubr.f32.gmra.mxu0 %v2683
        %v2757 = vpop.f32.mrf.mxu0
        %v2758 = vadd.f32 %v2679, %v2757
        %v2759 = vpop.f32.mrf.mxu0
        %2760 = vmatprep.mubr.f32.mxu0 0.0
        %2761 = vmatmul.mubr.f32.gmra.mxu0 %v2686
        %v2762 = vpop.f32.mrf.mxu0
        %v2763 = vadd.f32 %v2679, %v2762
        %v2764 = vpop.f32.mrf.mxu0
        %2765 = vmatprep.mubr.f32.mxu0 0.0
        %2766 = vmatmul.mubr.f32.gmra.mxu0 %v2689
        %v2767 = vpop.f32.mrf.mxu0
        %v2768 = vadd.f32 %v2679, %v2767
        %v2769 = vpop.f32.mrf.mxu0
        %2770 = vdwg.mxu0
        %v2771 = vld [vmem:[%s8] sm:$0xff]
        %v2772 = vld [vmem:[%s8 + $0x8] sm:$0xff]
        %v2773 = vld [vmem:[%s8 + $0x10] sm:$0xff]
        %v2774 = vld [vmem:[%s8 + $0x18] sm:$0xff]
        %v2775 = vld [vmem:[%s9] sm:$0x1]
        %v2777 = vlaneseq
        %v2778 = vshrl.u32 %v2777, 7
        %v2779 = vsub.s32 0, %v2778
        %v2780 = vrot.slane %v2775, %v2779
        %vm2782 = vcmask 261120
        %v2784 = vsel %vm2782, %v2758, 0
        %v2787 = vsel %vm2782, %v2763, 0
        %v2790 = vsel %vm2782, %v2768, 0
        %2792 = vmatprep.subr.mxu0 0.0
        %2793 = vmatpush1.msra.mxu0 0.0
        %2794 = vmatprep.subr.mxu0 0.0
        %2795 = vmatpush1.msra.mxu0 0.0
        %2796 = vmatprep.subr.mxu0 0.0
        %2797 = vmatpush1.msra.mxu0 0.0
        %2798 = vmatprep.subr.mxu0 0.0
        %2799 = vmatpush1.msra.mxu0 0.0
        %2800 = vmatprep.subr.mxu0 0.0
        %2801 = vmatpush1.msra.mxu0 0.0
        %2802 = vmatprep.subr.mxu0 0.0
        %2803 = vmatpush1.msra.mxu0 0.0
        %2804 = vmatprep.subr.mxu0 0.0
        %2805 = vmatpush1.msra.mxu0 0.0
        %2806 = vmatprep.subr.mxu0 0.0
        %2807 = vmatpush1.msra.mxu0 0.0
        %2808 = vmatprep.subr.mxu0 0.0
        %2809 = vmatpush1.msra.mxu0 0.0
        %2810 = vmatprep.subr.mxu0 0.0
        %2811 = vmatpush1.msra.mxu0 0.0
        %2812 = vmatprep.subr.mxu0 0.0
        %2813 = vmatpush1.msra.mxu0 0.0
        %2814 = vmatprep.subr.mxu0 0.0
        %2815 = vmatpush1.msra.mxu0 0.0
        %2816 = vmatprep.subr.mxu0 0.0
        %2817 = vmatpush1.msra.mxu0 %v2774
        %2818 = vmatprep.subr.mxu0 0.0
        %2819 = vmatpush1.msra.mxu0 %v2773
        %2820 = vmatprep.subr.mxu0 0.0
        %2821 = vmatpush1.msra.mxu0 %v2772
        %2822 = vmatprep.subr.mxu0 0.0
        %2823 = vmatpush1.msra.mxu0 %v2771
        %2824 = vmatprep.subr.mxu0 0.0
        %2825 = vmatpush2.msra.mxu0 0.0
        %2826 = vmatprep.subr.mxu0 0.0
        %2827 = vmatpush2.msra.mxu0 0.0
        %2828 = vmatprep.subr.mxu0 0.0
        %2829 = vmatpush2.msra.mxu0 0.0
        %2830 = vmatprep.subr.mxu0 0.0
        %2831 = vmatpush2.msra.mxu0 0.0
        %2832 = vmatprep.subr.mxu0 0.0
        %2833 = vmatpush2.msra.mxu0 0.0
        %2834 = vmatprep.subr.mxu0 0.0
        %2835 = vmatpush2.msra.mxu0 0.0
        %2836 = vmatprep.subr.mxu0 0.0
        %2837 = vmatpush2.msra.mxu0 0.0
        %2838 = vmatprep.subr.mxu0 0.0
        %2839 = vmatpush2.msra.mxu0 0.0
        %2840 = vmatprep.subr.mxu0 0.0
        %2841 = vmatpush2.msra.mxu0 0.0
        %2842 = vmatprep.subr.mxu0 0.0
        %2843 = vmatpush2.msra.mxu0 0.0
        %2844 = vmatprep.subr.mxu0 0.0
        %2845 = vmatpush2.msra.mxu0 0.0
        %2846 = vmatprep.subr.mxu0 0.0
        %2847 = vmatpush2.msra.mxu0 0.0
        %2848 = vmatprep.subr.mxu0 0.0
        %2849 = vmatpush2.msra.mxu0 0.0
        %2850 = vmatprep.subr.mxu0 0.0
        %2851 = vmatpush2.msra.mxu0 0.0
        %2852 = vmatprep.subr.mxu0 0.0
        %2853 = vmatpush2.msra.mxu0 0.0
        %2854 = vmatprep.subr.mxu0 0.0
        %2855 = vmatpush2.msra.mxu0 0.0
        %2856 = vmatprep.mubr.f32.mxu0 0.0
        %2857 = vmatmul.mubr.f32.gmra.mxu0 %v2784
        %v2858 = vpop.f32.mrf.mxu0
        %v2859 = vadd.f32 %v2780, %v2858
        %v2860 = vpop.f32.mrf.mxu0
        %2861 = vmatprep.mubr.f32.mxu0 0.0
        %2862 = vmatmul.mubr.f32.gmra.mxu0 %v2787
        %v2863 = vpop.f32.mrf.mxu0
        %v2864 = vadd.f32 %v2780, %v2863
        %v2865 = vpop.f32.mrf.mxu0
        %2866 = vmatprep.mubr.f32.mxu0 0.0
        %2867 = vmatmul.mubr.f32.gmra.mxu0 %v2790
        %v2868 = vpop.f32.mrf.mxu0
        %v2869 = vadd.f32 %v2780, %v2868
        %v2870 = vpop.f32.mrf.mxu0
        %2871 = vdwg.mxu0
        %vm2872 = vcmask 64512
        %v2873 = vsel %vm2872, %v2859, -inf
        %v2874 = vsel %vm2872, %v2864, -inf
        %v2875 = vsel %vm2872, %v2869, -inf
        %v2876 = vmax.f32 %v2873, %v2874
        %v2877 = vmax.f32 %v2876, %v2875
        %v2878 = vrot.slane %v2877, 4
        %v2879 = vmax.f32 %v2877, %v2878
        %v2880 = vrot.slane %v2879, 2
        %v2881 = vmax.f32 %v2879, %v2880
        %v2882 = vrot.slane %v2881, 1
        %v2883 = vmax.f32 %v2881, %v2882
        %v2884 = vsub.f32 %v2859, %v2883
        %v2885 = vsub.f32 %v2864, %v2883
        %v2886 = vsub.f32 %v2869, %v2883
        %v2887 = vmul.f32 %v2884, 1.442695
        %v2888 = vpow.pop %v2887
        %v2889 = vmul.f32 %v2885, 1.442695
        %v2890 = vpow.pop %v2889
        %v2891 = vmul.f32 %v2886, 1.442695
        %v2892 = vpow.pop %v2891
        %v2893 = vsel %vm2872, %v2888, 0.0
        %v2894 = vsel %vm2872, %v2890, 0.0
        %v2895 = vadd.f32 %v2893, %v2894
        %v2896 = vsel %vm2872, %v2892, 0.0
        %v2897 = vadd.f32 %v2895, %v2896
        %v2898 = vrot.slane %v2897, 4
        %v2899 = vadd.f32 %v2897, %v2898
        %v2900 = vrot.slane %v2899, 2
        %v2901 = vadd.f32 %v2899, %v2900
        %v2902 = vrot.slane %v2901, 1
        %v2903 = vadd.f32 %v2901, %v2902
        %v2904 = vrcp.pop %v2903
        %v2905 = vmul.f32 %v2888, %v2904
        %v2906 = vmul.f32 %v2890, %v2904
        %v2907 = vmul.f32 %v2892, %v2904
        %2908 = vxpose.xlu0.b32.start [1/16] %v2905, 128
        %2909 = vxpose.xlu0.b32.cont [2/16] %v2906, 128
        %2910 = vxpose.xlu0.b32.cont [3/16] %v2907, 128
        %2911 = vxpose.xlu0.b32.cont [4/16] 0.0, 128
        %2912 = vxpose.xlu0.b32.cont [5/16] 0.0, 128
        %2913 = vxpose.xlu0.b32.cont [6/16] 0.0, 128
        %2914 = vxpose.xlu0.b32.cont [7/16] 0.0, 128
        %2915 = vxpose.xlu0.b32.cont [8/16] 0.0, 128
        %2916 = vxpose.xlu0.b32.cont [9/16] 0.0, 128
        %2917 = vxpose.xlu0.b32.cont [10/16] 0.0, 128
        %2918 = vxpose.xlu0.b32.cont [11/16] 0.0, 128
        %2919 = vxpose.xlu0.b32.cont [12/16] 0.0, 128
        %2920 = vxpose.xlu0.b32.cont [13/16] 0.0, 128
        %2921 = vxpose.xlu0.b32.cont [14/16] 0.0, 128
        %2922 = vxpose.xlu0.b32.cont [15/16] 0.0, 128
        %2923 = vxpose.xlu0.b32.end [16/16] 0.0, 128
        %v2924 = vpop.trf.xlu0
        %v2925 = vpop.trf.xlu0
        %v2926 = vpop.trf.xlu0
        %v2927 = vpop.trf.xlu0
        %v2928 = vpop.trf.xlu0
        %v2929 = vpop.trf.xlu0
        %v2930 = vpop.trf.xlu0
        %v2931 = vpop.trf.xlu0
        %v2932 = vpop.trf.xlu0
        %v2933 = vpop.trf.xlu0
        %v2934 = vpop.trf.xlu0
        %v2935 = vpop.trf.xlu0
        %v2936 = vpop.trf.xlu0
        %v2937 = vpop.trf.xlu0
        %v2938 = vpop.trf.xlu0
        %v2939 = vpop.trf.xlu0
        %2940 = vrot.lane.b32.xlu0 %v2758, 96
        %v2941 = vpop.permute.xlu0 %2940
        %2942 = vrot.lane.b32.xlu0 %v2763, 96
        %v2943 = vpop.permute.xlu0 %2942
        %2944 = vrot.lane.b32.xlu0 %v2768, 96
        %v2945 = vpop.permute.xlu0 %2944
        %vm2949 = vcmask 195584
        %v2951 = vsel %vm2949, %v2924, 0
        %2953 = vmatprep.subr.mxu0 0.0
        %2954 = vmatpush1.msra.mxu0 0.0
        %2955 = vmatprep.subr.mxu0 0.0
        %2956 = vmatpush1.msra.mxu0 0.0
        %2957 = vmatprep.subr.mxu0 0.0
        %2958 = vmatpush1.msra.mxu0 0.0
        %2959 = vmatprep.subr.mxu0 0.0
        %2960 = vmatpush1.msra.mxu0 0.0
        %2961 = vmatprep.subr.mxu0 0.0
        %2962 = vmatpush1.msra.mxu0 0.0
        %2963 = vmatprep.subr.mxu0 0.0
        %2964 = vmatpush1.msra.mxu0 0.0
        %2965 = vmatprep.subr.mxu0 0.0
        %2966 = vmatpush1.msra.mxu0 0.0
        %2967 = vmatprep.subr.mxu0 0.0
        %2968 = vmatpush1.msra.mxu0 0.0
        %2969 = vmatprep.subr.mxu0 0.0
        %2970 = vmatpush1.msra.mxu0 0.0
        %2971 = vmatprep.subr.mxu0 0.0
        %2972 = vmatpush1.msra.mxu0 0.0
        %2973 = vmatprep.subr.mxu0 0.0
        %2974 = vmatpush1.msra.mxu0 0.0
        %2975 = vmatprep.subr.mxu0 0.0
        %2976 = vmatpush1.msra.mxu0 0.0
        %2977 = vmatprep.subr.mxu0 0.0
        %2978 = vmatpush1.msra.mxu0 0.0
        %2979 = vmatprep.subr.mxu0 0.0
        %2980 = vmatpush1.msra.mxu0 %v2945
        %2981 = vmatprep.subr.mxu0 0.0
        %2982 = vmatpush1.msra.mxu0 %v2943
        %2983 = vmatprep.subr.mxu0 0.0
        %2984 = vmatpush1.msra.mxu0 %v2941
        %2985 = vmatprep.subr.mxu0 0.0
        %2986 = vmatpush2.msra.mxu0 0.0
        %2987 = vmatprep.subr.mxu0 0.0
        %2988 = vmatpush2.msra.mxu0 0.0
        %2989 = vmatprep.subr.mxu0 0.0
        %2990 = vmatpush2.msra.mxu0 0.0
        %2991 = vmatprep.subr.mxu0 0.0
        %2992 = vmatpush2.msra.mxu0 0.0
        %2993 = vmatprep.subr.mxu0 0.0
        %2994 = vmatpush2.msra.mxu0 0.0
        %2995 = vmatprep.subr.mxu0 0.0
        %2996 = vmatpush2.msra.mxu0 0.0
        %2997 = vmatprep.subr.mxu0 0.0
        %2998 = vmatpush2.msra.mxu0 0.0
        %2999 = vmatprep.subr.mxu0 0.0
        %3000 = vmatpush2.msra.mxu0 0.0
        %3001 = vmatprep.subr.mxu0 0.0
        %3002 = vmatpush2.msra.mxu0 0.0
        %3003 = vmatprep.subr.mxu0 0.0
        %3004 = vmatpush2.msra.mxu0 0.0
        %3005 = vmatprep.subr.mxu0 0.0
        %3006 = vmatpush2.msra.mxu0 0.0
        %3007 = vmatprep.subr.mxu0 0.0
        %3008 = vmatpush2.msra.mxu0 0.0
        %3009 = vmatprep.subr.mxu0 0.0
        %3010 = vmatpush2.msra.mxu0 0.0
        %3011 = vmatprep.subr.mxu0 0.0
        %3012 = vmatpush2.msra.mxu0 0.0
        %3013 = vmatprep.subr.mxu0 0.0
        %3014 = vmatpush2.msra.mxu0 0.0
        %3015 = vmatprep.subr.mxu0 0.0
        %3016 = vmatpush2.msra.mxu0 0.0
        %3017 = vmatprep.mubr.f32.mxu0 0.0
        %3018 = vmatmul.mubr.f32.gmra.mxu0 %v2951
        %v3019 = vpop.f32.mrf.mxu0
        %v3020 = vadd.f32 0.0, %v3019
        %v3021 = vpop.f32.mrf.mxu0
        %3022 = vdwg.mxu0
        %v3024 = vrot.slane %v3020, 1
        %3025 = vrot.lane.b32.xlu0 %v3024, 32
        %v3026 = vpop.permute.xlu0 %3025
        %v3028 = vrot.slane %v3020, 2
        %3029 = vrot.lane.b32.xlu0 %v3028, 64
        %v3030 = vpop.permute.xlu0 %3029
        %v3032 = vrot.slane %v3020, 3
        %3033 = vrot.lane.b32.xlu0 %v3032, 96
        %v3034 = vpop.permute.xlu0 %3033
        %v3036 = vrot.slane %v3020, 4
        %v3038 = vrot.slane %v3020, 5
        %3039 = vrot.lane.b32.xlu0 %v3038, 32
        %v3040 = vpop.permute.xlu0 %3039
        %v3042 = vrot.slane %v3020, 6
        %3043 = vrot.lane.b32.xlu0 %v3042, 64
        %v3044 = vpop.permute.xlu0 %3043
        %v3046 = vrot.slane %v3020, 7
        %3047 = vrot.lane.b32.xlu0 %v3046, 96
        %v3048 = vpop.permute.xlu0 %3047
        %v3050 = vsel %vm2782, %v3020, %v3026
        %v3051 = vsel %vm2681, %v3050, %v3030
        %vm3052 = vcmask 785408
        %v3053 = vsel %vm3052, %v3051, %v3034
        %v3054 = vsel %vm2782, %v3036, %v3040
        %v3055 = vsel %vm2681, %v3054, %v3044
        %v3056 = vsel %vm3052, %v3055, %v3048
        %v3057 = vld [vmem:[%s10] sm:$0xff]
        %v3058 = vld [vmem:[%s10 + $0x8] sm:$0xff]
        %v3059 = vld [vmem:[%s10 + $0x10] sm:$0xff]
        %v3060 = vld [vmem:[%s10 + $0x18] sm:$0xff]
        %v3061 = vld [vmem:[%s10 + $0x20] sm:$0xff]
        %v3062 = vld [vmem:[%s10 + $0x28] sm:$0xff]
        %v3063 = vld [vmem:[%s10 + $0x30] sm:$0xff]
        %v3064 = vld [vmem:[%s10 + $0x38] sm:$0xff]
        %v3065 = vld [vmem:[%s10 + $0x40] sm:$0xff]
        %v3066 = vld [vmem:[%s10 + $0x48] sm:$0xff]
        %v3067 = vld [vmem:[%s10 + $0x50] sm:$0xff]
        %v3068 = vld [vmem:[%s10 + $0x58] sm:$0xff]
        %v3069 = vld [vmem:[%s10 + $0x60] sm:$0xff]
        %v3070 = vld [vmem:[%s10 + $0x68] sm:$0xff]
        %v3071 = vld [vmem:[%s10 + $0x70] sm:$0xff]
        %v3072 = vld [vmem:[%s10 + $0x78] sm:$0xff]
        %v3073 = vld [vmem:[%s10 + $0x80] sm:$0xff]
        %v3074 = vld [vmem:[%s10 + $0x88] sm:$0xff]
        %v3075 = vld [vmem:[%s10 + $0x90] sm:$0xff]
        %v3076 = vld [vmem:[%s10 + $0x98] sm:$0xff]
        %v3077 = vld [vmem:[%s10 + $0xa0] sm:$0xff]
        %v3078 = vld [vmem:[%s10 + $0xa8] sm:$0xff]
        %v3079 = vld [vmem:[%s10 + $0xb0] sm:$0xff]
        %v3080 = vld [vmem:[%s10 + $0xb8] sm:$0xff]
        %v3081 = vld [vmem:[%s10 + $0xc0] sm:$0xff]
        %v3082 = vld [vmem:[%s10 + $0xc8] sm:$0xff]
        %v3083 = vld [vmem:[%s10 + $0xd0] sm:$0xff]
        %v3084 = vld [vmem:[%s10 + $0xd8] sm:$0xff]
        %v3085 = vld [vmem:[%s10 + $0xe0] sm:$0xff]
        %v3086 = vld [vmem:[%s10 + $0xe8] sm:$0xff]
        %v3087 = vld [vmem:[%s10 + $0xf0] sm:$0xff]
        %v3088 = vld [vmem:[%s10 + $0xf8] sm:$0xff]
        %v3089 = vld [vmem:[%s11] sm:$0x1]
        %3090 = vmatprep.subr.mxu0 0.0
        %3091 = vmatpush1.msra.mxu0 %v3072
        %3092 = vmatprep.subr.mxu0 0.0
        %3093 = vmatpush1.msra.mxu0 %v3071
        %3094 = vmatprep.subr.mxu0 0.0
        %3095 = vmatpush1.msra.mxu0 %v3070
        %3096 = vmatprep.subr.mxu0 0.0
        %3097 = vmatpush1.msra.mxu0 %v3069
        %3098 = vmatprep.subr.mxu0 0.0
        %3099 = vmatpush1.msra.mxu0 %v3068
        %3100 = vmatprep.subr.mxu0 0.0
        %3101 = vmatpush1.msra.mxu0 %v3067
        %3102 = vmatprep.subr.mxu0 0.0
        %3103 = vmatpush1.msra.mxu0 %v3066
        %3104 = vmatprep.subr.mxu0 0.0
        %3105 = vmatpush1.msra.mxu0 %v3065
        %3106 = vmatprep.subr.mxu0 0.0
        %3107 = vmatpush1.msra.mxu0 %v3064
        %3108 = vmatprep.subr.mxu0 0.0
        %3109 = vmatpush1.msra.mxu0 %v3063
        %3110 = vmatprep.subr.mxu0 0.0
        %3111 = vmatpush1.msra.mxu0 %v3062
        %3112 = vmatprep.subr.mxu0 0.0
        %3113 = vmatpush1.msra.mxu0 %v3061
        %3114 = vmatprep.subr.mxu0 0.0
        %3115 = vmatpush1.msra.mxu0 %v3060
        %3116 = vmatprep.subr.mxu0 0.0
        %3117 = vmatpush1.msra.mxu0 %v3059
        %3118 = vmatprep.subr.mxu0 0.0
        %3119 = vmatpush1.msra.mxu0 %v3058
        %3120 = vmatprep.subr.mxu0 0.0
        %3121 = vmatpush1.msra.mxu0 %v3057
        %3122 = vmatprep.subr.mxu0 0.0
        %3123 = vmatpush2.msra.mxu0 %v3088
        %3124 = vmatprep.subr.mxu0 0.0
        %3125 = vmatpush2.msra.mxu0 %v3087
        %3126 = vmatprep.subr.mxu0 0.0
        %3127 = vmatpush2.msra.mxu0 %v3086
        %3128 = vmatprep.subr.mxu0 0.0
        %3129 = vmatpush2.msra.mxu0 %v3085
        %3130 = vmatprep.subr.mxu0 0.0
        %3131 = vmatpush2.msra.mxu0 %v3084
        %3132 = vmatprep.subr.mxu0 0.0
        %3133 = vmatpush2.msra.mxu0 %v3083
        %3134 = vmatprep.subr.mxu0 0.0
        %3135 = vmatpush2.msra.mxu0 %v3082
        %3136 = vmatprep.subr.mxu0 0.0
        %3137 = vmatpush2.msra.mxu0 %v3081
        %3138 = vmatprep.subr.mxu0 0.0
        %3139 = vmatpush2.msra.mxu0 %v3080
        %3140 = vmatprep.subr.mxu0 0.0
        %3141 = vmatpush2.msra.mxu0 %v3079
        %3142 = vmatprep.subr.mxu0 0.0
        %3143 = vmatpush2.msra.mxu0 %v3078
        %3144 = vmatprep.subr.mxu0 0.0
        %3145 = vmatpush2.msra.mxu0 %v3077
        %3146 = vmatprep.subr.mxu0 0.0
        %3147 = vmatpush2.msra.mxu0 %v3076
        %3148 = vmatprep.subr.mxu0 0.0
        %3149 = vmatpush2.msra.mxu0 %v3075
        %3150 = vmatprep.subr.mxu0 0.0
        %3151 = vmatpush2.msra.mxu0 %v3074
        %3152 = vmatprep.subr.mxu0 0.0
        %3153 = vmatpush2.msra.mxu0 %v3073
        %3154 = vmatprep.mubr.f32.mxu0 %v3056
        %3155 = vmatmul.mubr.f32.gmra.mxu0 %v3053
        %v3156 = vpop.f32.mrf.mxu0
        %v3157 = vadd.f32 %v3089, %v3156
        %v3158 = vpop.f32.mrf.mxu0
        %3159 = vdwg.mxu0
        %v3160 = vld [vmem:[%s660] sm:$0xff]
        %v3161 = vld [vmem:[%s660 + $0x8] sm:$0xff]
        %v3162 = vld [vmem:[%s13] sm:$0xff]
        %v3163 = vld [vmem:[%s13 + $0x8] sm:$0xff]
        %v3164 = vld [vmem:[%s13 + $0x10] sm:$0xff]
        %v3165 = vld [vmem:[%s13 + $0x18] sm:$0xff]
        %v3166 = vld [vmem:[%s13 + $0x20] sm:$0xff]
        %v3167 = vld [vmem:[%s13 + $0x28] sm:$0xff]
        %v3168 = vld [vmem:[%s13 + $0x30] sm:$0xff]
        %v3169 = vld [vmem:[%s13 + $0x38] sm:$0xff]
        %v3170 = vld [vmem:[%s14] sm:$0x1]
        %v3172 = vsel %vm2681, %v3157, 0
        %3174 = vmatprep.subr.mxu0 0.0
        %3175 = vmatpush1.msra.mxu0 0.0
        %3176 = vmatprep.subr.mxu0 0.0
        %3177 = vmatpush1.msra.mxu0 0.0
        %3178 = vmatprep.subr.mxu0 0.0
        %3179 = vmatpush1.msra.mxu0 0.0
        %3180 = vmatprep.subr.mxu0 0.0
        %3181 = vmatpush1.msra.mxu0 0.0
        %3182 = vmatprep.subr.mxu0 0.0
        %3183 = vmatpush1.msra.mxu0 0.0
        %3184 = vmatprep.subr.mxu0 0.0
        %3185 = vmatpush1.msra.mxu0 0.0
        %3186 = vmatprep.subr.mxu0 0.0
        %3187 = vmatpush1.msra.mxu0 0.0
        %3188 = vmatprep.subr.mxu0 0.0
        %3189 = vmatpush1.msra.mxu0 0.0
        %3190 = vmatprep.subr.mxu0 0.0
        %3191 = vmatpush1.msra.mxu0 %v3169
        %3192 = vmatprep.subr.mxu0 0.0
        %3193 = vmatpush1.msra.mxu0 %v3168
        %3194 = vmatprep.subr.mxu0 0.0
        %3195 = vmatpush1.msra.mxu0 %v3167
        %3196 = vmatprep.subr.mxu0 0.0
        %3197 = vmatpush1.msra.mxu0 %v3166
        %3198 = vmatprep.subr.mxu0 0.0
        %3199 = vmatpush1.msra.mxu0 %v3165
        %3200 = vmatprep.subr.mxu0 0.0
        %3201 = vmatpush1.msra.mxu0 %v3164
        %3202 = vmatprep.subr.mxu0 0.0
        %3203 = vmatpush1.msra.mxu0 %v3163
        %3204 = vmatprep.subr.mxu0 0.0
        %3205 = vmatpush1.msra.mxu0 %v3162
        %3206 = vmatprep.subr.mxu0 0.0
        %3207 = vmatpush2.msra.mxu0 0.0
        %3208 = vmatprep.subr.mxu0 0.0
        %3209 = vmatpush2.msra.mxu0 0.0
        %3210 = vmatprep.subr.mxu0 0.0
        %3211 = vmatpush2.msra.mxu0 0.0
        %3212 = vmatprep.subr.mxu0 0.0
        %3213 = vmatpush2.msra.mxu0 0.0
        %3214 = vmatprep.subr.mxu0 0.0
        %3215 = vmatpush2.msra.mxu0 0.0
        %3216 = vmatprep.subr.mxu0 0.0
        %3217 = vmatpush2.msra.mxu0 0.0
        %3218 = vmatprep.subr.mxu0 0.0
        %3219 = vmatpush2.msra.mxu0 0.0
        %3220 = vmatprep.subr.mxu0 0.0
        %3221 = vmatpush2.msra.mxu0 0.0
        %3222 = vmatprep.subr.mxu0 0.0
        %3223 = vmatpush2.msra.mxu0 0.0
        %3224 = vmatprep.subr.mxu0 0.0
        %3225 = vmatpush2.msra.mxu0 0.0
        %3226 = vmatprep.subr.mxu0 0.0
        %3227 = vmatpush2.msra.mxu0 0.0
        %3228 = vmatprep.subr.mxu0 0.0
        %3229 = vmatpush2.msra.mxu0 0.0
        %3230 = vmatprep.subr.mxu0 0.0
        %3231 = vmatpush2.msra.mxu0 0.0
        %3232 = vmatprep.subr.mxu0 0.0
        %3233 = vmatpush2.msra.mxu0 0.0
        %3234 = vmatprep.subr.mxu0 0.0
        %3235 = vmatpush2.msra.mxu0 0.0
        %3236 = vmatprep.subr.mxu0 0.0
        %3237 = vmatpush2.msra.mxu0 0.0
        %3238 = vmatprep.mubr.f32.mxu0 0.0
        %3239 = vmatmul.mubr.f32.gmra.mxu0 %v3172
        %v3240 = vpop.f32.mrf.mxu0
        %v3241 = vadd.f32 %v3170, %v3240
        %v3242 = vpop.f32.mrf.mxu0
        %3243 = vdwg.mxu0
        %v3244 = vld [vmem:[%s12] sm:$0xff]
        %v3245 = vld [vmem:[%s12 + $0x8] sm:$0xff]
        %v3246 = vld [vmem:[%s12 + $0x10] sm:$0xff]
        %v3247 = vld [vmem:[%s12 + $0x18] sm:$0xff]
        %v3248 = vlaneseq
        %v3249 = vshrl.u32 %v3248, 7
        %v3250 = vsub.s32 0, %v3249
        %v3251 = vrot.slane %v3241, %v3250
        %v3253 = vsel %vm2782, %v3160, 0
        %v3256 = vsel %vm2782, %v3161, 0
        %3258 = vmatprep.subr.mxu0 0.0
        %3259 = vmatpush1.msra.mxu0 0.0
        %3260 = vmatprep.subr.mxu0 0.0
        %3261 = vmatpush1.msra.mxu0 0.0
        %3262 = vmatprep.subr.mxu0 0.0
        %3263 = vmatpush1.msra.mxu0 0.0
        %3264 = vmatprep.subr.mxu0 0.0
        %3265 = vmatpush1.msra.mxu0 0.0
        %3266 = vmatprep.subr.mxu0 0.0
        %3267 = vmatpush1.msra.mxu0 0.0
        %3268 = vmatprep.subr.mxu0 0.0
        %3269 = vmatpush1.msra.mxu0 0.0
        %3270 = vmatprep.subr.mxu0 0.0
        %3271 = vmatpush1.msra.mxu0 0.0
        %3272 = vmatprep.subr.mxu0 0.0
        %3273 = vmatpush1.msra.mxu0 0.0
        %3274 = vmatprep.subr.mxu0 0.0
        %3275 = vmatpush1.msra.mxu0 0.0
        %3276 = vmatprep.subr.mxu0 0.0
        %3277 = vmatpush1.msra.mxu0 0.0
        %3278 = vmatprep.subr.mxu0 0.0
        %3279 = vmatpush1.msra.mxu0 0.0
        %3280 = vmatprep.subr.mxu0 0.0
        %3281 = vmatpush1.msra.mxu0 0.0
        %3282 = vmatprep.subr.mxu0 0.0
        %3283 = vmatpush1.msra.mxu0 %v3247
        %3284 = vmatprep.subr.mxu0 0.0
        %3285 = vmatpush1.msra.mxu0 %v3246
        %3286 = vmatprep.subr.mxu0 0.0
        %3287 = vmatpush1.msra.mxu0 %v3245
        %3288 = vmatprep.subr.mxu0 0.0
        %3289 = vmatpush1.msra.mxu0 %v3244
        %3290 = vmatprep.subr.mxu0 0.0
        %3291 = vmatpush2.msra.mxu0 0.0
        %3292 = vmatprep.subr.mxu0 0.0
        %3293 = vmatpush2.msra.mxu0 0.0
        %3294 = vmatprep.subr.mxu0 0.0
        %3295 = vmatpush2.msra.mxu0 0.0
        %3296 = vmatprep.subr.mxu0 0.0
        %3297 = vmatpush2.msra.mxu0 0.0
        %3298 = vmatprep.subr.mxu0 0.0
        %3299 = vmatpush2.msra.mxu0 0.0
        %3300 = vmatprep.subr.mxu0 0.0
        %3301 = vmatpush2.msra.mxu0 0.0
        %3302 = vmatprep.subr.mxu0 0.0
        %3303 = vmatpush2.msra.mxu0 0.0
        %3304 = vmatprep.subr.mxu0 0.0
        %3305 = vmatpush2.msra.mxu0 0.0
        %3306 = vmatprep.subr.mxu0 0.0
        %3307 = vmatpush2.msra.mxu0 0.0
        %3308 = vmatprep.subr.mxu0 0.0
        %3309 = vmatpush2.msra.mxu0 0.0
        %3310 = vmatprep.subr.mxu0 0.0
        %3311 = vmatpush2.msra.mxu0 0.0
        %3312 = vmatprep.subr.mxu0 0.0
        %3313 = vmatpush2.msra.mxu0 0.0
        %3314 = vmatprep.subr.mxu0 0.0
        %3315 = vmatpush2.msra.mxu0 0.0
        %3316 = vmatprep.subr.mxu0 0.0
        %3317 = vmatpush2.msra.mxu0 0.0
        %3318 = vmatprep.subr.mxu0 0.0
        %3319 = vmatpush2.msra.mxu0 0.0
        %3320 = vmatprep.subr.mxu0 0.0
        %3321 = vmatpush2.msra.mxu0 0.0
        %3322 = vmatprep.mubr.f32.mxu0 0.0
        %3323 = vmatmul.mubr.f32.gmra.mxu0 %v3253
        %v3324 = vpop.f32.mrf.mxu0
        %v3325 = vadd.f32 %v3251, %v3324
        %v3326 = vpop.f32.mrf.mxu0
        %3327 = vmatprep.mubr.f32.mxu0 0.0
        %3328 = vmatmul.mubr.f32.gmra.mxu0 %v3256
        %v3329 = vpop.f32.mrf.mxu0
        %v3330 = vadd.f32 %v3251, %v3329
        %v3331 = vpop.f32.mrf.mxu0
        %3332 = vdwg.mxu0
        %v3333 = vmax.f32 %v3325, 0.0
        %v3334 = vmax.f32 %v3330, 0.0
        %v3335 = vld [vmem:[%s15] sm:$0xff]
        %v3336 = vld [vmem:[%s15 + $0x8] sm:$0xff]
        %v3337 = vld [vmem:[%s15 + $0x10] sm:$0xff]
        %v3338 = vld [vmem:[%s15 + $0x18] sm:$0xff]
        %v3339 = vld [vmem:[%s15 + $0x20] sm:$0xff]
        %v3340 = vld [vmem:[%s15 + $0x28] sm:$0xff]
        %v3341 = vld [vmem:[%s15 + $0x30] sm:$0xff]
        %v3342 = vld [vmem:[%s15 + $0x38] sm:$0xff]
        %v3343 = vld [vmem:[%s15 + $0x40] sm:$0xff]
        %v3344 = vld [vmem:[%s15 + $0x48] sm:$0xff]
        %v3345 = vld [vmem:[%s15 + $0x50] sm:$0xff]
        %v3346 = vld [vmem:[%s15 + $0x58] sm:$0xff]
        %v3347 = vld [vmem:[%s15 + $0x60] sm:$0xff]
        %v3348 = vld [vmem:[%s15 + $0x68] sm:$0xff]
        %v3349 = vld [vmem:[%s15 + $0x70] sm:$0xff]
        %v3350 = vld [vmem:[%s15 + $0x78] sm:$0xff]
        %v3351 = vld [vmem:[%s15 + $0x80] sm:$0xff]
        %v3352 = vld [vmem:[%s15 + $0x88] sm:$0xff]
        %v3353 = vld [vmem:[%s15 + $0x90] sm:$0xff]
        %v3354 = vld [vmem:[%s15 + $0x98] sm:$0xff]
        %v3355 = vld [vmem:[%s15 + $0xa0] sm:$0xff]
        %v3356 = vld [vmem:[%s15 + $0xa8] sm:$0xff]
        %v3357 = vld [vmem:[%s15 + $0xb0] sm:$0xff]
        %v3358 = vld [vmem:[%s15 + $0xb8] sm:$0xff]
        %v3359 = vld [vmem:[%s15 + $0xc0] sm:$0xff]
        %v3360 = vld [vmem:[%s15 + $0xc8] sm:$0xff]
        %v3361 = vld [vmem:[%s15 + $0xd0] sm:$0xff]
        %v3362 = vld [vmem:[%s15 + $0xd8] sm:$0xff]
        %v3363 = vld [vmem:[%s15 + $0xe0] sm:$0xff]
        %v3364 = vld [vmem:[%s15 + $0xe8] sm:$0xff]
        %v3365 = vld [vmem:[%s15 + $0xf0] sm:$0xff]
        %v3366 = vld [vmem:[%s15 + $0xf8] sm:$0xff]
        %v3367 = vld [vmem:[%s16] sm:$0xf]
        %v3369 = vlaneseq
        %v3370 = vshrl.u32 %v3369, 7
        %v3371 = vsub.s32 0, %v3370
        %v3372 = vrot.slane %v3367, %v3371
        %v3373 = vlaneseq
        %v3374 = vshrl.u32 %v3373, 7
        %v3375 = vsub.s32 1, %v3374
        %v3376 = vrot.slane %v3367, %v3375
        %v3377 = vlaneseq
        %v3378 = vshrl.u32 %v3377, 7
        %v3379 = vsub.s32 2, %v3378
        %v3380 = vrot.slane %v3367, %v3379
        %v3381 = vlaneseq
        %v3382 = vshrl.u32 %v3381, 7
        %v3383 = vsub.s32 3, %v3382
        %v3384 = vrot.slane %v3367, %v3383
        %v3390 = vsel %vm2681, %v3333, 0
        %v3393 = vsel %vm2681, %v3334, 0
        %3395 = vmatprep.subr.mxu0 0.0
        %3396 = vmatpush1.msra.mxu0 0.0
        %3397 = vmatprep.subr.mxu0 0.0
        %3398 = vmatpush1.msra.mxu0 0.0
        %3399 = vmatprep.subr.mxu0 0.0
        %3400 = vmatpush1.msra.mxu0 0.0
        %3401 = vmatprep.subr.mxu0 0.0
        %3402 = vmatpush1.msra.mxu0 0.0
        %3403 = vmatprep.subr.mxu0 0.0
        %3404 = vmatpush1.msra.mxu0 0.0
        %3405 = vmatprep.subr.mxu0 0.0
        %3406 = vmatpush1.msra.mxu0 0.0
        %3407 = vmatprep.subr.mxu0 0.0
        %3408 = vmatpush1.msra.mxu0 0.0
        %3409 = vmatprep.subr.mxu0 0.0
        %3410 = vmatpush1.msra.mxu0 0.0
        %3411 = vmatprep.subr.mxu0 %v3364
        %3412 = vmatpush1.msra.mxu0 %v3363
        %3413 = vmatprep.subr.mxu0 %v3360
        %3414 = vmatpush1.msra.mxu0 %v3359
        %3415 = vmatprep.subr.mxu0 %v3356
        %3416 = vmatpush1.msra.mxu0 %v3355
        %3417 = vmatprep.subr.mxu0 %v3352
        %3418 = vmatpush1.msra.mxu0 %v3351
        %3419 = vmatprep.subr.mxu0 %v3348
        %3420 = vmatpush1.msra.mxu0 %v3347
        %3421 = vmatprep.subr.mxu0 %v3344
        %3422 = vmatpush1.msra.mxu0 %v3343
        %3423 = vmatprep.subr.mxu0 %v3340
        %3424 = vmatpush1.msra.mxu0 %v3339
        %3425 = vmatprep.subr.mxu0 %v3336
        %3426 = vmatpush1.msra.mxu0 %v3335
        %3427 = vmatprep.subr.mxu0 0.0
        %3428 = vmatpush2.msra.mxu0 0.0
        %3429 = vmatprep.subr.mxu0 0.0
        %3430 = vmatpush2.msra.mxu0 0.0
        %3431 = vmatprep.subr.mxu0 0.0
        %3432 = vmatpush2.msra.mxu0 0.0
        %3433 = vmatprep.subr.mxu0 0.0
        %3434 = vmatpush2.msra.mxu0 0.0
        %3435 = vmatprep.subr.mxu0 0.0
        %3436 = vmatpush2.msra.mxu0 0.0
        %3437 = vmatprep.subr.mxu0 0.0
        %3438 = vmatpush2.msra.mxu0 0.0
        %3439 = vmatprep.subr.mxu0 0.0
        %3440 = vmatpush2.msra.mxu0 0.0
        %3441 = vmatprep.subr.mxu0 0.0
        %3442 = vmatpush2.msra.mxu0 0.0
        %3443 = vmatprep.subr.mxu0 0.0
        %3444 = vmatpush2.msra.mxu0 0.0
        %3445 = vmatprep.subr.mxu0 0.0
        %3446 = vmatpush2.msra.mxu0 0.0
        %3447 = vmatprep.subr.mxu0 0.0
        %3448 = vmatpush2.msra.mxu0 0.0
        %3449 = vmatprep.subr.mxu0 0.0
        %3450 = vmatpush2.msra.mxu0 0.0
        %3451 = vmatprep.subr.mxu0 0.0
        %3452 = vmatpush2.msra.mxu0 0.0
        %3453 = vmatprep.subr.mxu0 0.0
        %3454 = vmatpush2.msra.mxu0 0.0
        %3455 = vmatprep.subr.mxu0 0.0
        %3456 = vmatpush2.msra.mxu0 0.0
        %3457 = vmatprep.subr.mxu0 0.0
        %3458 = vmatpush2.msra.mxu0 0.0
        %3459 = vmatprep.mubr.f32.mxu0 0.0
        %3460 = vmatmul.mubr.f32.gmra.mxu0 %v3390
        %v3461 = vpop.f32.mrf.mxu0
        %v3462 = vadd.f32 %v3372, %v3461
        %v3463 = vpop.f32.mrf.mxu0
        %v3464 = vadd.f32 %v3376, %v3463
        %3465 = vmatprep.mubr.f32.mxu0 0.0
        %3466 = vmatmul.mubr.f32.gmra.mxu0 %v3393
        %v3467 = vpop.f32.mrf.mxu0
        %v3468 = vadd.f32 %v3372, %v3467
        %v3469 = vpop.f32.mrf.mxu0
        %v3470 = vadd.f32 %v3376, %v3469
        %3471 = vdwg.mxu0
        %3472 = vmatprep.subr.mxu0 0.0
        %3473 = vmatpush1.msra.mxu0 0.0
        %3474 = vmatprep.subr.mxu0 0.0
        %3475 = vmatpush1.msra.mxu0 0.0
        %3476 = vmatprep.subr.mxu0 0.0
        %3477 = vmatpush1.msra.mxu0 0.0
        %3478 = vmatprep.subr.mxu0 0.0
        %3479 = vmatpush1.msra.mxu0 0.0
        %3480 = vmatprep.subr.mxu0 0.0
        %3481 = vmatpush1.msra.mxu0 0.0
        %3482 = vmatprep.subr.mxu0 0.0
        %3483 = vmatpush1.msra.mxu0 0.0
        %3484 = vmatprep.subr.mxu0 0.0
        %3485 = vmatpush1.msra.mxu0 0.0
        %3486 = vmatprep.subr.mxu0 0.0
        %3487 = vmatpush1.msra.mxu0 0.0
        %3488 = vmatprep.subr.mxu0 %v3366
        %3489 = vmatpush1.msra.mxu0 %v3365
        %3490 = vmatprep.subr.mxu0 %v3362
        %3491 = vmatpush1.msra.mxu0 %v3361
        %3492 = vmatprep.subr.mxu0 %v3358
        %3493 = vmatpush1.msra.mxu0 %v3357
        %3494 = vmatprep.subr.mxu0 %v3354
        %3495 = vmatpush1.msra.mxu0 %v3353
        %3496 = vmatprep.subr.mxu0 %v3350
        %3497 = vmatpush1.msra.mxu0 %v3349
        %3498 = vmatprep.subr.mxu0 %v3346
        %3499 = vmatpush1.msra.mxu0 %v3345
        %3500 = vmatprep.subr.mxu0 %v3342
        %3501 = vmatpush1.msra.mxu0 %v3341
        %3502 = vmatprep.subr.mxu0 %v3338
        %3503 = vmatpush1.msra.mxu0 %v3337
        %3504 = vmatprep.subr.mxu0 0.0
        %3505 = vmatpush2.msra.mxu0 0.0
        %3506 = vmatprep.subr.mxu0 0.0
        %3507 = vmatpush2.msra.mxu0 0.0
        %3508 = vmatprep.subr.mxu0 0.0
        %3509 = vmatpush2.msra.mxu0 0.0
        %3510 = vmatprep.subr.mxu0 0.0
        %3511 = vmatpush2.msra.mxu0 0.0
        %3512 = vmatprep.subr.mxu0 0.0
        %3513 = vmatpush2.msra.mxu0 0.0
        %3514 = vmatprep.subr.mxu0 0.0
        %3515 = vmatpush2.msra.mxu0 0.0
        %3516 = vmatprep.subr.mxu0 0.0
        %3517 = vmatpush2.msra.mxu0 0.0
        %3518 = vmatprep.subr.mxu0 0.0
        %3519 = vmatpush2.msra.mxu0 0.0
        %3520 = vmatprep.subr.mxu0 0.0
        %3521 = vmatpush2.msra.mxu0 0.0
        %3522 = vmatprep.subr.mxu0 0.0
        %3523 = vmatpush2.msra.mxu0 0.0
        %3524 = vmatprep.subr.mxu0 0.0
        %3525 = vmatpush2.msra.mxu0 0.0
        %3526 = vmatprep.subr.mxu0 0.0
        %3527 = vmatpush2.msra.mxu0 0.0
        %3528 = vmatprep.subr.mxu0 0.0
        %3529 = vmatpush2.msra.mxu0 0.0
        %3530 = vmatprep.subr.mxu0 0.0
        %3531 = vmatpush2.msra.mxu0 0.0
        %3532 = vmatprep.subr.mxu0 0.0
        %3533 = vmatpush2.msra.mxu0 0.0
        %3534 = vmatprep.subr.mxu0 0.0
        %3535 = vmatpush2.msra.mxu0 0.0
        %3536 = vmatprep.mubr.f32.mxu0 0.0
        %3537 = vmatmul.mubr.f32.gmra.mxu0 %v3390
        %v3538 = vpop.f32.mrf.mxu0
        %v3539 = vadd.f32 %v3380, %v3538
        %v3540 = vpop.f32.mrf.mxu0
        %v3541 = vadd.f32 %v3384, %v3540
        %3542 = vmatprep.mubr.f32.mxu0 0.0
        %3543 = vmatmul.mubr.f32.gmra.mxu0 %v3393
        %v3544 = vpop.f32.mrf.mxu0
        %v3545 = vadd.f32 %v3380, %v3544
        %v3546 = vpop.f32.mrf.mxu0
        %v3547 = vadd.f32 %v3384, %v3546
        %3548 = vdwg.mxu0
        %v3549 = vsub.f32 0.0, %v3462
        %v3550 = vsub.f32 0.0, %v3464
        %v3551 = vsub.f32 0.0, %v3539
        %v3552 = vsub.f32 0.0, %v3541
        %v3553 = vsub.f32 0.0, %v3468
        %v3554 = vsub.f32 0.0, %v3470
        %v3555 = vsub.f32 0.0, %v3545
        %v3556 = vsub.f32 0.0, %v3547
        %v3557 = vmul.f32 %v3549, 1.442695
        %v3558 = vpow.pop %v3557
        %v3559 = vmul.f32 %v3550, 1.442695
        %v3560 = vpow.pop %v3559
        %v3561 = vmul.f32 %v3551, 1.442695
        %v3562 = vpow.pop %v3561
        %v3563 = vmul.f32 %v3552, 1.442695
        %v3564 = vpow.pop %v3563
        %v3565 = vmul.f32 %v3553, 1.442695
        %v3566 = vpow.pop %v3565
        %v3567 = vmul.f32 %v3554, 1.442695
        %v3568 = vpow.pop %v3567
        %v3569 = vmul.f32 %v3555, 1.442695
        %v3570 = vpow.pop %v3569
        %v3571 = vmul.f32 %v3556, 1.442695
        %v3572 = vpow.pop %v3571
        %v3573 = vadd.f32 %v3558, 1.0
        %v3574 = vadd.f32 %v3560, 1.0
        %v3575 = vadd.f32 %v3562, 1.0
        %v3576 = vadd.f32 %v3564, 1.0
        %v3577 = vadd.f32 %v3566, 1.0
        %v3578 = vadd.f32 %v3568, 1.0
        %v3579 = vadd.f32 %v3570, 1.0
        %v3580 = vadd.f32 %v3572, 1.0
        %v3581 = vrcp.pop %v3573
        %v3582 = vrcp.pop %v3574
        %v3583 = vrcp.pop %v3575
        %v3584 = vrcp.pop %v3576
        %v3585 = vrcp.pop %v3577
        %v3586 = vrcp.pop %v3578
        %v3587 = vrcp.pop %v3579
        %v3588 = vrcp.pop %v3580
        %v3589 = vmul.f32 %v3581, %v2483
        %v3590 = vmul.f32 %v3582, %v2485
        %v3591 = vmul.f32 %v3583, %v2655
        %v3592 = vmul.f32 %v3584, %v2657
        %v3593 = vmul.f32 %v3585, %v2487
        %v3594 = vmul.f32 %v3586, %v2489
        %v3595 = vmul.f32 %v3587, %v2659
        %v3596 = vmul.f32 %v3588, %v2661
        %v3597 = vpack.c.bf16 %v3593, %v3589
        %v3598 = vpack.c.bf16 %v3594, %v3590
        %v3599 = vpack.c.bf16 %v3595, %v3591
        %v3600 = vpack.c.bf16 %v3596, %v3592
        %v3601 = vld [vmem:[#allocation5] sm:$0xff]
        %v3602 = vld [vmem:[#allocation5 + $0x8] sm:$0xff]
        %v3603 = vld [vmem:[#allocation5 + $0x10] sm:$0xff]
        %v3604 = vld [vmem:[#allocation5 + $0x18] sm:$0xff]
        %v3605 = vld [vmem:[#allocation5 + $0x20] sm:$0xff]
        %v3606 = vld [vmem:[#allocation5 + $0x28] sm:$0xff]
        %v3607 = vld [vmem:[#allocation5 + $0x30] sm:$0xff]
        %v3608 = vld [vmem:[#allocation5 + $0x38] sm:$0xff]
        %v3609 = vld [vmem:[#allocation5 + $0x40] sm:$0xff]
        %v3610 = vld [vmem:[#allocation5 + $0x48] sm:$0xff]
        %v3611 = vld [vmem:[#allocation5 + $0x50] sm:$0xff]
        %v3612 = vld [vmem:[#allocation5 + $0x58] sm:$0xff]
        %v3613 = vld [vmem:[#allocation5 + $0x60] sm:$0xff]
        %v3614 = vld [vmem:[#allocation5 + $0x68] sm:$0xff]
        %v3615 = vld [vmem:[#allocation5 + $0x70] sm:$0xff]
        %v3616 = vld [vmem:[#allocation5 + $0x78] sm:$0xff]
        %v3617 = vld [vmem:[#allocation5 + $0x80] sm:$0xff]
        %v3618 = vld [vmem:[#allocation5 + $0x88] sm:$0xff]
        %v3619 = vld [vmem:[#allocation5 + $0x90] sm:$0xff]
        %v3620 = vld [vmem:[#allocation5 + $0x98] sm:$0xff]
        %v3621 = vld [vmem:[#allocation5 + $0xa0] sm:$0xff]
        %v3622 = vld [vmem:[#allocation5 + $0xa8] sm:$0xff]
        %v3623 = vld [vmem:[#allocation5 + $0xb0] sm:$0xff]
        %v3624 = vld [vmem:[#allocation5 + $0xb8] sm:$0xff]
        %v3625 = vld [vmem:[#allocation5 + $0xc0] sm:$0xff]
        %v3626 = vld [vmem:[#allocation5 + $0xc8] sm:$0xff]
        %v3627 = vld [vmem:[#allocation5 + $0xd0] sm:$0xff]
        %v3628 = vld [vmem:[#allocation5 + $0xd8] sm:$0xff]
        %v3629 = vld [vmem:[#allocation5 + $0xe0] sm:$0xff]
        %v3630 = vld [vmem:[#allocation5 + $0xe8] sm:$0xff]
        %v3631 = vld [vmem:[#allocation5 + $0xf0] sm:$0xff]
        %v3632 = vld [vmem:[#allocation5 + $0xf8] sm:$0xff]
        %v3633 = vld [vmem:[#allocation5 + $0x100] sm:$0xff]
        %v3634 = vld [vmem:[#allocation5 + $0x108] sm:$0xff]
        %v3635 = vld [vmem:[#allocation5 + $0x110] sm:$0xff]
        %v3636 = vld [vmem:[#allocation5 + $0x118] sm:$0xff]
        %v3637 = vld [vmem:[#allocation5 + $0x120] sm:$0xff]
        %v3638 = vld [vmem:[#allocation5 + $0x128] sm:$0xff]
        %v3639 = vld [vmem:[#allocation5 + $0x130] sm:$0xff]
        %v3640 = vld [vmem:[#allocation5 + $0x138] sm:$0xff]
        %v3641 = vld [vmem:[#allocation5 + $0x140] sm:$0xff]
        %v3642 = vld [vmem:[#allocation5 + $0x148] sm:$0xff]
        %v3643 = vld [vmem:[#allocation5 + $0x150] sm:$0xff]
        %v3644 = vld [vmem:[#allocation5 + $0x158] sm:$0xff]
        %v3645 = vld [vmem:[#allocation5 + $0x160] sm:$0xff]
        %v3646 = vld [vmem:[#allocation5 + $0x168] sm:$0xff]
        %v3647 = vld [vmem:[#allocation5 + $0x170] sm:$0xff]
        %v3648 = vld [vmem:[#allocation5 + $0x178] sm:$0xff]
        %v3649 = vld [vmem:[#allocation5 + $0x180] sm:$0xff]
        %v3650 = vld [vmem:[#allocation5 + $0x188] sm:$0xff]
        %v3651 = vld [vmem:[#allocation5 + $0x190] sm:$0xff]
        %v3652 = vld [vmem:[#allocation5 + $0x198] sm:$0xff]
        %v3653 = vld [vmem:[#allocation5 + $0x1a0] sm:$0xff]
        %v3654 = vld [vmem:[#allocation5 + $0x1a8] sm:$0xff]
        %v3655 = vld [vmem:[#allocation5 + $0x1b0] sm:$0xff]
        %v3656 = vld [vmem:[#allocation5 + $0x1b8] sm:$0xff]
        %v3657 = vld [vmem:[#allocation5 + $0x1c0] sm:$0xff]
        %v3658 = vld [vmem:[#allocation5 + $0x1c8] sm:$0xff]
        %v3659 = vld [vmem:[#allocation5 + $0x1d0] sm:$0xff]
        %v3660 = vld [vmem:[#allocation5 + $0x1d8] sm:$0xff]
        %v3661 = vld [vmem:[#allocation5 + $0x1e0] sm:$0xff]
        %v3662 = vld [vmem:[#allocation5 + $0x1e8] sm:$0xff]
        %v3663 = vld [vmem:[#allocation5 + $0x1f0] sm:$0xff]
        %v3664 = vld [vmem:[#allocation5 + $0x1f8] sm:$0xff]
        %v3665 = vld [vmem:[#allocation5 + $0x200] sm:$0xff]
        %v3666 = vld [vmem:[#allocation5 + $0x208] sm:$0xff]
        %v3667 = vld [vmem:[#allocation5 + $0x210] sm:$0xff]
        %v3668 = vld [vmem:[#allocation5 + $0x218] sm:$0xff]
        %v3669 = vld [vmem:[#allocation5 + $0x220] sm:$0xff]
        %v3670 = vld [vmem:[#allocation5 + $0x228] sm:$0xff]
        %v3671 = vld [vmem:[#allocation5 + $0x230] sm:$0xff]
        %v3672 = vld [vmem:[#allocation5 + $0x238] sm:$0xff]
        %v3673 = vld [vmem:[#allocation5 + $0x240] sm:$0xff]
        %v3674 = vld [vmem:[#allocation5 + $0x248] sm:$0xff]
        %v3675 = vld [vmem:[#allocation5 + $0x250] sm:$0xff]
        %v3676 = vld [vmem:[#allocation5 + $0x258] sm:$0xff]
        %v3677 = vld [vmem:[#allocation5 + $0x260] sm:$0xff]
        %v3678 = vld [vmem:[#allocation5 + $0x268] sm:$0xff]
        %v3679 = vld [vmem:[#allocation5 + $0x270] sm:$0xff]
        %v3680 = vld [vmem:[#allocation5 + $0x278] sm:$0xff]
        %v3681 = vld [vmem:[#allocation5 + $0x280] sm:$0xff]
        %v3682 = vld [vmem:[#allocation5 + $0x288] sm:$0xff]
        %v3683 = vld [vmem:[#allocation5 + $0x290] sm:$0xff]
        %v3684 = vld [vmem:[#allocation5 + $0x298] sm:$0xff]
        %v3685 = vld [vmem:[#allocation5 + $0x2a0] sm:$0xff]
        %v3686 = vld [vmem:[#allocation5 + $0x2a8] sm:$0xff]
        %v3687 = vld [vmem:[#allocation5 + $0x2b0] sm:$0xff]
        %v3688 = vld [vmem:[#allocation5 + $0x2b8] sm:$0xff]
        %v3689 = vld [vmem:[#allocation5 + $0x2c0] sm:$0xff]
        %v3690 = vld [vmem:[#allocation5 + $0x2c8] sm:$0xff]
        %v3691 = vld [vmem:[#allocation5 + $0x2d0] sm:$0xff]
        %v3692 = vld [vmem:[#allocation5 + $0x2d8] sm:$0xff]
        %v3693 = vld [vmem:[#allocation5 + $0x2e0] sm:$0xff]
        %v3694 = vld [vmem:[#allocation5 + $0x2e8] sm:$0xff]
        %v3695 = vld [vmem:[#allocation5 + $0x2f0] sm:$0xff]
        %v3696 = vld [vmem:[#allocation5 + $0x2f8] sm:$0xff]
        %v3697 = vld [vmem:[#allocation5 + $0x300] sm:$0xff]
        %v3698 = vld [vmem:[#allocation5 + $0x308] sm:$0xff]
        %v3699 = vld [vmem:[#allocation5 + $0x310] sm:$0xff]
        %v3700 = vld [vmem:[#allocation5 + $0x318] sm:$0xff]
        %v3701 = vld [vmem:[#allocation5 + $0x320] sm:$0xff]
        %v3702 = vld [vmem:[#allocation5 + $0x328] sm:$0xff]
        %v3703 = vld [vmem:[#allocation5 + $0x330] sm:$0xff]
        %v3704 = vld [vmem:[#allocation5 + $0x338] sm:$0xff]
        %v3705 = vld [vmem:[#allocation5 + $0x340] sm:$0xff]
        %v3706 = vld [vmem:[#allocation5 + $0x348] sm:$0xff]
        %v3707 = vld [vmem:[#allocation5 + $0x350] sm:$0xff]
        %v3708 = vld [vmem:[#allocation5 + $0x358] sm:$0xff]
        %v3709 = vld [vmem:[#allocation5 + $0x360] sm:$0xff]
        %v3710 = vld [vmem:[#allocation5 + $0x368] sm:$0xff]
        %v3711 = vld [vmem:[#allocation5 + $0x370] sm:$0xff]
        %v3712 = vld [vmem:[#allocation5 + $0x378] sm:$0xff]
        %v3713 = vld [vmem:[#allocation5 + $0x380] sm:$0xff]
        %v3714 = vld [vmem:[#allocation5 + $0x388] sm:$0xff]
        %v3715 = vld [vmem:[#allocation5 + $0x390] sm:$0xff]
        %v3716 = vld [vmem:[#allocation5 + $0x398] sm:$0xff]
        %v3717 = vld [vmem:[#allocation5 + $0x3a0] sm:$0xff]
        %v3718 = vld [vmem:[#allocation5 + $0x3a8] sm:$0xff]
        %v3719 = vld [vmem:[#allocation5 + $0x3b0] sm:$0xff]
        %v3720 = vld [vmem:[#allocation5 + $0x3b8] sm:$0xff]
        %v3721 = vld [vmem:[#allocation5 + $0x3c0] sm:$0xff]
        %v3722 = vld [vmem:[#allocation5 + $0x3c8] sm:$0xff]
        %v3723 = vld [vmem:[#allocation5 + $0x3d0] sm:$0xff]
        %v3724 = vld [vmem:[#allocation5 + $0x3d8] sm:$0xff]
        %v3725 = vld [vmem:[#allocation5 + $0x3e0] sm:$0xff]
        %v3726 = vld [vmem:[#allocation5 + $0x3e8] sm:$0xff]
        %v3727 = vld [vmem:[#allocation5 + $0x3f0] sm:$0xff]
        %v3728 = vld [vmem:[#allocation5 + $0x3f8] sm:$0xff]
        %v3729 = vld [vmem:[#allocation5 + $0x400] sm:$0xff]
        %v3730 = vld [vmem:[#allocation5 + $0x408] sm:$0xff]
        %v3731 = vld [vmem:[#allocation5 + $0x410] sm:$0xff]
        %v3732 = vld [vmem:[#allocation5 + $0x418] sm:$0xff]
        %v3733 = vld [vmem:[#allocation5 + $0x420] sm:$0xff]
        %v3734 = vld [vmem:[#allocation5 + $0x428] sm:$0xff]
        %v3735 = vld [vmem:[#allocation5 + $0x430] sm:$0xff]
        %v3736 = vld [vmem:[#allocation5 + $0x438] sm:$0xff]
        %v3737 = vld [vmem:[#allocation5 + $0x440] sm:$0xff]
        %v3738 = vld [vmem:[#allocation5 + $0x448] sm:$0xff]
        %v3739 = vld [vmem:[#allocation5 + $0x450] sm:$0xff]
        %v3740 = vld [vmem:[#allocation5 + $0x458] sm:$0xff]
        %v3741 = vld [vmem:[#allocation5 + $0x460] sm:$0xff]
        %v3742 = vld [vmem:[#allocation5 + $0x468] sm:$0xff]
        %v3743 = vld [vmem:[#allocation5 + $0x470] sm:$0xff]
        %v3744 = vld [vmem:[#allocation5 + $0x478] sm:$0xff]
        %v3745 = vld [vmem:[#allocation5 + $0x480] sm:$0xff]
        %v3746 = vld [vmem:[#allocation5 + $0x488] sm:$0xff]
        %v3747 = vld [vmem:[#allocation5 + $0x490] sm:$0xff]
        %v3748 = vld [vmem:[#allocation5 + $0x498] sm:$0xff]
        %v3749 = vld [vmem:[#allocation5 + $0x4a0] sm:$0xff]
        %v3750 = vld [vmem:[#allocation5 + $0x4a8] sm:$0xff]
        %v3751 = vld [vmem:[#allocation5 + $0x4b0] sm:$0xff]
        %v3752 = vld [vmem:[#allocation5 + $0x4b8] sm:$0xff]
        %v3753 = vld [vmem:[#allocation5 + $0x4c0] sm:$0xff]
        %v3754 = vld [vmem:[#allocation5 + $0x4c8] sm:$0xff]
        %v3755 = vld [vmem:[#allocation5 + $0x4d0] sm:$0xff]
        %v3756 = vld [vmem:[#allocation5 + $0x4d8] sm:$0xff]
        %v3757 = vld [vmem:[#allocation5 + $0x4e0] sm:$0xff]
        %v3758 = vld [vmem:[#allocation5 + $0x4e8] sm:$0xff]
        %v3759 = vld [vmem:[#allocation5 + $0x4f0] sm:$0xff]
        %v3760 = vld [vmem:[#allocation5 + $0x4f8] sm:$0xff]
        %v3761 = vld [vmem:[#allocation5 + $0x500] sm:$0xff]
        %v3762 = vld [vmem:[#allocation5 + $0x508] sm:$0xff]
        %v3763 = vld [vmem:[#allocation5 + $0x510] sm:$0xff]
        %v3764 = vld [vmem:[#allocation5 + $0x518] sm:$0xff]
        %v3765 = vld [vmem:[#allocation5 + $0x520] sm:$0xff]
        %v3766 = vld [vmem:[#allocation5 + $0x528] sm:$0xff]
        %v3767 = vld [vmem:[#allocation5 + $0x530] sm:$0xff]
        %v3768 = vld [vmem:[#allocation5 + $0x538] sm:$0xff]
        %v3769 = vld [vmem:[#allocation5 + $0x540] sm:$0xff]
        %v3770 = vld [vmem:[#allocation5 + $0x548] sm:$0xff]
        %v3771 = vld [vmem:[#allocation5 + $0x550] sm:$0xff]
        %v3772 = vld [vmem:[#allocation5 + $0x558] sm:$0xff]
        %v3773 = vld [vmem:[#allocation5 + $0x560] sm:$0xff]
        %v3774 = vld [vmem:[#allocation5 + $0x568] sm:$0xff]
        %v3775 = vld [vmem:[#allocation5 + $0x570] sm:$0xff]
        %v3776 = vld [vmem:[#allocation5 + $0x578] sm:$0xff]
        %v3777 = vld [vmem:[#allocation5 + $0x580] sm:$0xff]
        %v3778 = vld [vmem:[#allocation5 + $0x588] sm:$0xff]
        %v3779 = vld [vmem:[#allocation5 + $0x590] sm:$0xff]
        %v3780 = vld [vmem:[#allocation5 + $0x598] sm:$0xff]
        %v3781 = vld [vmem:[#allocation5 + $0x5a0] sm:$0xff]
        %v3782 = vld [vmem:[#allocation5 + $0x5a8] sm:$0xff]
        %v3783 = vld [vmem:[#allocation5 + $0x5b0] sm:$0xff]
        %v3784 = vld [vmem:[#allocation5 + $0x5b8] sm:$0xff]
        %v3785 = vld [vmem:[#allocation5 + $0x5c0] sm:$0xff]
        %v3786 = vld [vmem:[#allocation5 + $0x5c8] sm:$0xff]
        %v3787 = vld [vmem:[#allocation5 + $0x5d0] sm:$0xff]
        %v3788 = vld [vmem:[#allocation5 + $0x5d8] sm:$0xff]
        %v3789 = vld [vmem:[#allocation5 + $0x5e0] sm:$0xff]
        %v3790 = vld [vmem:[#allocation5 + $0x5e8] sm:$0xff]
        %v3791 = vld [vmem:[#allocation5 + $0x5f0] sm:$0xff]
        %v3792 = vld [vmem:[#allocation5 + $0x5f8] sm:$0xff]
        %v3793 = vld [vmem:[#allocation5 + $0x600] sm:$0xff]
        %v3794 = vld [vmem:[#allocation5 + $0x608] sm:$0xff]
        %v3795 = vld [vmem:[#allocation5 + $0x610] sm:$0xff]
        %v3796 = vld [vmem:[#allocation5 + $0x618] sm:$0xff]
        %v3797 = vld [vmem:[#allocation5 + $0x620] sm:$0xff]
        %v3798 = vld [vmem:[#allocation5 + $0x628] sm:$0xff]
        %v3799 = vld [vmem:[#allocation5 + $0x630] sm:$0xff]
        %v3800 = vld [vmem:[#allocation5 + $0x638] sm:$0xff]
        %v3801 = vld [vmem:[#allocation5 + $0x640] sm:$0xff]
        %v3802 = vld [vmem:[#allocation5 + $0x648] sm:$0xff]
        %v3803 = vld [vmem:[#allocation5 + $0x650] sm:$0xff]
        %v3804 = vld [vmem:[#allocation5 + $0x658] sm:$0xff]
        %v3805 = vld [vmem:[#allocation5 + $0x660] sm:$0xff]
        %v3806 = vld [vmem:[#allocation5 + $0x668] sm:$0xff]
        %v3807 = vld [vmem:[#allocation5 + $0x670] sm:$0xff]
        %v3808 = vld [vmem:[#allocation5 + $0x678] sm:$0xff]
        %v3809 = vld [vmem:[#allocation5 + $0x680] sm:$0xff]
        %v3810 = vld [vmem:[#allocation5 + $0x688] sm:$0xff]
        %v3811 = vld [vmem:[#allocation5 + $0x690] sm:$0xff]
        %v3812 = vld [vmem:[#allocation5 + $0x698] sm:$0xff]
        %v3813 = vld [vmem:[#allocation5 + $0x6a0] sm:$0xff]
        %v3814 = vld [vmem:[#allocation5 + $0x6a8] sm:$0xff]
        %v3815 = vld [vmem:[#allocation5 + $0x6b0] sm:$0xff]
        %v3816 = vld [vmem:[#allocation5 + $0x6b8] sm:$0xff]
        %v3817 = vld [vmem:[#allocation5 + $0x6c0] sm:$0xff]
        %v3818 = vld [vmem:[#allocation5 + $0x6c8] sm:$0xff]
        %v3819 = vld [vmem:[#allocation5 + $0x6d0] sm:$0xff]
        %v3820 = vld [vmem:[#allocation5 + $0x6d8] sm:$0xff]
        %v3821 = vld [vmem:[#allocation5 + $0x6e0] sm:$0xff]
        %v3822 = vld [vmem:[#allocation5 + $0x6e8] sm:$0xff]
        %v3823 = vld [vmem:[#allocation5 + $0x6f0] sm:$0xff]
        %v3824 = vld [vmem:[#allocation5 + $0x6f8] sm:$0xff]
        %v3825 = vld [vmem:[#allocation5 + $0x700] sm:$0xff]
        %v3826 = vld [vmem:[#allocation5 + $0x708] sm:$0xff]
        %v3827 = vld [vmem:[#allocation5 + $0x710] sm:$0xff]
        %v3828 = vld [vmem:[#allocation5 + $0x718] sm:$0xff]
        %v3829 = vld [vmem:[#allocation5 + $0x720] sm:$0xff]
        %v3830 = vld [vmem:[#allocation5 + $0x728] sm:$0xff]
        %v3831 = vld [vmem:[#allocation5 + $0x730] sm:$0xff]
        %v3832 = vld [vmem:[#allocation5 + $0x738] sm:$0xff]
        %v3833 = vld [vmem:[#allocation5 + $0x740] sm:$0xff]
        %v3834 = vld [vmem:[#allocation5 + $0x748] sm:$0xff]
        %v3835 = vld [vmem:[#allocation5 + $0x750] sm:$0xff]
        %v3836 = vld [vmem:[#allocation5 + $0x758] sm:$0xff]
        %v3837 = vld [vmem:[#allocation5 + $0x760] sm:$0xff]
        %v3838 = vld [vmem:[#allocation5 + $0x768] sm:$0xff]
        %v3839 = vld [vmem:[#allocation5 + $0x770] sm:$0xff]
        %v3840 = vld [vmem:[#allocation5 + $0x778] sm:$0xff]
        %v3841 = vld [vmem:[#allocation5 + $0x780] sm:$0xff]
        %v3842 = vld [vmem:[#allocation5 + $0x788] sm:$0xff]
        %v3843 = vld [vmem:[#allocation5 + $0x790] sm:$0xff]
        %v3844 = vld [vmem:[#allocation5 + $0x798] sm:$0xff]
        %v3845 = vld [vmem:[#allocation5 + $0x7a0] sm:$0xff]
        %v3846 = vld [vmem:[#allocation5 + $0x7a8] sm:$0xff]
        %v3847 = vld [vmem:[#allocation5 + $0x7b0] sm:$0xff]
        %v3848 = vld [vmem:[#allocation5 + $0x7b8] sm:$0xff]
        %v3849 = vld [vmem:[#allocation5 + $0x7c0] sm:$0xff]
        %v3850 = vld [vmem:[#allocation5 + $0x7c8] sm:$0xff]
        %v3851 = vld [vmem:[#allocation5 + $0x7d0] sm:$0xff]
        %v3852 = vld [vmem:[#allocation5 + $0x7d8] sm:$0xff]
        %v3853 = vld [vmem:[#allocation5 + $0x7e0] sm:$0xff]
        %v3854 = vld [vmem:[#allocation5 + $0x7e8] sm:$0xff]
        %v3855 = vld [vmem:[#allocation5 + $0x7f0] sm:$0xff]
        %v3856 = vld [vmem:[#allocation5 + $0x7f8] sm:$0xff]
        %v4113 = vunpack.c.l.b16 %v3601
        %v4114 = vunpack.c.h.b16 %v3601
        %v4115 = vunpack.c.l.b16 %v3602
        %v4116 = vunpack.c.h.b16 %v3602
        %v4117 = vunpack.c.l.b16 %v3603
        %v4118 = vunpack.c.h.b16 %v3603
        %v4119 = vunpack.c.l.b16 %v3604
        %v4120 = vunpack.c.h.b16 %v3604
        %v4121 = vunpack.c.l.b16 %v3605
        %v4122 = vunpack.c.h.b16 %v3605
        %v4123 = vunpack.c.l.b16 %v3606
        %v4124 = vunpack.c.h.b16 %v3606
        %v4125 = vunpack.c.l.b16 %v3607
        %v4126 = vunpack.c.h.b16 %v3607
        %v4127 = vunpack.c.l.b16 %v3608
        %v4128 = vunpack.c.h.b16 %v3608
        %v4129 = vunpack.c.l.b16 %v3609
        %v4130 = vunpack.c.h.b16 %v3609
        %v4131 = vunpack.c.l.b16 %v3610
        %v4132 = vunpack.c.h.b16 %v3610
        %v4133 = vunpack.c.l.b16 %v3611
        %v4134 = vunpack.c.h.b16 %v3611
        %v4135 = vunpack.c.l.b16 %v3612
        %v4136 = vunpack.c.h.b16 %v3612
        %v4137 = vunpack.c.l.b16 %v3613
        %v4138 = vunpack.c.h.b16 %v3613
        %v4139 = vunpack.c.l.b16 %v3614
        %v4140 = vunpack.c.h.b16 %v3614
        %v4141 = vunpack.c.l.b16 %v3615
        %v4142 = vunpack.c.h.b16 %v3615
        %v4143 = vunpack.c.l.b16 %v3616
        %v4144 = vunpack.c.h.b16 %v3616
        %v4145 = vunpack.c.l.b16 %v3617
        %v4146 = vunpack.c.h.b16 %v3617
        %v4147 = vunpack.c.l.b16 %v3618
        %v4148 = vunpack.c.h.b16 %v3618
        %v4149 = vunpack.c.l.b16 %v3619
        %v4150 = vunpack.c.h.b16 %v3619
        %v4151 = vunpack.c.l.b16 %v3620
        %v4152 = vunpack.c.h.b16 %v3620
        %v4153 = vunpack.c.l.b16 %v3621
        %v4154 = vunpack.c.h.b16 %v3621
        %v4155 = vunpack.c.l.b16 %v3622
        %v4156 = vunpack.c.h.b16 %v3622
        %v4157 = vunpack.c.l.b16 %v3623
        %v4158 = vunpack.c.h.b16 %v3623
        %v4159 = vunpack.c.l.b16 %v3624
        %v4160 = vunpack.c.h.b16 %v3624
        %v4161 = vunpack.c.l.b16 %v3625
        %v4162 = vunpack.c.h.b16 %v3625
        %v4163 = vunpack.c.l.b16 %v3626
        %v4164 = vunpack.c.h.b16 %v3626
        %v4165 = vunpack.c.l.b16 %v3627
        %v4166 = vunpack.c.h.b16 %v3627
        %v4167 = vunpack.c.l.b16 %v3628
        %v4168 = vunpack.c.h.b16 %v3628
        %v4169 = vunpack.c.l.b16 %v3629
        %v4170 = vunpack.c.h.b16 %v3629
        %v4171 = vunpack.c.l.b16 %v3630
        %v4172 = vunpack.c.h.b16 %v3630
        %v4173 = vunpack.c.l.b16 %v3631
        %v4174 = vunpack.c.h.b16 %v3631
        %v4175 = vunpack.c.l.b16 %v3632
        %v4176 = vunpack.c.h.b16 %v3632
        %v4177 = vunpack.c.l.b16 %v3633
        %v4178 = vunpack.c.h.b16 %v3633
        %v4179 = vunpack.c.l.b16 %v3634
        %v4180 = vunpack.c.h.b16 %v3634
        %v4181 = vunpack.c.l.b16 %v3635
        %v4182 = vunpack.c.h.b16 %v3635
        %v4183 = vunpack.c.l.b16 %v3636
        %v4184 = vunpack.c.h.b16 %v3636
        %v4185 = vunpack.c.l.b16 %v3637
        %v4186 = vunpack.c.h.b16 %v3637
        %v4187 = vunpack.c.l.b16 %v3638
        %v4188 = vunpack.c.h.b16 %v3638
        %v4189 = vunpack.c.l.b16 %v3639
        %v4190 = vunpack.c.h.b16 %v3639
        %v4191 = vunpack.c.l.b16 %v3640
        %v4192 = vunpack.c.h.b16 %v3640
        %v4193 = vunpack.c.l.b16 %v3641
        %v4194 = vunpack.c.h.b16 %v3641
        %v4195 = vunpack.c.l.b16 %v3642
        %v4196 = vunpack.c.h.b16 %v3642
        %v4197 = vunpack.c.l.b16 %v3643
        %v4198 = vunpack.c.h.b16 %v3643
        %v4199 = vunpack.c.l.b16 %v3644
        %v4200 = vunpack.c.h.b16 %v3644
        %v4201 = vunpack.c.l.b16 %v3645
        %v4202 = vunpack.c.h.b16 %v3645
        %v4203 = vunpack.c.l.b16 %v3646
        %v4204 = vunpack.c.h.b16 %v3646
        %v4205 = vunpack.c.l.b16 %v3647
        %v4206 = vunpack.c.h.b16 %v3647
        %v4207 = vunpack.c.l.b16 %v3648
        %v4208 = vunpack.c.h.b16 %v3648
        %v4209 = vunpack.c.l.b16 %v3649
        %v4210 = vunpack.c.h.b16 %v3649
        %v4211 = vunpack.c.l.b16 %v3650
        %v4212 = vunpack.c.h.b16 %v3650
        %v4213 = vunpack.c.l.b16 %v3651
        %v4214 = vunpack.c.h.b16 %v3651
        %v4215 = vunpack.c.l.b16 %v3652
        %v4216 = vunpack.c.h.b16 %v3652
        %v4217 = vunpack.c.l.b16 %v3653
        %v4218 = vunpack.c.h.b16 %v3653
        %v4219 = vunpack.c.l.b16 %v3654
        %v4220 = vunpack.c.h.b16 %v3654
        %v4221 = vunpack.c.l.b16 %v3655
        %v4222 = vunpack.c.h.b16 %v3655
        %v4223 = vunpack.c.l.b16 %v3656
        %v4224 = vunpack.c.h.b16 %v3656
        %v4225 = vunpack.c.l.b16 %v3657
        %v4226 = vunpack.c.h.b16 %v3657
        %v4227 = vunpack.c.l.b16 %v3658
        %v4228 = vunpack.c.h.b16 %v3658
        %v4229 = vunpack.c.l.b16 %v3659
        %v4230 = vunpack.c.h.b16 %v3659
        %v4231 = vunpack.c.l.b16 %v3660
        %v4232 = vunpack.c.h.b16 %v3660
        %v4233 = vunpack.c.l.b16 %v3661
        %v4234 = vunpack.c.h.b16 %v3661
        %v4235 = vunpack.c.l.b16 %v3662
        %v4236 = vunpack.c.h.b16 %v3662
        %v4237 = vunpack.c.l.b16 %v3663
        %v4238 = vunpack.c.h.b16 %v3663
        %v4239 = vunpack.c.l.b16 %v3664
        %v4240 = vunpack.c.h.b16 %v3664
        %v4241 = vunpack.c.l.b16 %v3665
        %v4242 = vunpack.c.h.b16 %v3665
        %v4243 = vunpack.c.l.b16 %v3666
        %v4244 = vunpack.c.h.b16 %v3666
        %v4245 = vunpack.c.l.b16 %v3667
        %v4246 = vunpack.c.h.b16 %v3667
        %v4247 = vunpack.c.l.b16 %v3668
        %v4248 = vunpack.c.h.b16 %v3668
        %v4249 = vunpack.c.l.b16 %v3669
        %v4250 = vunpack.c.h.b16 %v3669
        %v4251 = vunpack.c.l.b16 %v3670
        %v4252 = vunpack.c.h.b16 %v3670
        %v4253 = vunpack.c.l.b16 %v3671
        %v4254 = vunpack.c.h.b16 %v3671
        %v4255 = vunpack.c.l.b16 %v3672
        %v4256 = vunpack.c.h.b16 %v3672
        %v4257 = vunpack.c.l.b16 %v3673
        %v4258 = vunpack.c.h.b16 %v3673
        %v4259 = vunpack.c.l.b16 %v3674
        %v4260 = vunpack.c.h.b16 %v3674
        %v4261 = vunpack.c.l.b16 %v3675
        %v4262 = vunpack.c.h.b16 %v3675
        %v4263 = vunpack.c.l.b16 %v3676
        %v4264 = vunpack.c.h.b16 %v3676
        %v4265 = vunpack.c.l.b16 %v3677
        %v4266 = vunpack.c.h.b16 %v3677
        %v4267 = vunpack.c.l.b16 %v3678
        %v4268 = vunpack.c.h.b16 %v3678
        %v4269 = vunpack.c.l.b16 %v3679
        %v4270 = vunpack.c.h.b16 %v3679
        %v4271 = vunpack.c.l.b16 %v3680
        %v4272 = vunpack.c.h.b16 %v3680
        %v4273 = vunpack.c.l.b16 %v3681
        %v4274 = vunpack.c.h.b16 %v3681
        %v4275 = vunpack.c.l.b16 %v3682
        %v4276 = vunpack.c.h.b16 %v3682
        %v4277 = vunpack.c.l.b16 %v3683
        %v4278 = vunpack.c.h.b16 %v3683
        %v4279 = vunpack.c.l.b16 %v3684
        %v4280 = vunpack.c.h.b16 %v3684
        %v4281 = vunpack.c.l.b16 %v3685
        %v4282 = vunpack.c.h.b16 %v3685
        %v4283 = vunpack.c.l.b16 %v3686
        %v4284 = vunpack.c.h.b16 %v3686
        %v4285 = vunpack.c.l.b16 %v3687
        %v4286 = vunpack.c.h.b16 %v3687
        %v4287 = vunpack.c.l.b16 %v3688
        %v4288 = vunpack.c.h.b16 %v3688
        %v4289 = vunpack.c.l.b16 %v3689
        %v4290 = vunpack.c.h.b16 %v3689
        %v4291 = vunpack.c.l.b16 %v3690
        %v4292 = vunpack.c.h.b16 %v3690
        %v4293 = vunpack.c.l.b16 %v3691
        %v4294 = vunpack.c.h.b16 %v3691
        %v4295 = vunpack.c.l.b16 %v3692
        %v4296 = vunpack.c.h.b16 %v3692
        %v4297 = vunpack.c.l.b16 %v3693
        %v4298 = vunpack.c.h.b16 %v3693
        %v4299 = vunpack.c.l.b16 %v3694
        %v4300 = vunpack.c.h.b16 %v3694
        %v4301 = vunpack.c.l.b16 %v3695
        %v4302 = vunpack.c.h.b16 %v3695
        %v4303 = vunpack.c.l.b16 %v3696
        %v4304 = vunpack.c.h.b16 %v3696
        %v4305 = vunpack.c.l.b16 %v3697
        %v4306 = vunpack.c.h.b16 %v3697
        %v4307 = vunpack.c.l.b16 %v3698
        %v4308 = vunpack.c.h.b16 %v3698
        %v4309 = vunpack.c.l.b16 %v3699
        %v4310 = vunpack.c.h.b16 %v3699
        %v4311 = vunpack.c.l.b16 %v3700
        %v4312 = vunpack.c.h.b16 %v3700
        %v4313 = vunpack.c.l.b16 %v3701
        %v4314 = vunpack.c.h.b16 %v3701
        %v4315 = vunpack.c.l.b16 %v3702
        %v4316 = vunpack.c.h.b16 %v3702
        %v4317 = vunpack.c.l.b16 %v3703
        %v4318 = vunpack.c.h.b16 %v3703
        %v4319 = vunpack.c.l.b16 %v3704
        %v4320 = vunpack.c.h.b16 %v3704
        %v4321 = vunpack.c.l.b16 %v3705
        %v4322 = vunpack.c.h.b16 %v3705
        %v4323 = vunpack.c.l.b16 %v3706
        %v4324 = vunpack.c.h.b16 %v3706
        %v4325 = vunpack.c.l.b16 %v3707
        %v4326 = vunpack.c.h.b16 %v3707
        %v4327 = vunpack.c.l.b16 %v3708
        %v4328 = vunpack.c.h.b16 %v3708
        %v4329 = vunpack.c.l.b16 %v3709
        %v4330 = vunpack.c.h.b16 %v3709
        %v4331 = vunpack.c.l.b16 %v3710
        %v4332 = vunpack.c.h.b16 %v3710
        %v4333 = vunpack.c.l.b16 %v3711
        %v4334 = vunpack.c.h.b16 %v3711
        %v4335 = vunpack.c.l.b16 %v3712
        %v4336 = vunpack.c.h.b16 %v3712
        %v4337 = vunpack.c.l.b16 %v3713
        %v4338 = vunpack.c.h.b16 %v3713
        %v4339 = vunpack.c.l.b16 %v3714
        %v4340 = vunpack.c.h.b16 %v3714
        %v4341 = vunpack.c.l.b16 %v3715
        %v4342 = vunpack.c.h.b16 %v3715
        %v4343 = vunpack.c.l.b16 %v3716
        %v4344 = vunpack.c.h.b16 %v3716
        %v4345 = vunpack.c.l.b16 %v3717
        %v4346 = vunpack.c.h.b16 %v3717
        %v4347 = vunpack.c.l.b16 %v3718
        %v4348 = vunpack.c.h.b16 %v3718
        %v4349 = vunpack.c.l.b16 %v3719
        %v4350 = vunpack.c.h.b16 %v3719
        %v4351 = vunpack.c.l.b16 %v3720
        %v4352 = vunpack.c.h.b16 %v3720
        %v4353 = vunpack.c.l.b16 %v3721
        %v4354 = vunpack.c.h.b16 %v3721
        %v4355 = vunpack.c.l.b16 %v3722
        %v4356 = vunpack.c.h.b16 %v3722
        %v4357 = vunpack.c.l.b16 %v3723
        %v4358 = vunpack.c.h.b16 %v3723
        %v4359 = vunpack.c.l.b16 %v3724
        %v4360 = vunpack.c.h.b16 %v3724
        %v4361 = vunpack.c.l.b16 %v3725
        %v4362 = vunpack.c.h.b16 %v3725
        %v4363 = vunpack.c.l.b16 %v3726
        %v4364 = vunpack.c.h.b16 %v3726
        %v4365 = vunpack.c.l.b16 %v3727
        %v4366 = vunpack.c.h.b16 %v3727
        %v4367 = vunpack.c.l.b16 %v3728
        %v4368 = vunpack.c.h.b16 %v3728
        %v4369 = vunpack.c.l.b16 %v3729
        %v4370 = vunpack.c.h.b16 %v3729
        %v4371 = vunpack.c.l.b16 %v3730
        %v4372 = vunpack.c.h.b16 %v3730
        %v4373 = vunpack.c.l.b16 %v3731
        %v4374 = vunpack.c.h.b16 %v3731
        %v4375 = vunpack.c.l.b16 %v3732
        %v4376 = vunpack.c.h.b16 %v3732
        %v4377 = vunpack.c.l.b16 %v3733
        %v4378 = vunpack.c.h.b16 %v3733
        %v4379 = vunpack.c.l.b16 %v3734
        %v4380 = vunpack.c.h.b16 %v3734
        %v4381 = vunpack.c.l.b16 %v3735
        %v4382 = vunpack.c.h.b16 %v3735
        %v4383 = vunpack.c.l.b16 %v3736
        %v4384 = vunpack.c.h.b16 %v3736
        %v4385 = vunpack.c.l.b16 %v3737
        %v4386 = vunpack.c.h.b16 %v3737
        %v4387 = vunpack.c.l.b16 %v3738
        %v4388 = vunpack.c.h.b16 %v3738
        %v4389 = vunpack.c.l.b16 %v3739
        %v4390 = vunpack.c.h.b16 %v3739
        %v4391 = vunpack.c.l.b16 %v3740
        %v4392 = vunpack.c.h.b16 %v3740
        %v4393 = vunpack.c.l.b16 %v3741
        %v4394 = vunpack.c.h.b16 %v3741
        %v4395 = vunpack.c.l.b16 %v3742
        %v4396 = vunpack.c.h.b16 %v3742
        %v4397 = vunpack.c.l.b16 %v3743
        %v4398 = vunpack.c.h.b16 %v3743
        %v4399 = vunpack.c.l.b16 %v3744
        %v4400 = vunpack.c.h.b16 %v3744
        %v4401 = vunpack.c.l.b16 %v3745
        %v4402 = vunpack.c.h.b16 %v3745
        %v4403 = vunpack.c.l.b16 %v3746
        %v4404 = vunpack.c.h.b16 %v3746
        %v4405 = vunpack.c.l.b16 %v3747
        %v4406 = vunpack.c.h.b16 %v3747
        %v4407 = vunpack.c.l.b16 %v3748
        %v4408 = vunpack.c.h.b16 %v3748
        %v4409 = vunpack.c.l.b16 %v3749
        %v4410 = vunpack.c.h.b16 %v3749
        %v4411 = vunpack.c.l.b16 %v3750
        %v4412 = vunpack.c.h.b16 %v3750
        %v4413 = vunpack.c.l.b16 %v3751
        %v4414 = vunpack.c.h.b16 %v3751
        %v4415 = vunpack.c.l.b16 %v3752
        %v4416 = vunpack.c.h.b16 %v3752
        %v4417 = vunpack.c.l.b16 %v3753
        %v4418 = vunpack.c.h.b16 %v3753
        %v4419 = vunpack.c.l.b16 %v3754
        %v4420 = vunpack.c.h.b16 %v3754
        %v4421 = vunpack.c.l.b16 %v3755
        %v4422 = vunpack.c.h.b16 %v3755
        %v4423 = vunpack.c.l.b16 %v3756
        %v4424 = vunpack.c.h.b16 %v3756
        %v4425 = vunpack.c.l.b16 %v3757
        %v4426 = vunpack.c.h.b16 %v3757
        %v4427 = vunpack.c.l.b16 %v3758
        %v4428 = vunpack.c.h.b16 %v3758
        %v4429 = vunpack.c.l.b16 %v3759
        %v4430 = vunpack.c.h.b16 %v3759
        %v4431 = vunpack.c.l.b16 %v3760
        %v4432 = vunpack.c.h.b16 %v3760
        %v4433 = vunpack.c.l.b16 %v3761
        %v4434 = vunpack.c.h.b16 %v3761
        %v4435 = vunpack.c.l.b16 %v3762
        %v4436 = vunpack.c.h.b16 %v3762
        %v4437 = vunpack.c.l.b16 %v3763
        %v4438 = vunpack.c.h.b16 %v3763
        %v4439 = vunpack.c.l.b16 %v3764
        %v4440 = vunpack.c.h.b16 %v3764
        %v4441 = vunpack.c.l.b16 %v3765
        %v4442 = vunpack.c.h.b16 %v3765
        %v4443 = vunpack.c.l.b16 %v3766
        %v4444 = vunpack.c.h.b16 %v3766
        %v4445 = vunpack.c.l.b16 %v3767
        %v4446 = vunpack.c.h.b16 %v3767
        %v4447 = vunpack.c.l.b16 %v3768
        %v4448 = vunpack.c.h.b16 %v3768
        %v4449 = vunpack.c.l.b16 %v3769
        %v4450 = vunpack.c.h.b16 %v3769
        %v4451 = vunpack.c.l.b16 %v3770
        %v4452 = vunpack.c.h.b16 %v3770
        %v4453 = vunpack.c.l.b16 %v3771
        %v4454 = vunpack.c.h.b16 %v3771
        %v4455 = vunpack.c.l.b16 %v3772
        %v4456 = vunpack.c.h.b16 %v3772
        %v4457 = vunpack.c.l.b16 %v3773
        %v4458 = vunpack.c.h.b16 %v3773
        %v4459 = vunpack.c.l.b16 %v3774
        %v4460 = vunpack.c.h.b16 %v3774
        %v4461 = vunpack.c.l.b16 %v3775
        %v4462 = vunpack.c.h.b16 %v3775
        %v4463 = vunpack.c.l.b16 %v3776
        %v4464 = vunpack.c.h.b16 %v3776
        %v4465 = vunpack.c.l.b16 %v3777
        %v4466 = vunpack.c.h.b16 %v3777
        %v4467 = vunpack.c.l.b16 %v3778
        %v4468 = vunpack.c.h.b16 %v3778
        %v4469 = vunpack.c.l.b16 %v3779
        %v4470 = vunpack.c.h.b16 %v3779
        %v4471 = vunpack.c.l.b16 %v3780
        %v4472 = vunpack.c.h.b16 %v3780
        %v4473 = vunpack.c.l.b16 %v3781
        %v4474 = vunpack.c.h.b16 %v3781
        %v4475 = vunpack.c.l.b16 %v3782
        %v4476 = vunpack.c.h.b16 %v3782
        %v4477 = vunpack.c.l.b16 %v3783
        %v4478 = vunpack.c.h.b16 %v3783
        %v4479 = vunpack.c.l.b16 %v3784
        %v4480 = vunpack.c.h.b16 %v3784
        %v4481 = vunpack.c.l.b16 %v3785
        %v4482 = vunpack.c.h.b16 %v3785
        %v4483 = vunpack.c.l.b16 %v3786
        %v4484 = vunpack.c.h.b16 %v3786
        %v4485 = vunpack.c.l.b16 %v3787
        %v4486 = vunpack.c.h.b16 %v3787
        %v4487 = vunpack.c.l.b16 %v3788
        %v4488 = vunpack.c.h.b16 %v3788
        %v4489 = vunpack.c.l.b16 %v3789
        %v4490 = vunpack.c.h.b16 %v3789
        %v4491 = vunpack.c.l.b16 %v3790
        %v4492 = vunpack.c.h.b16 %v3790
        %v4493 = vunpack.c.l.b16 %v3791
        %v4494 = vunpack.c.h.b16 %v3791
        %v4495 = vunpack.c.l.b16 %v3792
        %v4496 = vunpack.c.h.b16 %v3792
        %v4497 = vunpack.c.l.b16 %v3793
        %v4498 = vunpack.c.h.b16 %v3793
        %v4499 = vunpack.c.l.b16 %v3794
        %v4500 = vunpack.c.h.b16 %v3794
        %v4501 = vunpack.c.l.b16 %v3795
        %v4502 = vunpack.c.h.b16 %v3795
        %v4503 = vunpack.c.l.b16 %v3796
        %v4504 = vunpack.c.h.b16 %v3796
        %v4505 = vunpack.c.l.b16 %v3797
        %v4506 = vunpack.c.h.b16 %v3797
        %v4507 = vunpack.c.l.b16 %v3798
        %v4508 = vunpack.c.h.b16 %v3798
        %v4509 = vunpack.c.l.b16 %v3799
        %v4510 = vunpack.c.h.b16 %v3799
        %v4511 = vunpack.c.l.b16 %v3800
        %v4512 = vunpack.c.h.b16 %v3800
        %v4513 = vunpack.c.l.b16 %v3801
        %v4514 = vunpack.c.h.b16 %v3801
        %v4515 = vunpack.c.l.b16 %v3802
        %v4516 = vunpack.c.h.b16 %v3802
        %v4517 = vunpack.c.l.b16 %v3803
        %v4518 = vunpack.c.h.b16 %v3803
        %v4519 = vunpack.c.l.b16 %v3804
        %v4520 = vunpack.c.h.b16 %v3804
        %v4521 = vunpack.c.l.b16 %v3805
        %v4522 = vunpack.c.h.b16 %v3805
        %v4523 = vunpack.c.l.b16 %v3806
        %v4524 = vunpack.c.h.b16 %v3806
        %v4525 = vunpack.c.l.b16 %v3807
        %v4526 = vunpack.c.h.b16 %v3807
        %v4527 = vunpack.c.l.b16 %v3808
        %v4528 = vunpack.c.h.b16 %v3808
        %v4529 = vunpack.c.l.b16 %v3809
        %v4530 = vunpack.c.h.b16 %v3809
        %v4531 = vunpack.c.l.b16 %v3810
        %v4532 = vunpack.c.h.b16 %v3810
        %v4533 = vunpack.c.l.b16 %v3811
        %v4534 = vunpack.c.h.b16 %v3811
        %v4535 = vunpack.c.l.b16 %v3812
        %v4536 = vunpack.c.h.b16 %v3812
        %v4537 = vunpack.c.l.b16 %v3813
        %v4538 = vunpack.c.h.b16 %v3813
        %v4539 = vunpack.c.l.b16 %v3814
        %v4540 = vunpack.c.h.b16 %v3814
        %v4541 = vunpack.c.l.b16 %v3815
        %v4542 = vunpack.c.h.b16 %v3815
        %v4543 = vunpack.c.l.b16 %v3816
        %v4544 = vunpack.c.h.b16 %v3816
        %v4545 = vunpack.c.l.b16 %v3817
        %v4546 = vunpack.c.h.b16 %v3817
        %v4547 = vunpack.c.l.b16 %v3818
        %v4548 = vunpack.c.h.b16 %v3818
        %v4549 = vunpack.c.l.b16 %v3819
        %v4550 = vunpack.c.h.b16 %v3819
        %v4551 = vunpack.c.l.b16 %v3820
        %v4552 = vunpack.c.h.b16 %v3820
        %v4553 = vunpack.c.l.b16 %v3821
        %v4554 = vunpack.c.h.b16 %v3821
        %v4555 = vunpack.c.l.b16 %v3822
        %v4556 = vunpack.c.h.b16 %v3822
        %v4557 = vunpack.c.l.b16 %v3823
        %v4558 = vunpack.c.h.b16 %v3823
        %v4559 = vunpack.c.l.b16 %v3824
        %v4560 = vunpack.c.h.b16 %v3824
        %v4561 = vunpack.c.l.b16 %v3825
        %v4562 = vunpack.c.h.b16 %v3825
        %v4563 = vunpack.c.l.b16 %v3826
        %v4564 = vunpack.c.h.b16 %v3826
        %v4565 = vunpack.c.l.b16 %v3827
        %v4566 = vunpack.c.h.b16 %v3827
        %v4567 = vunpack.c.l.b16 %v3828
        %v4568 = vunpack.c.h.b16 %v3828
        %v4569 = vunpack.c.l.b16 %v3829
        %v4570 = vunpack.c.h.b16 %v3829
        %v4571 = vunpack.c.l.b16 %v3830
        %v4572 = vunpack.c.h.b16 %v3830
        %v4573 = vunpack.c.l.b16 %v3831
        %v4574 = vunpack.c.h.b16 %v3831
        %v4575 = vunpack.c.l.b16 %v3832
        %v4576 = vunpack.c.h.b16 %v3832
        %v4577 = vunpack.c.l.b16 %v3833
        %v4578 = vunpack.c.h.b16 %v3833
        %v4579 = vunpack.c.l.b16 %v3834
        %v4580 = vunpack.c.h.b16 %v3834
        %v4581 = vunpack.c.l.b16 %v3835
        %v4582 = vunpack.c.h.b16 %v3835
        %v4583 = vunpack.c.l.b16 %v3836
        %v4584 = vunpack.c.h.b16 %v3836
        %v4585 = vunpack.c.l.b16 %v3837
        %v4586 = vunpack.c.h.b16 %v3837
        %v4587 = vunpack.c.l.b16 %v3838
        %v4588 = vunpack.c.h.b16 %v3838
        %v4589 = vunpack.c.l.b16 %v3839
        %v4590 = vunpack.c.h.b16 %v3839
        %v4591 = vunpack.c.l.b16 %v3840
        %v4592 = vunpack.c.h.b16 %v3840
        %v4593 = vunpack.c.l.b16 %v3841
        %v4594 = vunpack.c.h.b16 %v3841
        %v4595 = vunpack.c.l.b16 %v3842
        %v4596 = vunpack.c.h.b16 %v3842
        %v4597 = vunpack.c.l.b16 %v3843
        %v4598 = vunpack.c.h.b16 %v3843
        %v4599 = vunpack.c.l.b16 %v3844
        %v4600 = vunpack.c.h.b16 %v3844
        %v4601 = vunpack.c.l.b16 %v3845
        %v4602 = vunpack.c.h.b16 %v3845
        %v4603 = vunpack.c.l.b16 %v3846
        %v4604 = vunpack.c.h.b16 %v3846
        %v4605 = vunpack.c.l.b16 %v3847
        %v4606 = vunpack.c.h.b16 %v3847
        %v4607 = vunpack.c.l.b16 %v3848
        %v4608 = vunpack.c.h.b16 %v3848
        %v4609 = vunpack.c.l.b16 %v3849
        %v4610 = vunpack.c.h.b16 %v3849
        %v4611 = vunpack.c.l.b16 %v3850
        %v4612 = vunpack.c.h.b16 %v3850
        %v4613 = vunpack.c.l.b16 %v3851
        %v4614 = vunpack.c.h.b16 %v3851
        %v4615 = vunpack.c.l.b16 %v3852
        %v4616 = vunpack.c.h.b16 %v3852
        %v4617 = vunpack.c.l.b16 %v3853
        %v4618 = vunpack.c.h.b16 %v3853
        %v4619 = vunpack.c.l.b16 %v3854
        %v4620 = vunpack.c.h.b16 %v3854
        %v4621 = vunpack.c.l.b16 %v3855
        %v4622 = vunpack.c.h.b16 %v3855
        %v4623 = vunpack.c.l.b16 %v3856
        %v4624 = vunpack.c.h.b16 %v3856
        %v4625 = vpack.c.b16 %v4121, %v4113
        %v4626 = vpack.c.b16 %v4122, %v4114
        %v4627 = vpack.c.b16 %v4123, %v4115
        %v4628 = vpack.c.b16 %v4124, %v4116
        %v4629 = vpack.c.b16 %v4125, %v4117
        %v4630 = vpack.c.b16 %v4126, %v4118
        %v4631 = vpack.c.b16 %v4127, %v4119
        %v4632 = vpack.c.b16 %v4128, %v4120
        %v4633 = vpack.c.b16 %v4137, %v4129
        %v4634 = vpack.c.b16 %v4138, %v4130
        %v4635 = vpack.c.b16 %v4139, %v4131
        %v4636 = vpack.c.b16 %v4140, %v4132
        %v4637 = vpack.c.b16 %v4141, %v4133
        %v4638 = vpack.c.b16 %v4142, %v4134
        %v4639 = vpack.c.b16 %v4143, %v4135
        %v4640 = vpack.c.b16 %v4144, %v4136
        %v4641 = vpack.c.b16 %v4153, %v4145
        %v4642 = vpack.c.b16 %v4154, %v4146
        %v4643 = vpack.c.b16 %v4155, %v4147
        %v4644 = vpack.c.b16 %v4156, %v4148
        %v4645 = vpack.c.b16 %v4157, %v4149
        %v4646 = vpack.c.b16 %v4158, %v4150
        %v4647 = vpack.c.b16 %v4159, %v4151
        %v4648 = vpack.c.b16 %v4160, %v4152
        %v4649 = vpack.c.b16 %v4169, %v4161
        %v4650 = vpack.c.b16 %v4170, %v4162
        %v4651 = vpack.c.b16 %v4171, %v4163
        %v4652 = vpack.c.b16 %v4172, %v4164
        %v4653 = vpack.c.b16 %v4173, %v4165
        %v4654 = vpack.c.b16 %v4174, %v4166
        %v4655 = vpack.c.b16 %v4175, %v4167
        %v4656 = vpack.c.b16 %v4176, %v4168
        %v4657 = vpack.c.b16 %v4185, %v4177
        %v4658 = vpack.c.b16 %v4186, %v4178
        %v4659 = vpack.c.b16 %v4187, %v4179
        %v4660 = vpack.c.b16 %v4188, %v4180
        %v4661 = vpack.c.b16 %v4189, %v4181
        %v4662 = vpack.c.b16 %v4190, %v4182
        %v4663 = vpack.c.b16 %v4191, %v4183
        %v4664 = vpack.c.b16 %v4192, %v4184
        %v4665 = vpack.c.b16 %v4201, %v4193
        %v4666 = vpack.c.b16 %v4202, %v4194
        %v4667 = vpack.c.b16 %v4203, %v4195
        %v4668 = vpack.c.b16 %v4204, %v4196
        %v4669 = vpack.c.b16 %v4205, %v4197
        %v4670 = vpack.c.b16 %v4206, %v4198
        %v4671 = vpack.c.b16 %v4207, %v4199
        %v4672 = vpack.c.b16 %v4208, %v4200
        %v4673 = vpack.c.b16 %v4217, %v4209
        %v4674 = vpack.c.b16 %v4218, %v4210
        %v4675 = vpack.c.b16 %v4219, %v4211
        %v4676 = vpack.c.b16 %v4220, %v4212
        %v4677 = vpack.c.b16 %v4221, %v4213
        %v4678 = vpack.c.b16 %v4222, %v4214
        %v4679 = vpack.c.b16 %v4223, %v4215
        %v4680 = vpack.c.b16 %v4224, %v4216
        %v4681 = vpack.c.b16 %v4233, %v4225
        %v4682 = vpack.c.b16 %v4234, %v4226
        %v4683 = vpack.c.b16 %v4235, %v4227
        %v4684 = vpack.c.b16 %v4236, %v4228
        %v4685 = vpack.c.b16 %v4237, %v4229
        %v4686 = vpack.c.b16 %v4238, %v4230
        %v4687 = vpack.c.b16 %v4239, %v4231
        %v4688 = vpack.c.b16 %v4240, %v4232
        %v4689 = vpack.c.b16 %v4249, %v4241
        %v4690 = vpack.c.b16 %v4250, %v4242
        %v4691 = vpack.c.b16 %v4251, %v4243
        %v4692 = vpack.c.b16 %v4252, %v4244
        %v4693 = vpack.c.b16 %v4253, %v4245
        %v4694 = vpack.c.b16 %v4254, %v4246
        %v4695 = vpack.c.b16 %v4255, %v4247
        %v4696 = vpack.c.b16 %v4256, %v4248
        %v4697 = vpack.c.b16 %v4265, %v4257
        %v4698 = vpack.c.b16 %v4266, %v4258
        %v4699 = vpack.c.b16 %v4267, %v4259
        %v4700 = vpack.c.b16 %v4268, %v4260
        %v4701 = vpack.c.b16 %v4269, %v4261
        %v4702 = vpack.c.b16 %v4270, %v4262
        %v4703 = vpack.c.b16 %v4271, %v4263
        %v4704 = vpack.c.b16 %v4272, %v4264
        %v4705 = vpack.c.b16 %v4281, %v4273
        %v4706 = vpack.c.b16 %v4282, %v4274
        %v4707 = vpack.c.b16 %v4283, %v4275
        %v4708 = vpack.c.b16 %v4284, %v4276
        %v4709 = vpack.c.b16 %v4285, %v4277
        %v4710 = vpack.c.b16 %v4286, %v4278
        %v4711 = vpack.c.b16 %v4287, %v4279
        %v4712 = vpack.c.b16 %v4288, %v4280
        %v4713 = vpack.c.b16 %v4297, %v4289
        %v4714 = vpack.c.b16 %v4298, %v4290
        %v4715 = vpack.c.b16 %v4299, %v4291
        %v4716 = vpack.c.b16 %v4300, %v4292
        %v4717 = vpack.c.b16 %v4301, %v4293
        %v4718 = vpack.c.b16 %v4302, %v4294
        %v4719 = vpack.c.b16 %v4303, %v4295
        %v4720 = vpack.c.b16 %v4304, %v4296
        %v4721 = vpack.c.b16 %v4313, %v4305
        %v4722 = vpack.c.b16 %v4314, %v4306
        %v4723 = vpack.c.b16 %v4315, %v4307
        %v4724 = vpack.c.b16 %v4316, %v4308
        %v4725 = vpack.c.b16 %v4317, %v4309
        %v4726 = vpack.c.b16 %v4318, %v4310
        %v4727 = vpack.c.b16 %v4319, %v4311
        %v4728 = vpack.c.b16 %v4320, %v4312
        %v4729 = vpack.c.b16 %v4329, %v4321
        %v4730 = vpack.c.b16 %v4330, %v4322
        %v4731 = vpack.c.b16 %v4331, %v4323
        %v4732 = vpack.c.b16 %v4332, %v4324
        %v4733 = vpack.c.b16 %v4333, %v4325
        %v4734 = vpack.c.b16 %v4334, %v4326
        %v4735 = vpack.c.b16 %v4335, %v4327
        %v4736 = vpack.c.b16 %v4336, %v4328
        %v4737 = vpack.c.b16 %v4345, %v4337
        %v4738 = vpack.c.b16 %v4346, %v4338
        %v4739 = vpack.c.b16 %v4347, %v4339
        %v4740 = vpack.c.b16 %v4348, %v4340
        %v4741 = vpack.c.b16 %v4349, %v4341
        %v4742 = vpack.c.b16 %v4350, %v4342
        %v4743 = vpack.c.b16 %v4351, %v4343
        %v4744 = vpack.c.b16 %v4352, %v4344
        %v4745 = vpack.c.b16 %v4361, %v4353
        %v4746 = vpack.c.b16 %v4362, %v4354
        %v4747 = vpack.c.b16 %v4363, %v4355
        %v4748 = vpack.c.b16 %v4364, %v4356
        %v4749 = vpack.c.b16 %v4365, %v4357
        %v4750 = vpack.c.b16 %v4366, %v4358
        %v4751 = vpack.c.b16 %v4367, %v4359
        %v4752 = vpack.c.b16 %v4368, %v4360
        %v4753 = vpack.c.b16 %v4377, %v4369
        %v4754 = vpack.c.b16 %v4378, %v4370
        %v4755 = vpack.c.b16 %v4379, %v4371
        %v4756 = vpack.c.b16 %v4380, %v4372
        %v4757 = vpack.c.b16 %v4381, %v4373
        %v4758 = vpack.c.b16 %v4382, %v4374
        %v4759 = vpack.c.b16 %v4383, %v4375
        %v4760 = vpack.c.b16 %v4384, %v4376
        %v4761 = vpack.c.b16 %v4393, %v4385
        %v4762 = vpack.c.b16 %v4394, %v4386
        %v4763 = vpack.c.b16 %v4395, %v4387
        %v4764 = vpack.c.b16 %v4396, %v4388
        %v4765 = vpack.c.b16 %v4397, %v4389
        %v4766 = vpack.c.b16 %v4398, %v4390
        %v4767 = vpack.c.b16 %v4399, %v4391
        %v4768 = vpack.c.b16 %v4400, %v4392
        %v4769 = vpack.c.b16 %v4409, %v4401
        %v4770 = vpack.c.b16 %v4410, %v4402
        %v4771 = vpack.c.b16 %v4411, %v4403
        %v4772 = vpack.c.b16 %v4412, %v4404
        %v4773 = vpack.c.b16 %v4413, %v4405
        %v4774 = vpack.c.b16 %v4414, %v4406
        %v4775 = vpack.c.b16 %v4415, %v4407
        %v4776 = vpack.c.b16 %v4416, %v4408
        %v4777 = vpack.c.b16 %v4425, %v4417
        %v4778 = vpack.c.b16 %v4426, %v4418
        %v4779 = vpack.c.b16 %v4427, %v4419
        %v4780 = vpack.c.b16 %v4428, %v4420
        %v4781 = vpack.c.b16 %v4429, %v4421
        %v4782 = vpack.c.b16 %v4430, %v4422
        %v4783 = vpack.c.b16 %v4431, %v4423
        %v4784 = vpack.c.b16 %v4432, %v4424
        %v4785 = vpack.c.b16 %v4441, %v4433
        %v4786 = vpack.c.b16 %v4442, %v4434
        %v4787 = vpack.c.b16 %v4443, %v4435
        %v4788 = vpack.c.b16 %v4444, %v4436
        %v4789 = vpack.c.b16 %v4445, %v4437
        %v4790 = vpack.c.b16 %v4446, %v4438
        %v4791 = vpack.c.b16 %v4447, %v4439
        %v4792 = vpack.c.b16 %v4448, %v4440
        %v4793 = vpack.c.b16 %v4457, %v4449
        %v4794 = vpack.c.b16 %v4458, %v4450
        %v4795 = vpack.c.b16 %v4459, %v4451
        %v4796 = vpack.c.b16 %v4460, %v4452
        %v4797 = vpack.c.b16 %v4461, %v4453
        %v4798 = vpack.c.b16 %v4462, %v4454
        %v4799 = vpack.c.b16 %v4463, %v4455
        %v4800 = vpack.c.b16 %v4464, %v4456
        %v4801 = vpack.c.b16 %v4473, %v4465
        %v4802 = vpack.c.b16 %v4474, %v4466
        %v4803 = vpack.c.b16 %v4475, %v4467
        %v4804 = vpack.c.b16 %v4476, %v4468
        %v4805 = vpack.c.b16 %v4477, %v4469
        %v4806 = vpack.c.b16 %v4478, %v4470
        %v4807 = vpack.c.b16 %v4479, %v4471
        %v4808 = vpack.c.b16 %v4480, %v4472
        %v4809 = vpack.c.b16 %v4489, %v4481
        %v4810 = vpack.c.b16 %v4490, %v4482
        %v4811 = vpack.c.b16 %v4491, %v4483
        %v4812 = vpack.c.b16 %v4492, %v4484
        %v4813 = vpack.c.b16 %v4493, %v4485
        %v4814 = vpack.c.b16 %v4494, %v4486
        %v4815 = vpack.c.b16 %v4495, %v4487
        %v4816 = vpack.c.b16 %v4496, %v4488
        %v4817 = vpack.c.b16 %v4505, %v4497
        %v4818 = vpack.c.b16 %v4506, %v4498
        %v4819 = vpack.c.b16 %v4507, %v4499
        %v4820 = vpack.c.b16 %v4508, %v4500
        %v4821 = vpack.c.b16 %v4509, %v4501
        %v4822 = vpack.c.b16 %v4510, %v4502
        %v4823 = vpack.c.b16 %v4511, %v4503
        %v4824 = vpack.c.b16 %v4512, %v4504
        %v4825 = vpack.c.b16 %v4521, %v4513
        %v4826 = vpack.c.b16 %v4522, %v4514
        %v4827 = vpack.c.b16 %v4523, %v4515
        %v4828 = vpack.c.b16 %v4524, %v4516
        %v4829 = vpack.c.b16 %v4525, %v4517
        %v4830 = vpack.c.b16 %v4526, %v4518
        %v4831 = vpack.c.b16 %v4527, %v4519
        %v4832 = vpack.c.b16 %v4528, %v4520
        %v4833 = vpack.c.b16 %v4537, %v4529
        %v4834 = vpack.c.b16 %v4538, %v4530
        %v4835 = vpack.c.b16 %v4539, %v4531
        %v4836 = vpack.c.b16 %v4540, %v4532
        %v4837 = vpack.c.b16 %v4541, %v4533
        %v4838 = vpack.c.b16 %v4542, %v4534
        %v4839 = vpack.c.b16 %v4543, %v4535
        %v4840 = vpack.c.b16 %v4544, %v4536
        %v4841 = vpack.c.b16 %v4553, %v4545
        %v4842 = vpack.c.b16 %v4554, %v4546
        %v4843 = vpack.c.b16 %v4555, %v4547
        %v4844 = vpack.c.b16 %v4556, %v4548
        %v4845 = vpack.c.b16 %v4557, %v4549
        %v4846 = vpack.c.b16 %v4558, %v4550
        %v4847 = vpack.c.b16 %v4559, %v4551
        %v4848 = vpack.c.b16 %v4560, %v4552
        %v4849 = vpack.c.b16 %v4569, %v4561
        %v4850 = vpack.c.b16 %v4570, %v4562
        %v4851 = vpack.c.b16 %v4571, %v4563
        %v4852 = vpack.c.b16 %v4572, %v4564
        %v4853 = vpack.c.b16 %v4573, %v4565
        %v4854 = vpack.c.b16 %v4574, %v4566
        %v4855 = vpack.c.b16 %v4575, %v4567
        %v4856 = vpack.c.b16 %v4576, %v4568
        %v4857 = vpack.c.b16 %v4585, %v4577
        %v4858 = vpack.c.b16 %v4586, %v4578
        %v4859 = vpack.c.b16 %v4587, %v4579
        %v4860 = vpack.c.b16 %v4588, %v4580
        %v4861 = vpack.c.b16 %v4589, %v4581
        %v4862 = vpack.c.b16 %v4590, %v4582
        %v4863 = vpack.c.b16 %v4591, %v4583
        %v4864 = vpack.c.b16 %v4592, %v4584
        %v4865 = vpack.c.b16 %v4601, %v4593
        %v4866 = vpack.c.b16 %v4602, %v4594
        %v4867 = vpack.c.b16 %v4603, %v4595
        %v4868 = vpack.c.b16 %v4604, %v4596
        %v4869 = vpack.c.b16 %v4605, %v4597
        %v4870 = vpack.c.b16 %v4606, %v4598
        %v4871 = vpack.c.b16 %v4607, %v4599
        %v4872 = vpack.c.b16 %v4608, %v4600
        %v4873 = vpack.c.b16 %v4617, %v4609
        %v4874 = vpack.c.b16 %v4618, %v4610
        %v4875 = vpack.c.b16 %v4619, %v4611
        %v4876 = vpack.c.b16 %v4620, %v4612
        %v4877 = vpack.c.b16 %v4621, %v4613
        %v4878 = vpack.c.b16 %v4622, %v4614
        %v4879 = vpack.c.b16 %v4623, %v4615
        %v4880 = vpack.c.b16 %v4624, %v4616
        %5137 = vmatprep.subr.bf16.mxu0 %v4682
        %5138 = vmatpush1.bf16.msra.mxu0 %v4681
        %5139 = vmatprep.subr.bf16.mxu0 %v4674
        %5140 = vmatpush1.bf16.msra.mxu0 %v4673
        %5141 = vmatprep.subr.bf16.mxu0 %v4666
        %5142 = vmatpush1.bf16.msra.mxu0 %v4665
        %5143 = vmatprep.subr.bf16.mxu0 %v4658
        %5144 = vmatpush1.bf16.msra.mxu0 %v4657
        %5145 = vmatprep.subr.bf16.mxu0 %v4650
        %5146 = vmatpush1.bf16.msra.mxu0 %v4649
        %5147 = vmatprep.subr.bf16.mxu0 %v4642
        %5148 = vmatpush1.bf16.msra.mxu0 %v4641
        %5149 = vmatprep.subr.bf16.mxu0 %v4634
        %5150 = vmatpush1.bf16.msra.mxu0 %v4633
        %5151 = vmatprep.subr.bf16.mxu0 %v4626
        %5152 = vmatpush1.bf16.msra.mxu0 %v4625
        %5153 = vmatprep.subr.bf16.mxu0 %v4746
        %5154 = vmatpush2.bf16.msra.mxu0 %v4745
        %5155 = vmatprep.subr.bf16.mxu0 %v4738
        %5156 = vmatpush2.bf16.msra.mxu0 %v4737
        %5157 = vmatprep.subr.bf16.mxu0 %v4730
        %5158 = vmatpush2.bf16.msra.mxu0 %v4729
        %5159 = vmatprep.subr.bf16.mxu0 %v4722
        %5160 = vmatpush2.bf16.msra.mxu0 %v4721
        %5161 = vmatprep.subr.bf16.mxu0 %v4714
        %5162 = vmatpush2.bf16.msra.mxu0 %v4713
        %5163 = vmatprep.subr.bf16.mxu0 %v4706
        %5164 = vmatpush2.bf16.msra.mxu0 %v4705
        %5165 = vmatprep.subr.bf16.mxu0 %v4698
        %5166 = vmatpush2.bf16.msra.mxu0 %v4697
        %5167 = vmatprep.subr.bf16.mxu0 %v4690
        %5168 = vmatpush2.bf16.msra.mxu0 %v4689
        %5169 = vmatprep.mubr.bf16.mxu0 %v3598
        %5170 = vmatmul.mubr.bf16.gmra.mxu0 %v3597
        %v5171 = vpop.f32.mrf.mxu0
        %v5172 = vadd.f32 0.0, %v5171
        %v5173 = vpop.f32.mrf.mxu0
        %v5174 = vadd.f32 0.0, %v5173
        %v5175 = vpop.f32.mrf.mxu0
        %v5176 = vadd.f32 0.0, %v5175
        %v5177 = vpop.f32.mrf.mxu0
        %v5178 = vadd.f32 0.0, %v5177
        %5179 = vdwg.mxu0
        %5180 = vmatprep.subr.bf16.mxu0 %v4810
        %5181 = vmatpush1.bf16.msra.mxu0 %v4809
        %5182 = vmatprep.subr.bf16.mxu0 %v4802
        %5183 = vmatpush1.bf16.msra.mxu0 %v4801
        %5184 = vmatprep.subr.bf16.mxu0 %v4794
        %5185 = vmatpush1.bf16.msra.mxu0 %v4793
        %5186 = vmatprep.subr.bf16.mxu0 %v4786
        %5187 = vmatpush1.bf16.msra.mxu0 %v4785
        %5188 = vmatprep.subr.bf16.mxu0 %v4778
        %5189 = vmatpush1.bf16.msra.mxu0 %v4777
        %5190 = vmatprep.subr.bf16.mxu0 %v4770
        %5191 = vmatpush1.bf16.msra.mxu0 %v4769
        %5192 = vmatprep.subr.bf16.mxu0 %v4762
        %5193 = vmatpush1.bf16.msra.mxu0 %v4761
        %5194 = vmatprep.subr.bf16.mxu0 %v4754
        %5195 = vmatpush1.bf16.msra.mxu0 %v4753
        %5196 = vmatprep.subr.bf16.mxu0 %v4874
        %5197 = vmatpush2.bf16.msra.mxu0 %v4873
        %5198 = vmatprep.subr.bf16.mxu0 %v4866
        %5199 = vmatpush2.bf16.msra.mxu0 %v4865
        %5200 = vmatprep.subr.bf16.mxu0 %v4858
        %5201 = vmatpush2.bf16.msra.mxu0 %v4857
        %5202 = vmatprep.subr.bf16.mxu0 %v4850
        %5203 = vmatpush2.bf16.msra.mxu0 %v4849
        %5204 = vmatprep.subr.bf16.mxu0 %v4842
        %5205 = vmatpush2.bf16.msra.mxu0 %v4841
        %5206 = vmatprep.subr.bf16.mxu0 %v4834
        %5207 = vmatpush2.bf16.msra.mxu0 %v4833
        %5208 = vmatprep.subr.bf16.mxu0 %v4826
        %5209 = vmatpush2.bf16.msra.mxu0 %v4825
        %5210 = vmatprep.subr.bf16.mxu0 %v4818
        %5211 = vmatpush2.bf16.msra.mxu0 %v4817
        %5212 = vmatprep.mubr.bf16.mxu0 %v3600
        %5213 = vmatmul.mubr.bf16.gmra.mxu0 %v3599
        %v5214 = vpop.f32.mrf.mxu0
        %v5215 = vadd.f32 %v5172, %v5214
        %v5216 = vpop.f32.mrf.mxu0
        %v5217 = vadd.f32 %v5174, %v5216
        %v5218 = vpop.f32.mrf.mxu0
        %v5219 = vadd.f32 %v5176, %v5218
        %v5220 = vpop.f32.mrf.mxu0
        %v5221 = vadd.f32 %v5178, %v5220
        %5222 = vdwg.mxu0
        %5223 = vmatprep.subr.bf16.mxu0 %v4684
        %5224 = vmatpush1.bf16.msra.mxu0 %v4683
        %5225 = vmatprep.subr.bf16.mxu0 %v4676
        %5226 = vmatpush1.bf16.msra.mxu0 %v4675
        %5227 = vmatprep.subr.bf16.mxu0 %v4668
        %5228 = vmatpush1.bf16.msra.mxu0 %v4667
        %5229 = vmatprep.subr.bf16.mxu0 %v4660
        %5230 = vmatpush1.bf16.msra.mxu0 %v4659
        %5231 = vmatprep.subr.bf16.mxu0 %v4652
        %5232 = vmatpush1.bf16.msra.mxu0 %v4651
        %5233 = vmatprep.subr.bf16.mxu0 %v4644
        %5234 = vmatpush1.bf16.msra.mxu0 %v4643
        %5235 = vmatprep.subr.bf16.mxu0 %v4636
        %5236 = vmatpush1.bf16.msra.mxu0 %v4635
        %5237 = vmatprep.subr.bf16.mxu0 %v4628
        %5238 = vmatpush1.bf16.msra.mxu0 %v4627
        %5239 = vmatprep.subr.bf16.mxu0 %v4748
        %5240 = vmatpush2.bf16.msra.mxu0 %v4747
        %5241 = vmatprep.subr.bf16.mxu0 %v4740
        %5242 = vmatpush2.bf16.msra.mxu0 %v4739
        %5243 = vmatprep.subr.bf16.mxu0 %v4732
        %5244 = vmatpush2.bf16.msra.mxu0 %v4731
        %5245 = vmatprep.subr.bf16.mxu0 %v4724
        %5246 = vmatpush2.bf16.msra.mxu0 %v4723
        %5247 = vmatprep.subr.bf16.mxu0 %v4716
        %5248 = vmatpush2.bf16.msra.mxu0 %v4715
        %5249 = vmatprep.subr.bf16.mxu0 %v4708
        %5250 = vmatpush2.bf16.msra.mxu0 %v4707
        %5251 = vmatprep.subr.bf16.mxu0 %v4700
        %5252 = vmatpush2.bf16.msra.mxu0 %v4699
        %5253 = vmatprep.subr.bf16.mxu0 %v4692
        %5254 = vmatpush2.bf16.msra.mxu0 %v4691
        %5255 = vmatprep.mubr.bf16.mxu0 %v3598
        %5256 = vmatmul.mubr.bf16.gmra.mxu0 %v3597
        %v5257 = vpop.f32.mrf.mxu0
        %v5258 = vadd.f32 0.0, %v5257
        %v5259 = vpop.f32.mrf.mxu0
        %v5260 = vadd.f32 0.0, %v5259
        %v5261 = vpop.f32.mrf.mxu0
        %v5262 = vadd.f32 0.0, %v5261
        %v5263 = vpop.f32.mrf.mxu0
        %v5264 = vadd.f32 0.0, %v5263
        %5265 = vdwg.mxu0
        %5266 = vmatprep.subr.bf16.mxu0 %v4812
        %5267 = vmatpush1.bf16.msra.mxu0 %v4811
        %5268 = vmatprep.subr.bf16.mxu0 %v4804
        %5269 = vmatpush1.bf16.msra.mxu0 %v4803
        %5270 = vmatprep.subr.bf16.mxu0 %v4796
        %5271 = vmatpush1.bf16.msra.mxu0 %v4795
        %5272 = vmatprep.subr.bf16.mxu0 %v4788
        %5273 = vmatpush1.bf16.msra.mxu0 %v4787
        %5274 = vmatprep.subr.bf16.mxu0 %v4780
        %5275 = vmatpush1.bf16.msra.mxu0 %v4779
        %5276 = vmatprep.subr.bf16.mxu0 %v4772
        %5277 = vmatpush1.bf16.msra.mxu0 %v4771
        %5278 = vmatprep.subr.bf16.mxu0 %v4764
        %5279 = vmatpush1.bf16.msra.mxu0 %v4763
        %5280 = vmatprep.subr.bf16.mxu0 %v4756
        %5281 = vmatpush1.bf16.msra.mxu0 %v4755
        %5282 = vmatprep.subr.bf16.mxu0 %v4876
        %5283 = vmatpush2.bf16.msra.mxu0 %v4875
        %5284 = vmatprep.subr.bf16.mxu0 %v4868
        %5285 = vmatpush2.bf16.msra.mxu0 %v4867
        %5286 = vmatprep.subr.bf16.mxu0 %v4860
        %5287 = vmatpush2.bf16.msra.mxu0 %v4859
        %5288 = vmatprep.subr.bf16.mxu0 %v4852
        %5289 = vmatpush2.bf16.msra.mxu0 %v4851
        %5290 = vmatprep.subr.bf16.mxu0 %v4844
        %5291 = vmatpush2.bf16.msra.mxu0 %v4843
        %5292 = vmatprep.subr.bf16.mxu0 %v4836
        %5293 = vmatpush2.bf16.msra.mxu0 %v4835
        %5294 = vmatprep.subr.bf16.mxu0 %v4828
        %5295 = vmatpush2.bf16.msra.mxu0 %v4827
        %5296 = vmatprep.subr.bf16.mxu0 %v4820
        %5297 = vmatpush2.bf16.msra.mxu0 %v4819
        %5298 = vmatprep.mubr.bf16.mxu0 %v3600
        %5299 = vmatmul.mubr.bf16.gmra.mxu0 %v3599
        %v5300 = vpop.f32.mrf.mxu0
        %v5301 = vadd.f32 %v5258, %v5300
        %v5302 = vpop.f32.mrf.mxu0
        %v5303 = vadd.f32 %v5260, %v5302
        %v5304 = vpop.f32.mrf.mxu0
        %v5305 = vadd.f32 %v5262, %v5304
        %v5306 = vpop.f32.mrf.mxu0
        %v5307 = vadd.f32 %v5264, %v5306
        %5308 = vdwg.mxu0
        %5309 = vmatprep.subr.bf16.mxu0 %v4686
        %5310 = vmatpush1.bf16.msra.mxu0 %v4685
        %5311 = vmatprep.subr.bf16.mxu0 %v4678
        %5312 = vmatpush1.bf16.msra.mxu0 %v4677
        %5313 = vmatprep.subr.bf16.mxu0 %v4670
        %5314 = vmatpush1.bf16.msra.mxu0 %v4669
        %5315 = vmatprep.subr.bf16.mxu0 %v4662
        %5316 = vmatpush1.bf16.msra.mxu0 %v4661
        %5317 = vmatprep.subr.bf16.mxu0 %v4654
        %5318 = vmatpush1.bf16.msra.mxu0 %v4653
        %5319 = vmatprep.subr.bf16.mxu0 %v4646
        %5320 = vmatpush1.bf16.msra.mxu0 %v4645
        %5321 = vmatprep.subr.bf16.mxu0 %v4638
        %5322 = vmatpush1.bf16.msra.mxu0 %v4637
        %5323 = vmatprep.subr.bf16.mxu0 %v4630
        %5324 = vmatpush1.bf16.msra.mxu0 %v4629
        %5325 = vmatprep.subr.bf16.mxu0 %v4750
        %5326 = vmatpush2.bf16.msra.mxu0 %v4749
        %5327 = vmatprep.subr.bf16.mxu0 %v4742
        %5328 = vmatpush2.bf16.msra.mxu0 %v4741
        %5329 = vmatprep.subr.bf16.mxu0 %v4734
        %5330 = vmatpush2.bf16.msra.mxu0 %v4733
        %5331 = vmatprep.subr.bf16.mxu0 %v4726
        %5332 = vmatpush2.bf16.msra.mxu0 %v4725
        %5333 = vmatprep.subr.bf16.mxu0 %v4718
        %5334 = vmatpush2.bf16.msra.mxu0 %v4717
        %5335 = vmatprep.subr.bf16.mxu0 %v4710
        %5336 = vmatpush2.bf16.msra.mxu0 %v4709
        %5337 = vmatprep.subr.bf16.mxu0 %v4702
        %5338 = vmatpush2.bf16.msra.mxu0 %v4701
        %5339 = vmatprep.subr.bf16.mxu0 %v4694
        %5340 = vmatpush2.bf16.msra.mxu0 %v4693
        %5341 = vmatprep.mubr.bf16.mxu0 %v3598
        %5342 = vmatmul.mubr.bf16.gmra.mxu0 %v3597
        %v5343 = vpop.f32.mrf.mxu0
        %v5344 = vadd.f32 0.0, %v5343
        %v5345 = vpop.f32.mrf.mxu0
        %v5346 = vadd.f32 0.0, %v5345
        %v5347 = vpop.f32.mrf.mxu0
        %v5348 = vadd.f32 0.0, %v5347
        %v5349 = vpop.f32.mrf.mxu0
        %v5350 = vadd.f32 0.0, %v5349
        %5351 = vdwg.mxu0
        %5352 = vmatprep.subr.bf16.mxu0 %v4814
        %5353 = vmatpush1.bf16.msra.mxu0 %v4813
        %5354 = vmatprep.subr.bf16.mxu0 %v4806
        %5355 = vmatpush1.bf16.msra.mxu0 %v4805
        %5356 = vmatprep.subr.bf16.mxu0 %v4798
        %5357 = vmatpush1.bf16.msra.mxu0 %v4797
        %5358 = vmatprep.subr.bf16.mxu0 %v4790
        %5359 = vmatpush1.bf16.msra.mxu0 %v4789
        %5360 = vmatprep.subr.bf16.mxu0 %v4782
        %5361 = vmatpush1.bf16.msra.mxu0 %v4781
        %5362 = vmatprep.subr.bf16.mxu0 %v4774
        %5363 = vmatpush1.bf16.msra.mxu0 %v4773
        %5364 = vmatprep.subr.bf16.mxu0 %v4766
        %5365 = vmatpush1.bf16.msra.mxu0 %v4765
        %5366 = vmatprep.subr.bf16.mxu0 %v4758
        %5367 = vmatpush1.bf16.msra.mxu0 %v4757
        %5368 = vmatprep.subr.bf16.mxu0 %v4878
        %5369 = vmatpush2.bf16.msra.mxu0 %v4877
        %5370 = vmatprep.subr.bf16.mxu0 %v4870
        %5371 = vmatpush2.bf16.msra.mxu0 %v4869
        %5372 = vmatprep.subr.bf16.mxu0 %v4862
        %5373 = vmatpush2.bf16.msra.mxu0 %v4861
        %5374 = vmatprep.subr.bf16.mxu0 %v4854
        %5375 = vmatpush2.bf16.msra.mxu0 %v4853
        %5376 = vmatprep.subr.bf16.mxu0 %v4846
        %5377 = vmatpush2.bf16.msra.mxu0 %v4845
        %5378 = vmatprep.subr.bf16.mxu0 %v4838
        %5379 = vmatpush2.bf16.msra.mxu0 %v4837
        %5380 = vmatprep.subr.bf16.mxu0 %v4830
        %5381 = vmatpush2.bf16.msra.mxu0 %v4829
        %5382 = vmatprep.subr.bf16.mxu0 %v4822
        %5383 = vmatpush2.bf16.msra.mxu0 %v4821
        %5384 = vmatprep.mubr.bf16.mxu0 %v3600
        %5385 = vmatmul.mubr.bf16.gmra.mxu0 %v3599
        %v5386 = vpop.f32.mrf.mxu0
        %v5387 = vadd.f32 %v5344, %v5386
        %v5388 = vpop.f32.mrf.mxu0
        %v5389 = vadd.f32 %v5346, %v5388
        %v5390 = vpop.f32.mrf.mxu0
        %v5391 = vadd.f32 %v5348, %v5390
        %v5392 = vpop.f32.mrf.mxu0
        %v5393 = vadd.f32 %v5350, %v5392
        %5394 = vdwg.mxu0
        %5395 = vmatprep.subr.bf16.mxu0 %v4688
        %5396 = vmatpush1.bf16.msra.mxu0 %v4687
        %5397 = vmatprep.subr.bf16.mxu0 %v4680
        %5398 = vmatpush1.bf16.msra.mxu0 %v4679
        %5399 = vmatprep.subr.bf16.mxu0 %v4672
        %5400 = vmatpush1.bf16.msra.mxu0 %v4671
        %5401 = vmatprep.subr.bf16.mxu0 %v4664
        %5402 = vmatpush1.bf16.msra.mxu0 %v4663
        %5403 = vmatprep.subr.bf16.mxu0 %v4656
        %5404 = vmatpush1.bf16.msra.mxu0 %v4655
        %5405 = vmatprep.subr.bf16.mxu0 %v4648
        %5406 = vmatpush1.bf16.msra.mxu0 %v4647
        %5407 = vmatprep.subr.bf16.mxu0 %v4640
        %5408 = vmatpush1.bf16.msra.mxu0 %v4639
        %5409 = vmatprep.subr.bf16.mxu0 %v4632
        %5410 = vmatpush1.bf16.msra.mxu0 %v4631
        %5411 = vmatprep.subr.bf16.mxu0 %v4752
        %5412 = vmatpush2.bf16.msra.mxu0 %v4751
        %5413 = vmatprep.subr.bf16.mxu0 %v4744
        %5414 = vmatpush2.bf16.msra.mxu0 %v4743
        %5415 = vmatprep.subr.bf16.mxu0 %v4736
        %5416 = vmatpush2.bf16.msra.mxu0 %v4735
        %5417 = vmatprep.subr.bf16.mxu0 %v4728
        %5418 = vmatpush2.bf16.msra.mxu0 %v4727
        %5419 = vmatprep.subr.bf16.mxu0 %v4720
        %5420 = vmatpush2.bf16.msra.mxu0 %v4719
        %5421 = vmatprep.subr.bf16.mxu0 %v4712
        %5422 = vmatpush2.bf16.msra.mxu0 %v4711
        %5423 = vmatprep.subr.bf16.mxu0 %v4704
        %5424 = vmatpush2.bf16.msra.mxu0 %v4703
        %5425 = vmatprep.subr.bf16.mxu0 %v4696
        %5426 = vmatpush2.bf16.msra.mxu0 %v4695
        %5427 = vmatprep.mubr.bf16.mxu0 %v3598
        %5428 = vmatmul.mubr.bf16.gmra.mxu0 %v3597
        %v5429 = vpop.f32.mrf.mxu0
        %v5430 = vadd.f32 0.0, %v5429
        %v5431 = vpop.f32.mrf.mxu0
        %v5432 = vadd.f32 0.0, %v5431
        %v5433 = vpop.f32.mrf.mxu0
        %v5434 = vadd.f32 0.0, %v5433
        %v5435 = vpop.f32.mrf.mxu0
        %v5436 = vadd.f32 0.0, %v5435
        %5437 = vdwg.mxu0
        %5438 = vmatprep.subr.bf16.mxu0 %v4816
        %5439 = vmatpush1.bf16.msra.mxu0 %v4815
        %5440 = vmatprep.subr.bf16.mxu0 %v4808
        %5441 = vmatpush1.bf16.msra.mxu0 %v4807
        %5442 = vmatprep.subr.bf16.mxu0 %v4800
        %5443 = vmatpush1.bf16.msra.mxu0 %v4799
        %5444 = vmatprep.subr.bf16.mxu0 %v4792
        %5445 = vmatpush1.bf16.msra.mxu0 %v4791
        %5446 = vmatprep.subr.bf16.mxu0 %v4784
        %5447 = vmatpush1.bf16.msra.mxu0 %v4783
        %5448 = vmatprep.subr.bf16.mxu0 %v4776
        %5449 = vmatpush1.bf16.msra.mxu0 %v4775
        %5450 = vmatprep.subr.bf16.mxu0 %v4768
        %5451 = vmatpush1.bf16.msra.mxu0 %v4767
        %5452 = vmatprep.subr.bf16.mxu0 %v4760
        %5453 = vmatpush1.bf16.msra.mxu0 %v4759
        %5454 = vmatprep.subr.bf16.mxu0 %v4880
        %5455 = vmatpush2.bf16.msra.mxu0 %v4879
        %5456 = vmatprep.subr.bf16.mxu0 %v4872
        %5457 = vmatpush2.bf16.msra.mxu0 %v4871
        %5458 = vmatprep.subr.bf16.mxu0 %v4864
        %5459 = vmatpush2.bf16.msra.mxu0 %v4863
        %5460 = vmatprep.subr.bf16.mxu0 %v4856
        %5461 = vmatpush2.bf16.msra.mxu0 %v4855
        %5462 = vmatprep.subr.bf16.mxu0 %v4848
        %5463 = vmatpush2.bf16.msra.mxu0 %v4847
        %5464 = vmatprep.subr.bf16.mxu0 %v4840
        %5465 = vmatpush2.bf16.msra.mxu0 %v4839
        %5466 = vmatprep.subr.bf16.mxu0 %v4832
        %5467 = vmatpush2.bf16.msra.mxu0 %v4831
        %5468 = vmatprep.subr.bf16.mxu0 %v4824
        %5469 = vmatpush2.bf16.msra.mxu0 %v4823
        %5470 = vmatprep.mubr.bf16.mxu0 %v3600
        %5471 = vmatmul.mubr.bf16.gmra.mxu0 %v3599
        %v5472 = vpop.f32.mrf.mxu0
        %v5473 = vadd.f32 %v5430, %v5472
        %v5474 = vpop.f32.mrf.mxu0
        %v5475 = vadd.f32 %v5432, %v5474
        %v5476 = vpop.f32.mrf.mxu0
        %v5477 = vadd.f32 %v5434, %v5476
        %v5478 = vpop.f32.mrf.mxu0
        %v5479 = vadd.f32 %v5436, %v5478
        %5480 = vdwg.mxu0
        %vm5485 = vcmask 1040384
        %v5486 = vrot.slane %v5301, 7
        %v5487 = vrot.slane %v5303, 7
        %v5488 = vrot.slane %v5305, 7
        %v5489 = vsel %vm5485, %v5486, %v5488
        %v5490 = vrot.slane %v5307, 7
        %v5491 = vsel %vm5485, %v5487, %v5490
        %v5498 = vsel %vm5485, 0.0, %v5486
        %v5499 = vsel %vm5485, 0.0, %v5487
        %v5500 = vsel %vm5485, %v5488, 0.0
        %v5501 = vsel %vm5485, %v5490, 0.0
        %v5502 = vadd.f32 %v5215, %v5498
        %v5503 = vadd.f32 %v5217, %v5499
        %v5504 = vadd.f32 %v5219, %v5489
        %v5505 = vadd.f32 %v5221, %v5491
        %v5506 = vadd.f32 %v5500, 0.0
        %v5507 = vadd.f32 %v5501, 0.0
        %vm5512 = vcmask 1041408
        %v5513 = vrot.slane %v5387, 6
        %v5514 = vrot.slane %v5389, 6
        %v5515 = vrot.slane %v5391, 6
        %v5516 = vsel %vm5512, %v5513, %v5515
        %v5517 = vrot.slane %v5393, 6
        %v5518 = vsel %vm5512, %v5514, %v5517
        %v5525 = vsel %vm5512, 0.0, %v5513
        %v5526 = vsel %vm5512, 0.0, %v5514
        %v5527 = vsel %vm5512, %v5515, 0.0
        %v5528 = vsel %vm5512, %v5517, 0.0
        %v5529 = vadd.f32 %v5502, %v5525
        %v5530 = vadd.f32 %v5503, %v5526
        %v5531 = vadd.f32 %v5504, %v5516
        %v5532 = vadd.f32 %v5505, %v5518
        %v5533 = vadd.f32 %v5506, %v5527
        %v5534 = vadd.f32 %v5507, %v5528
        %vm5539 = vcmask 1042432
        %v5540 = vrot.slane %v5473, 5
        %v5541 = vrot.slane %v5475, 5
        %v5542 = vrot.slane %v5477, 5
        %v5543 = vsel %vm5539, %v5540, %v5542
        %v5544 = vrot.slane %v5479, 5
        %v5545 = vsel %vm5539, %v5541, %v5544
        %v5552 = vsel %vm5539, 0.0, %v5540
        %v5553 = vsel %vm5539, 0.0, %v5541
        %v5554 = vadd.f32 %v5529, %v5552
        %v5555 = vadd.f32 %v5530, %v5553
        %v5556 = vadd.f32 %v5531, %v5543
        %v5557 = vadd.f32 %v5532, %v5545
        %v5558 = vadd.f32 %v5533, %v5542
        %v5559 = vadd.f32 %v5534, %v5544
        %5560 = vst [vmem:[%s675] sm:$0xff] %v5554
        %5561 = vst [vmem:[%s675 + $0x8] sm:$0xff] %v5555
        %5562 = vst [vmem:[%s675 + $0x10] sm:$0xff] %v5556
        %5563 = vst [vmem:[%s675 + $0x18] sm:$0xff] %v5557
        %5564 = vst [vmem:[%s675 + $0x20] sm:$0x7] %v5558
        %5565 = vst [vmem:[%s675 + $0x28] sm:$0x7] %v5559
        %v5566 = vld [vmem:[%s670] sm:$0xff]
        %v5567 = vld [vmem:[%s670 + $0x8] sm:$0xff]
        %v5568 = vld [vmem:[%s670 + $0x10] sm:$0xff]
        %v5569 = vld [vmem:[%s670 + $0x18] sm:$0xff]
        %v5570 = vld [vmem:[%s670 + $0x20] sm:$0x7]
        %v5571 = vld [vmem:[%s670 + $0x28] sm:$0x7]
        %v5572 = vadd.f32 %v5554, %v5555
        %5573 = vadd.xlane.f32.xlu0 %v5572
        %v5574 = vpop.xlane.xlu0 %5573
        %v5575 = vadd.f32 %v5556, %v5557
        %5576 = vadd.xlane.f32.xlu0 %v5575
        %v5577 = vpop.xlane.xlu0 %5576
        %v5578 = vsel %vm5539, %v5558, 0.0
        %v5579 = vsel %vm5539, %v5559, 0.0
        %v5580 = vadd.f32 %v5578, %v5579
        %5581 = vadd.xlane.f32.xlu0 %v5580
        %v5582 = vpop.xlane.xlu0 %5581
        %v5583 = vadd.f32 %v5574, %v5577
        %v5584 = vsel %vm5539, %v5582, 0.0
        %v5585 = vadd.f32 %v5583, %v5584
        %v5586 = vrot.slane %v5585, 4
        %v5587 = vadd.f32 %v5585, %v5586
        %v5588 = vrot.slane %v5587, 2
        %v5589 = vadd.f32 %v5587, %v5588
        %v5590 = vrot.slane %v5589, 1
        %v5591 = vadd.f32 %v5589, %v5590
        %v5592 = vadd.f32 %v5566, %v5567
        %5593 = vadd.xlane.f32.xlu0 %v5592
        %v5594 = vpop.xlane.xlu0 %5593
        %v5595 = vadd.f32 %v5568, %v5569
        %5596 = vadd.xlane.f32.xlu0 %v5595
        %v5597 = vpop.xlane.xlu0 %5596
        %v5598 = vsel %vm5539, %v5570, 0.0
        %v5599 = vsel %vm5539, %v5571, 0.0
        %v5600 = vadd.f32 %v5598, %v5599
        %5601 = vadd.xlane.f32.xlu0 %v5600
        %v5602 = vpop.xlane.xlu0 %5601
        %v5603 = vadd.f32 %v5594, %v5597
        %v5604 = vsel %vm5539, %v5602, 0.0
        %v5605 = vadd.f32 %v5603, %v5604
        %v5606 = vrot.slane %v5605, 4
        %v5607 = vadd.f32 %v5605, %v5606
        %v5608 = vrot.slane %v5607, 2
        %v5609 = vadd.f32 %v5607, %v5608
        %v5610 = vrot.slane %v5609, 1
        %v5611 = vadd.f32 %v5609, %v5610
        %v5612 = vmul.f32 %v5554, %v5566
        %v5613 = vmul.f32 %v5555, %v5567
        %v5614 = vmul.f32 %v5556, %v5568
        %v5615 = vmul.f32 %v5557, %v5569
        %v5616 = vmul.f32 %v5558, %v5570
        %v5617 = vmul.f32 %v5559, %v5571
        %v5618 = vadd.f32 %v5612, %v5613
        %5619 = vadd.xlane.f32.xlu0 %v5618
        %v5620 = vpop.xlane.xlu0 %5619
        %v5621 = vadd.f32 %v5614, %v5615
        %5622 = vadd.xlane.f32.xlu0 %v5621
        %v5623 = vpop.xlane.xlu0 %5622
        %v5624 = vsel %vm5539, %v5616, 0.0
        %v5625 = vsel %vm5539, %v5617, 0.0
        %v5626 = vadd.f32 %v5624, %v5625
        %5627 = vadd.xlane.f32.xlu0 %v5626
        %v5628 = vpop.xlane.xlu0 %5627
        %v5629 = vadd.f32 %v5620, %v5623
        %v5630 = vsel %vm5539, %v5628, 0.0
        %v5631 = vadd.f32 %v5629, %v5630
        %v5632 = vrot.slane %v5631, 4
        %v5633 = vadd.f32 %v5631, %v5632
        %v5634 = vrot.slane %v5633, 2
        %v5635 = vadd.f32 %v5633, %v5634
        %v5636 = vrot.slane %v5635, 1
        %v5637 = vadd.f32 %v5635, %v5636
        %v5638 = vmul.f32 %v5554, %v5554
        %v5639 = vmul.f32 %v5555, %v5555
        %v5640 = vmul.f32 %v5556, %v5556
        %v5641 = vmul.f32 %v5557, %v5557
        %v5642 = vmul.f32 %v5558, %v5558
        %v5643 = vmul.f32 %v5559, %v5559
        %v5644 = vadd.f32 %v5638, %v5639
        %5645 = vadd.xlane.f32.xlu0 %v5644
        %v5646 = vpop.xlane.xlu0 %5645
        %v5647 = vadd.f32 %v5640, %v5641
        %5648 = vadd.xlane.f32.xlu0 %v5647
        %v5649 = vpop.xlane.xlu0 %5648
        %v5650 = vsel %vm5539, %v5642, 0.0
        %v5651 = vsel %vm5539, %v5643, 0.0
        %v5652 = vadd.f32 %v5650, %v5651
        %5653 = vadd.xlane.f32.xlu0 %v5652
        %v5654 = vpop.xlane.xlu0 %5653
        %v5655 = vadd.f32 %v5646, %v5649
        %v5656 = vsel %vm5539, %v5654, 0.0
        %v5657 = vadd.f32 %v5655, %v5656
        %v5658 = vrot.slane %v5657, 4
        %v5659 = vadd.f32 %v5657, %v5658
        %v5660 = vrot.slane %v5659, 2
        %v5661 = vadd.f32 %v5659, %v5660
        %v5662 = vrot.slane %v5661, 1
        %v5663 = vadd.f32 %v5661, %v5662
        %v5664 = vmul.f32 %v5566, %v5566
        %v5665 = vmul.f32 %v5567, %v5567
        %v5666 = vmul.f32 %v5568, %v5568
        %v5667 = vmul.f32 %v5569, %v5569
        %v5668 = vmul.f32 %v5570, %v5570
        %v5669 = vmul.f32 %v5571, %v5571
        %v5670 = vadd.f32 %v5664, %v5665
        %5671 = vadd.xlane.f32.xlu0 %v5670
        %v5672 = vpop.xlane.xlu0 %5671
        %v5673 = vadd.f32 %v5666, %v5667
        %5674 = vadd.xlane.f32.xlu0 %v5673
        %v5675 = vpop.xlane.xlu0 %5674
        %v5676 = vsel %vm5539, %v5668, 0.0
        %v5677 = vsel %vm5539, %v5669, 0.0
        %v5678 = vadd.f32 %v5676, %v5677
        %5679 = vadd.xlane.f32.xlu0 %v5678
        %v5680 = vpop.xlane.xlu0 %5679
        %v5681 = vadd.f32 %v5672, %v5675
        %v5682 = vsel %vm5539, %v5680, 0.0
        %v5683 = vadd.f32 %v5681, %v5682
        %v5684 = vrot.slane %v5683, 4
        %v5685 = vadd.f32 %v5683, %v5684
        %v5686 = vrot.slane %v5685, 2
        %v5687 = vadd.f32 %v5685, %v5686
        %v5688 = vrot.slane %v5687, 1
        %v5689 = vadd.f32 %v5687, %v5688
        %v5690 = vmul.f32 %v5591, %v5611
        %v5691 = vmul.f32 %v5690, 0.0002055921
        %v5692 = vsub.f32 %v5637, %v5691
        %v5693 = vmul.f32 %v5591, %v5591
        %v5694 = vmul.f32 %v5693, 0.0002055921
        %v5695 = vsub.f32 %v5663, %v5694
        %v5696 = vmul.f32 %v5611, %v5611
        %v5697 = vmul.f32 %v5696, 0.0002055921
        %v5698 = vsub.f32 %v5689, %v5697
        %v5699 = vadd.f32 %v5698, 1e-08
        %v5700 = vmul.f32 %v5692, %v5692
        %v5701 = vrcp.pop %v5699
        %v5702 = vmul.f32 %v5700, %v5701
        %v5703 = vsub.f32 %v5695, %v5702
        %v5704 = vadd.f32 %v5703, 1e-08
        %v5705 = vrcp.pop %v5704
        %v5706 = vmul.f32 %v5702, %v5705
        %v5707 = vadd.f32 %v5706, 1e-08
        %v5708 = vlog2.pop %v5707
        %v5709 = vmul.f32 %v5708, 0.6931472
        %v5710 = vmul.f32 %v5709, 0.4342945
        %v5711 = vmul.f32 %v5710, -10.0
        %5712 = vst [vmem:[%s650] sm:$0x1] %v5711
        %p5713 = scmp.lt.s32.totalorder %s35, 1
        %s5714 = scalar_select %p5713, %s35, 1
        %s5715 = smul.addr %s5714, 6
        %s5716 = smul.addr %s5715, 8
        %s5717 = scalar_lea.vmem %s17, %s5716
        %s5718 = sand.u32 %s446, 1
        %s5719 = scalar_lea.sflag [#allocation4], %s5718
        %s5720 = sand.u32 %s446, 1
        %s5721 = scalar_lea.vmem [#allocation7], %s5720
        // Predicated region
        $region97: #{tpu_custom_call.1} parent=87 // pred_check
          %p5722 = pneg %p430
        $region98: #{tpu_custom_call.1} parent=87 // pred_check_branch
          %5724 = sbr.rel (%p5722) target = $region100
        $region99: #{tpu_custom_call.1} parent=87 // pred_region
          _
        $region100: #{tpu_custom_call.1} parent=87 // pred_fallthru
          _
        // Predicated region
        $region101: #{tpu_custom_call.1} parent=87 // pred_check
          %p5725 = pneg %p456
        $region102: #{tpu_custom_call.1} parent=87 // pred_check_branch
          %5727 = sbr.rel (%p5725) target = $region104
        $region103: #{tpu_custom_call.1} parent=87 // pred_region
          %s5729 = ssub.s32 16, 16
          %5730 = vsyncadd %s5719, %s5729
          %s5731 = smul.addr %s35, 16
          %s5732 = scalar_lea.hbm %s18, %s5731
          %s5734 = sshll.u32 %s5721, 4
          %s5735 = int_to_ptr.vmem [resolvable:$true] %s5734
          %5737 = dma.vmem_to_hbm [thread:$0]  %s5735, 16, %s5732, %s5719
        $region104: #{tpu_custom_call.1} parent=87 // pred_fallthru
          _
      $region88: #{tpu_custom_call.1} parent=5 // pred_fallthru
        _
      %p5738 = scmp.le.s32.totalorder 2, %s30
      // Predicated region
      $region105: #{tpu_custom_call.1} parent=5 // pred_check
        %p5739 = pneg %p5738
      $region106: #{tpu_custom_call.1} parent=5 // pred_check_branch
        %5741 = sbr.rel (%p5739) target = $region108
      $region107: #{tpu_custom_call.1} parent=5 // pred_region
        %s5742 = ssub.s32 %s30, 2
        // Predicated region
        $region109: #{tpu_custom_call.1} parent=107 // pred_check
          %p5743 = pneg %p436
        $region110: #{tpu_custom_call.1} parent=107 // pred_check_branch
          %5745 = sbr.rel (%p5743) target = $region112
        $region111: #{tpu_custom_call.1} parent=107 // pred_region
          %p5746 = scmp.lt.s32.totalorder %s36, 1
          %s5747 = scalar_select %p5746, %s36, 1
          %s5748 = smul.addr %s5747, 6
          %s5749 = smul.addr %s5748, 8
          %s5750 = scalar_lea.vmem %s17, %s5749
        $region112: #{tpu_custom_call.1} parent=107 // pred_fallthru
          _
        // Predicated region
        $region113: #{tpu_custom_call.1} parent=107 // pred_check
          %p5751 = pneg %p462
        $region114: #{tpu_custom_call.1} parent=107 // pred_check_branch
          %5753 = sbr.rel (%p5751) target = $region116
        $region115: #{tpu_custom_call.1} parent=107 // pred_region
          %s5754 = sand.u32 %s447, 1
          %s5755 = scalar_lea.sflag [#allocation4], %s5754
          %s5756 = sand.u32 %s447, 1
          %s5757 = scalar_lea.vmem [#allocation7], %s5756
          %5758 = dma.done %s5755, 16
        $region116: #{tpu_custom_call.1} parent=107 // pred_fallthru
          _
      $region108: #{tpu_custom_call.1} parent=5 // pred_fallthru
        _
    $region6: #{tpu_custom_call.1} parent=1 // loop_footer
      %s34 = sadd.s32 1, %s30
    $region7: #{tpu_custom_call.1} parent=1 // loop_footer_branch
      %29 = sbr.rel target = $region3
    $region8: #{tpu_custom_call.1} parent=1 // loop_exit
      _
    %5759 = vsyncpa [#allocation3], 1
    %s5760 = scalar_lea.sflag [#allocation3], 1
    %5761 = vsyncpa %s5760, 1
    %5762 = vsyncpa [#allocation6], 1
    %5763 = vsyncpa [#allocation4], 1
    %s5764 = scalar_lea.sflag [#allocation4], 1
    %5765 = vsyncpa %s5764, 1

</llo_original>
